<compile_context>
chip_gen: v7x
topology: tpu7x:2x2x1
jax: 0.10.0
libtpu: 0.0.40
codegen_flags: <defaults>
</compile_context>

<pallas_src>
import functools

import jax
import jax.numpy as jnp
from jax.experimental import pallas as pl
from jax.experimental.pallas import tpu as pltpu

NEG_SLOPE = 0.01      # F.leaky_relu default
NORM_EPS = 1e-12      # F.normalize default eps


# ----------------------------------------------------------------------------
# Kernels
# ----------------------------------------------------------------------------

def _epilogue(h, norm):
    """Optional row-wise L2 normalize (rsqrt on EUP) + leaky_relu, all in f32."""
    if norm:
        ss = jnp.sum(h * h, axis=1, keepdims=True)
        # h / max(||h||, eps) == h * rsqrt(max(||h||^2, eps^2))
        h = h * jax.lax.rsqrt(jnp.maximum(ss, NORM_EPS * NORM_EPS))
    return jnp.where(h >= 0, h, NEG_SLOPE * h)


def _project_kernel(x_ref, w_ref, out_ref):
    """xb = x @ W1b (reassociated layer-1 aggregation operand), stored as bf16."""
    out_ref[...] = jnp.dot(x_ref[...], w_ref[...],
                           preferred_element_type=jnp.float32).astype(out_ref.dtype)


def _tag_first_kernel(xt_ref, xb_ref, adj_ref, wa_ref, b_ref, out_ref):
    """Layer 1 (reassociated): h1 = leaky(x @ W1a + adj @ (x @ W1b) + b1)."""
    agg = jnp.dot(adj_ref[...], xb_ref[...].astype(jnp.bfloat16),
                  preferred_element_type=jnp.float32)
    h = (jnp.dot(xt_ref[...], wa_ref[...], preferred_element_type=jnp.float32)
         + agg + b_ref[...])
    out_ref[...] = _epilogue(h, norm=False)


def _tag_mid_kernel(ht_ref, hfull_ref, adj_ref, wa_ref, wb_ref, b_ref, out_ref, *, norm):
    """Layers 2/3: h = leaky([norm](h_prev @ Wa + (adj @ h_prev) @ Wb + b))."""
    agg = jnp.dot(adj_ref[...], hfull_ref[...].astype(jnp.bfloat16),
                  preferred_element_type=jnp.float32)
    agg = jnp.dot(agg, wb_ref[...], preferred_element_type=jnp.float32)
    h = (jnp.dot(ht_ref[...], wa_ref[...], preferred_element_type=jnp.float32)
         + agg + b_ref[...])
    out_ref[...] = _epilogue(h, norm)


def _tag_last_kernel(h1_ref, h2_ref, h3t_ref, h3f_ref, adj_ref,
                     wa_ref, wb_ref, b_ref, wla_ref, wlb_ref, bl_ref, out_ref):
    """Layer 4 fused with the mean/max combine and the final Linear(64->18, padded 128)."""
    agg = jnp.dot(adj_ref[...], h3f_ref[...].astype(jnp.bfloat16),
                  preferred_element_type=jnp.float32)
    agg = jnp.dot(agg, wb_ref[...], preferred_element_type=jnp.float32)
    h3 = h3t_ref[...]
    h4 = _epilogue(jnp.dot(h3, wa_ref[...], preferred_element_type=jnp.float32)
                   + agg + b_ref[...], norm=True)
    h1 = h1_ref[...]
    h2 = h2_ref[...]
    ot1 = (h1 + h2 + h3 + h4) * 0.25
    ot2 = jnp.maximum(jnp.maximum(h1, h2), jnp.maximum(h3, h4))
    out = (jnp.dot(ot1, wla_ref[...], preferred_element_type=jnp.float32)
           + jnp.dot(ot2, wlb_ref[...], preferred_element_type=jnp.float32)
           + bl_ref[...])
    out_ref[...] = out.astype(out_ref.dtype)


# ----------------------------------------------------------------------------
# Host wrapper
# ----------------------------------------------------------------------------

def _choose_row_tile(np_):
    """Biggest row tile whose double-buffered bf16 adj stream stays ~<= 8 MiB."""
    budget = 8 << 20
    for cand in (512, 256, 128, 64, 32, 16, 8):
        if np_ % cand == 0 and 2 * cand * np_ * 2 <= budget:
            return cand
    return 8


def _vmem_limit_bytes(tm, np_):
    adj_dbuf = 2 * tm * np_ * 2            # streamed bf16 adj row tile, double buffered
    h_full = 2 * np_ * 32 * 4              # resident aggregation operand (f32)
    tiles = 2 * tm * (4 * 32 + 2 * 128) * 4  # per-step h / padded-x / padded-out tiles
    est = adj_dbuf + h_full + tiles + (4 << 20)
    return int(min(max(est, 32 << 20), 64 << 20))


def _layer_cost(np_, norm):
    return pl.CostEstimate(
        flops=2 * np_ * np_ * 32 + 8 * np_ * 32 * 32,
        transcendentals=np_ if norm else 0,
        bytes_accessed=2 * np_ * np_ + 6 * np_ * 32 * 4,
    )


@jax.jit
def daftstone_sur_forward(x, adj, params):
    n, f_in = x.shape
    np_ = max(128, ((n + 127) // 128) * 128)      # pad N to a lane-friendly multiple
    tm = _choose_row_tile(np_)
    grid = (np_ // tm,)

    cp = pltpu.CompilerParams(
        dimension_semantics=("parallel",),
        vmem_limit_bytes=_vmem_limit_bytes(tm, np_),
    )

    # ---- host-side padding / dtype prep -------------------------------------
    x_p = jnp.zeros((np_, 128), jnp.float32).at[:n, :f_in].set(x.astype(jnp.float32))
    adj_p = jnp.zeros((np_, np_), jnp.bfloat16).at[:n, :n].set(adj.astype(jnp.bfloat16))

    (w1a, w1b, b1), (w2a, w2b, b2), (w3a, w3b, b3), (w4a, w4b, b4) = params["layers"]
    wla, wlb, bll = params["ll"]

    w1a_p = jnp.zeros((128, 32), jnp.float32).at[:f_in].set(w1a)
    w1b_p = jnp.zeros((128, 32), jnp.float32).at[:f_in].set(w1b)
    n_out = wla.shape[1]                                   # 18
    wla_p = jnp.zeros((32, 128), jnp.float32).at[:, :n_out].set(wla)
    wlb_p = jnp.zeros((32, 128), jnp.float32).at[:, :n_out].set(wlb)
    bll_p = jnp.zeros((1, 128), jnp.float32).at[:, :n_out].set(bll)

    # ---- specs ---------------------------------------------------------------
    def tile_spec(c):
        return pl.BlockSpec((tm, c), lambda i: (i, 0))

    def full_spec(shape):
        return pl.BlockSpec(shape, lambda i: (0, 0))

    adj_spec = pl.BlockSpec((tm, np_), lambda i: (i, 0))
    hfull_spec = full_spec((np_, 32))

    # ---- xb = x @ W1b (reassociated layer-1 aggregation operand, bf16) -------
    xb = pl.pallas_call(
        _project_kernel,
        out_shape=jax.ShapeDtypeStruct((np_, 32), jnp.bfloat16),
        grid=grid,
        in_specs=[tile_spec(128), full_spec((128, 32))],
        out_specs=tile_spec(32),
        compiler_params=cp,
    )(x_p, w1b_p)

    # ---- layer 1 -------------------------------------------------------------
    h1 = pl.pallas_call(
        _tag_first_kernel,
        out_shape=jax.ShapeDtypeStruct((np_, 32), jnp.float32),
        grid=grid,
        in_specs=[tile_spec(128), hfull_spec, adj_spec,
                  full_spec((128, 32)), full_spec((1, 32))],
        out_specs=tile_spec(32),
        compiler_params=cp,
        cost_estimate=_layer_cost(np_, norm=False),
    )(x_p, xb, adj_p, w1a_p, b1)

    # ---- layers 2 & 3 --------------------------------------------------------
    def mid_layer(h_prev, wa, wb, b, norm):
        return pl.pallas_call(
            functools.partial(_tag_mid_kernel, norm=norm),
            out_shape=jax.ShapeDtypeStruct((np_, 32), jnp.float32),
            grid=grid,
            in_specs=[tile_spec(32), hfull_spec, adj_spec,
                      full_spec((32, 32)), full_spec((32, 32)), full_spec((1, 32))],
            out_specs=tile_spec(32),
            compiler_params=cp,
            cost_estimate=_layer_cost(np_, norm=norm),
        )(h_prev, h_prev, adj_p, wa, wb, b)

    h2 = mid_layer(h1, w2a, w2b, b2, norm=False)
    h3 = mid_layer(h2, w3a, w3b, b3, norm=True)

    # ---- layer 4 fused with mean/max combine + final Linear (lane-dense out) --
    out_p = pl.pallas_call(
        _tag_last_kernel,
        out_shape=jax.ShapeDtypeStruct((np_, 128), jnp.float32),
        grid=grid,
        in_specs=[tile_spec(32), tile_spec(32), tile_spec(32), hfull_spec, adj_spec,
                  full_spec((32, 32)), full_spec((32, 32)), full_spec((1, 32)),
                  full_spec((32, 128)), full_spec((32, 128)), full_spec((1, 128))],
        out_specs=tile_spec(128),
        compiler_params=cp,
        cost_estimate=_layer_cost(np_, norm=True),
    )(h1, h2, h3, h3, adj_p, w4a, w4b, b4, wla_p, wlb_p, bll_p)

    return out_p[:n, :n_out]


# ----------------------------------------------------------------------------
# Parameter init (mimics torch.nn.Linear defaults) and pure-JAX reference
# ----------------------------------------------------------------------------

def _linear_init(key, fan_in, fan_out):
    kw, kb = jax.random.split(key)
    bound = float(1.0 / (fan_in ** 0.5))
    w = jax.random.uniform(kw, (fan_in, fan_out), jnp.float32, -bound, bound)
    b = jax.random.uniform(kb, (1, fan_out), jnp.float32, -bound, bound)
    return w, b


def init_params(key):
    dims = [100, 32, 32, 32, 32]
    keys = jax.random.split(key, 5)
    layers = []
    for i in range(4):
        in_dim, out_dim = dims[i], dims[i + 1]
        w, b = _linear_init(keys[i], 2 * in_dim, out_dim)   # TAGraph linear: 2*in -> out
        layers.append((w[:in_dim], w[in_dim:], b))          # rows ordered [self-hop; adj-hop]
    wll, bll = _linear_init(keys[4], 64, 18)                # self.ll = Linear(64, 18)
    return {"layers": layers, "ll": (wll[:32], wll[32:], bll)}


def _reference(x, adj, params):
    """Pure-JAX f32 reference of the forward pass (for a sanity check)."""
    h = x
    outs = []
    for idx, (wa, wb, b) in enumerate(params["layers"]):
        hh = h @ wa + (adj @ h) @ wb + b
        if idx >= 2:
            nrm = jnp.maximum(jnp.sqrt(jnp.sum(hh * hh, axis=1, keepdims=True)), NORM_EPS)
            hh = hh / nrm
        hh = jnp.where(hh >= 0, hh, NEG_SLOPE * hh)
        outs.append(hh)
        h = hh
    ot1 = (outs[0] + outs[1] + outs[2] + outs[3]) * 0.25
    ot2 = jnp.maximum(jnp.maximum(outs[0], outs[1]), jnp.maximum(outs[2], outs[3]))
    wla, wlb, bl = params["ll"]
    return ot1 @ wla + ot2 @ wlb + bl


# ----------------------------------------------------------------------------
# Demo
# ----------------------------------------------------------------------------

if __name__ == "__main__":
    key = jax.random.PRNGKey(0)
    k_x, k_adj, k_p = jax.random.split(key, 3)

    N, F_IN = 8, 100
    x = jax.random.normal(k_x, (N, F_IN), jnp.float32)

    # dense symmetric row-normalized adjacency with self loops
    a = jax.random.uniform(k_adj, (N, N), jnp.float32)
    a = (a + a.T) * 0.5 + jnp.eye(N, dtype=jnp.float32)
    adj = a / jnp.sum(a, axis=1, keepdims=True)

    params = init_params(k_p)

    out = daftstone_sur_forward(x, adj, params)
    jax.block_until_ready(out)
    assert out.shape == (N, 18) and out.dtype == jnp.float32
    assert bool(jnp.all(jnp.isfinite(out)))

    # loose tolerance: adj is streamed in bf16 (f32 accumulation) inside the kernel
    ref = _reference(x, adj, params)
    max_diff = float(jnp.max(jnp.abs(out - ref)))
    assert max_diff < 1e-1, f"kernel/reference mismatch: {max_diff}"

    print("KERNEL_OK")
</pallas_src>

<mosaic_0001>
module attributes {stable_mosaic.version = 11 : i64} {
  func.func @_project_kernel(%arg0: i32, %arg1: memref<128x128xf32, #tpu.memory_space<vmem>>, %arg2: memref<128x32xf32, #tpu.memory_space<vmem>>, %arg3: memref<128x32xbf16, #tpu.memory_space<vmem>>) attributes {dimension_semantics = [#tpu.dimension_semantics<parallel>], iteration_bounds = array<i64: 1>, scalar_prefetch = 0 : i64, scratch_operands = 0 : i64, tpu.core_type = #tpu.core_type<tc>, window_params = [{transform_indices = @transform_0, window_bounds = array<i64: 128, 128>}, {pipeline_mode = #tpu.pipeline_mode<synchronous>, transform_indices = @transform_1, window_bounds = array<i64: 128, 32>}, {transform_indices = @transform_2, window_bounds = array<i64: 128, 32>}]} {
    %c0 = arith.constant 0 : index
    %c0_0 = arith.constant 0 : index
    %0 = vector.load %arg1[%c0, %c0_0] : memref<128x128xf32, #tpu.memory_space<vmem>>, vector<128x128xf32>
    %c0_1 = arith.constant 0 : index
    %c0_2 = arith.constant 0 : index
    %1 = vector.load %arg2[%c0_1, %c0_2] : memref<128x32xf32, #tpu.memory_space<vmem>>, vector<128x32xf32>
    %cst = arith.constant dense<0.000000e+00> : vector<128x32xf32>
    %2 = tpu.matmul %0, %1, %cst {dimension_numbers = #tpu.dot_dimension_numbers<[1], [0], [0], [1], [0, 0, 1, 1], [], []>} : vector<128x128xf32>, vector<128x32xf32>, vector<128x32xf32> -> vector<128x32xf32>
    %3 = arith.truncf %2 : vector<128x32xf32> to vector<128x32xbf16>
    %c0_3 = arith.constant 0 : index
    %c0_4 = arith.constant 0 : index
    %4 = vector.load %arg3[%c0_3, %c0_4] : memref<128x32xbf16, #tpu.memory_space<vmem>>, vector<128x32xbf16>
    tpu.vector_store %arg3[%c0_3, %c0_4], %3 {strides = array<i32>} : memref<128x32xbf16, #tpu.memory_space<vmem>>, vector<128x32xbf16>,
    return
  }
  func.func @transform_0(%arg0: i32) -> (i32, i32) {
    %c0_i32 = arith.constant 0 : i32
    %c0_i32_0 = arith.constant 0 : i32
    return %arg0, %c0_i32 : i32, i32
  }
  func.func @transform_1(%arg0: i32) -> (i32, i32) {
    %c0_i32 = arith.constant 0 : i32
    %c0_i32_0 = arith.constant 0 : i32
    %c0_i32_1 = arith.constant 0 : i32
    return %c0_i32, %c0_i32_0 : i32, i32
  }
  func.func @transform_2(%arg0: i32) -> (i32, i32) {
    %c0_i32 = arith.constant 0 : i32
    %c0_i32_0 = arith.constant 0 : i32
    return %arg0, %c0_i32 : i32, i32
  }
}

module attributes {stable_mosaic.version = 11 : i64} {
  func.func @_tag_first_kernel(%arg0: i32, %arg1: memref<128x128xf32, #tpu.memory_space<vmem>>, %arg2: memref<128x32xbf16, #tpu.memory_space<vmem>>, %arg3: memref<128x128xbf16, #tpu.memory_space<vmem>>, %arg4: memref<128x32xf32, #tpu.memory_space<vmem>>, %arg5: memref<1x32xf32, #tpu.memory_space<vmem>>, %arg6: memref<128x32xf32, #tpu.memory_space<vmem>>) attributes {dimension_semantics = [#tpu.dimension_semantics<parallel>], iteration_bounds = array<i64: 1>, scalar_prefetch = 0 : i64, scratch_operands = 0 : i64, tpu.core_type = #tpu.core_type<tc>, window_params = [{transform_indices = @transform_0, window_bounds = array<i64: 128, 128>}, {pipeline_mode = #tpu.pipeline_mode<synchronous>, transform_indices = @transform_1, window_bounds = array<i64: 128, 32>}, {transform_indices = @transform_2, window_bounds = array<i64: 128, 128>}, {pipeline_mode = #tpu.pipeline_mode<synchronous>, transform_indices = @transform_3, window_bounds = array<i64: 128, 32>}, {pipeline_mode = #tpu.pipeline_mode<synchronous>, transform_indices = @transform_4, window_bounds = array<i64: 1, 32>}, {transform_indices = @transform_5, window_bounds = array<i64: 128, 32>}]} {
    %c0 = arith.constant 0 : index
    %c0_0 = arith.constant 0 : index
    %0 = vector.load %arg3[%c0, %c0_0] : memref<128x128xbf16, #tpu.memory_space<vmem>>, vector<128x128xbf16>
    %c0_1 = arith.constant 0 : index
    %c0_2 = arith.constant 0 : index
    %1 = vector.load %arg2[%c0_1, %c0_2] : memref<128x32xbf16, #tpu.memory_space<vmem>>, vector<128x32xbf16>
    %cst = arith.constant dense<0.000000e+00> : vector<128x32xf32>
    %2 = tpu.matmul %0, %1, %cst {dimension_numbers = #tpu.dot_dimension_numbers<[1], [0], [0], [1], [0, 0, 1, 1], [], []>} : vector<128x128xbf16>, vector<128x32xbf16>, vector<128x32xf32> -> vector<128x32xf32>
    %c0_3 = arith.constant 0 : index
    %c0_4 = arith.constant 0 : index
    %3 = vector.load %arg1[%c0_3, %c0_4] : memref<128x128xf32, #tpu.memory_space<vmem>>, vector<128x128xf32>
    %c0_5 = arith.constant 0 : index
    %c0_6 = arith.constant 0 : index
    %4 = vector.load %arg4[%c0_5, %c0_6] : memref<128x32xf32, #tpu.memory_space<vmem>>, vector<128x32xf32>
    %cst_7 = arith.constant dense<0.000000e+00> : vector<128x32xf32>
    %5 = tpu.matmul %3, %4, %cst_7 {dimension_numbers = #tpu.dot_dimension_numbers<[1], [0], [0], [1], [0, 0, 1, 1], [], []>} : vector<128x128xf32>, vector<128x32xf32>, vector<128x32xf32> -> vector<128x32xf32>
    %6 = arith.addf %5, %2 : vector<128x32xf32>
    %c0_8 = arith.constant 0 : index
    %c0_9 = arith.constant 0 : index
    %7 = vector.load %arg5[%c0_8, %c0_9] : memref<1x32xf32, #tpu.memory_space<vmem>>, vector<1x32xf32>
    %8 = vector.broadcast %7 : vector<1x32xf32> to vector<128x32xf32>
    %9 = arith.addf %6, %8 : vector<128x32xf32>
    %cst_10 = arith.constant 0.000000e+00 : f32
    %10 = vector.broadcast %cst_10 : f32 to vector<128x32xf32>
    %11 = arith.cmpf oge, %9, %10 : vector<128x32xf32>
    %cst_11 = arith.constant 0.00999999977 : f32
    %12 = vector.broadcast %cst_11 : f32 to vector<128x32xf32>
    %13 = arith.mulf %12, %9 : vector<128x32xf32>
    %14 = arith.select %11, %9, %13 : vector<128x32xi1>, vector<128x32xf32>
    %c0_12 = arith.constant 0 : index
    %c0_13 = arith.constant 0 : index
    %15 = vector.load %arg6[%c0_12, %c0_13] : memref<128x32xf32, #tpu.memory_space<vmem>>, vector<128x32xf32>
    tpu.vector_store %arg6[%c0_12, %c0_13], %14 {strides = array<i32>} : memref<128x32xf32, #tpu.memory_space<vmem>>, vector<128x32xf32>,
    return
  }
  func.func @transform_0(%arg0: i32) -> (i32, i32) {
    %c0_i32 = arith.constant 0 : i32
    %c0_i32_0 = arith.constant 0 : i32
    return %arg0, %c0_i32 : i32, i32
  }
  func.func @transform_1(%arg0: i32) -> (i32, i32) {
    %c0_i32 = arith.constant 0 : i32
    %c0_i32_0 = arith.constant 0 : i32
    %c0_i32_1 = arith.constant 0 : i32
    return %c0_i32, %c0_i32_0 : i32, i32
  }
  func.func @transform_2(%arg0: i32) -> (i32, i32) {
    %c0_i32 = arith.constant 0 : i32
    %c0_i32_0 = arith.constant 0 : i32
    return %arg0, %c0_i32 : i32, i32
  }
  func.func @transform_3(%arg0: i32) -> (i32, i32) {
    %c0_i32 = arith.constant 0 : i32
    %c0_i32_0 = arith.constant 0 : i32
    %c0_i32_1 = arith.constant 0 : i32
    return %c0_i32, %c0_i32_0 : i32, i32
  }
  func.func @transform_4(%arg0: i32) -> (i32, i32) {
    %c0_i32 = arith.constant 0 : i32
    %c0_i32_0 = arith.constant 0 : i32
    %c0_i32_1 = arith.constant 0 : i32
    return %c0_i32, %c0_i32_0 : i32, i32
  }
  func.func @transform_5(%arg0: i32) -> (i32, i32) {
    %c0_i32 = arith.constant 0 : i32
    %c0_i32_0 = arith.constant 0 : i32
    return %arg0, %c0_i32 : i32, i32
  }
}

module attributes {stable_mosaic.version = 11 : i64} {
  func.func @_tag_mid_kernel(%arg0: i32, %arg1: memref<128x32xf32, #tpu.memory_space<vmem>>, %arg2: memref<128x32xf32, #tpu.memory_space<vmem>>, %arg3: memref<128x128xbf16, #tpu.memory_space<vmem>>, %arg4: memref<32x32xf32, #tpu.memory_space<vmem>>, %arg5: memref<32x32xf32, #tpu.memory_space<vmem>>, %arg6: memref<1x32xf32, #tpu.memory_space<vmem>>, %arg7: memref<128x32xf32, #tpu.memory_space<vmem>>) attributes {dimension_semantics = [#tpu.dimension_semantics<parallel>], iteration_bounds = array<i64: 1>, scalar_prefetch = 0 : i64, scratch_operands = 0 : i64, tpu.core_type = #tpu.core_type<tc>, window_params = [{transform_indices = @transform_0, window_bounds = array<i64: 128, 32>}, {pipeline_mode = #tpu.pipeline_mode<synchronous>, transform_indices = @transform_1, window_bounds = array<i64: 128, 32>}, {transform_indices = @transform_2, window_bounds = array<i64: 128, 128>}, {pipeline_mode = #tpu.pipeline_mode<synchronous>, transform_indices = @transform_3, window_bounds = array<i64: 32, 32>}, {pipeline_mode = #tpu.pipeline_mode<synchronous>, transform_indices = @transform_4, window_bounds = array<i64: 32, 32>}, {pipeline_mode = #tpu.pipeline_mode<synchronous>, transform_indices = @transform_5, window_bounds = array<i64: 1, 32>}, {transform_indices = @transform_6, window_bounds = array<i64: 128, 32>}]} {
    %c0 = arith.constant 0 : index
    %c0_0 = arith.constant 0 : index
    %0 = vector.load %arg3[%c0, %c0_0] : memref<128x128xbf16, #tpu.memory_space<vmem>>, vector<128x128xbf16>
    %c0_1 = arith.constant 0 : index
    %c0_2 = arith.constant 0 : index
    %1 = vector.load %arg2[%c0_1, %c0_2] : memref<128x32xf32, #tpu.memory_space<vmem>>, vector<128x32xf32>
    %2 = arith.truncf %1 : vector<128x32xf32> to vector<128x32xbf16>
    %cst = arith.constant dense<0.000000e+00> : vector<128x32xf32>
    %3 = tpu.matmul %0, %2, %cst {dimension_numbers = #tpu.dot_dimension_numbers<[1], [0], [0], [1], [0, 0, 1, 1], [], []>} : vector<128x128xbf16>, vector<128x32xbf16>, vector<128x32xf32> -> vector<128x32xf32>
    %c0_3 = arith.constant 0 : index
    %c0_4 = arith.constant 0 : index
    %4 = vector.load %arg5[%c0_3, %c0_4] : memref<32x32xf32, #tpu.memory_space<vmem>>, vector<32x32xf32>
    %cst_5 = arith.constant dense<0.000000e+00> : vector<128x32xf32>
    %5 = tpu.matmul %3, %4, %cst_5 {dimension_numbers = #tpu.dot_dimension_numbers<[1], [0], [0], [1], [0, 0, 1, 1], [], []>} : vector<128x32xf32>, vector<32x32xf32>, vector<128x32xf32> -> vector<128x32xf32>
    %c0_6 = arith.constant 0 : index
    %c0_7 = arith.constant 0 : index
    %6 = vector.load %arg1[%c0_6, %c0_7] : memref<128x32xf32, #tpu.memory_space<vmem>>, vector<128x32xf32>
    %c0_8 = arith.constant 0 : index
    %c0_9 = arith.constant 0 : index
    %7 = vector.load %arg4[%c0_8, %c0_9] : memref<32x32xf32, #tpu.memory_space<vmem>>, vector<32x32xf32>
    %cst_10 = arith.constant dense<0.000000e+00> : vector<128x32xf32>
    %8 = tpu.matmul %6, %7, %cst_10 {dimension_numbers = #tpu.dot_dimension_numbers<[1], [0], [0], [1], [0, 0, 1, 1], [], []>} : vector<128x32xf32>, vector<32x32xf32>, vector<128x32xf32> -> vector<128x32xf32>
    %9 = arith.addf %8, %5 : vector<128x32xf32>
    %c0_11 = arith.constant 0 : index
    %c0_12 = arith.constant 0 : index
    %10 = vector.load %arg6[%c0_11, %c0_12] : memref<1x32xf32, #tpu.memory_space<vmem>>, vector<1x32xf32>
    %11 = vector.broadcast %10 : vector<1x32xf32> to vector<128x32xf32>
    %12 = arith.addf %9, %11 : vector<128x32xf32>
    %cst_13 = arith.constant 0.000000e+00 : f32
    %13 = vector.broadcast %cst_13 : f32 to vector<128x32xf32>
    %14 = arith.cmpf oge, %12, %13 : vector<128x32xf32>
    %cst_14 = arith.constant 0.00999999977 : f32
    %15 = vector.broadcast %cst_14 : f32 to vector<128x32xf32>
    %16 = arith.mulf %15, %12 : vector<128x32xf32>
    %17 = arith.select %14, %12, %16 : vector<128x32xi1>, vector<128x32xf32>
    %c0_15 = arith.constant 0 : index
    %c0_16 = arith.constant 0 : index
    %18 = vector.load %arg7[%c0_15, %c0_16] : memref<128x32xf32, #tpu.memory_space<vmem>>, vector<128x32xf32>
    tpu.vector_store %arg7[%c0_15, %c0_16], %17 {strides = array<i32>} : memref<128x32xf32, #tpu.memory_space<vmem>>, vector<128x32xf32>,
    return
  }
  func.func @transform_0(%arg0: i32) -> (i32, i32) {
    %c0_i32 = arith.constant 0 : i32
    %c0_i32_0 = arith.constant 0 : i32
    return %arg0, %c0_i32 : i32, i32
  }
  func.func @transform_1(%arg0: i32) -> (i32, i32) {
    %c0_i32 = arith.constant 0 : i32
    %c0_i32_0 = arith.constant 0 : i32
    %c0_i32_1 = arith.constant 0 : i32
    return %c0_i32, %c0_i32_0 : i32, i32
  }
  func.func @transform_2(%arg0: i32) -> (i32, i32) {
    %c0_i32 = arith.constant 0 : i32
    %c0_i32_0 = arith.constant 0 : i32
    return %arg0, %c0_i32 : i32, i32
  }
  func.func @transform_3(%arg0: i32) -> (i32, i32) {
    %c0_i32 = arith.constant 0 : i32
    %c0_i32_0 = arith.constant 0 : i32
    %c0_i32_1 = arith.constant 0 : i32
    return %c0_i32, %c0_i32_0 : i32, i32
  }
  func.func @transform_4(%arg0: i32) -> (i32, i32) {
    %c0_i32 = arith.constant 0 : i32
    %c0_i32_0 = arith.constant 0 : i32
    %c0_i32_1 = arith.constant 0 : i32
    return %c0_i32, %c0_i32_0 : i32, i32
  }
  func.func @transform_5(%arg0: i32) -> (i32, i32) {
    %c0_i32 = arith.constant 0 : i32
    %c0_i32_0 = arith.constant 0 : i32
    %c0_i32_1 = arith.constant 0 : i32
    return %c0_i32, %c0_i32_0 : i32, i32
  }
  func.func @transform_6(%arg0: i32) -> (i32, i32) {
    %c0_i32 = arith.constant 0 : i32
    %c0_i32_0 = arith.constant 0 : i32
    return %arg0, %c0_i32 : i32, i32
  }
}

module attributes {stable_mosaic.version = 11 : i64} {
  func.func @_tag_mid_kernel(%arg0: i32, %arg1: memref<128x32xf32, #tpu.memory_space<vmem>>, %arg2: memref<128x32xf32, #tpu.memory_space<vmem>>, %arg3: memref<128x128xbf16, #tpu.memory_space<vmem>>, %arg4: memref<32x32xf32, #tpu.memory_space<vmem>>, %arg5: memref<32x32xf32, #tpu.memory_space<vmem>>, %arg6: memref<1x32xf32, #tpu.memory_space<vmem>>, %arg7: memref<128x32xf32, #tpu.memory_space<vmem>>) attributes {dimension_semantics = [#tpu.dimension_semantics<parallel>], iteration_bounds = array<i64: 1>, scalar_prefetch = 0 : i64, scratch_operands = 0 : i64, tpu.core_type = #tpu.core_type<tc>, window_params = [{transform_indices = @transform_0, window_bounds = array<i64: 128, 32>}, {pipeline_mode = #tpu.pipeline_mode<synchronous>, transform_indices = @transform_1, window_bounds = array<i64: 128, 32>}, {transform_indices = @transform_2, window_bounds = array<i64: 128, 128>}, {pipeline_mode = #tpu.pipeline_mode<synchronous>, transform_indices = @transform_3, window_bounds = array<i64: 32, 32>}, {pipeline_mode = #tpu.pipeline_mode<synchronous>, transform_indices = @transform_4, window_bounds = array<i64: 32, 32>}, {pipeline_mode = #tpu.pipeline_mode<synchronous>, transform_indices = @transform_5, window_bounds = array<i64: 1, 32>}, {transform_indices = @transform_6, window_bounds = array<i64: 128, 32>}]} {
    %c0 = arith.constant 0 : index
    %c0_0 = arith.constant 0 : index
    %0 = vector.load %arg3[%c0, %c0_0] : memref<128x128xbf16, #tpu.memory_space<vmem>>, vector<128x128xbf16>
    %c0_1 = arith.constant 0 : index
    %c0_2 = arith.constant 0 : index
    %1 = vector.load %arg2[%c0_1, %c0_2] : memref<128x32xf32, #tpu.memory_space<vmem>>, vector<128x32xf32>
    %2 = arith.truncf %1 : vector<128x32xf32> to vector<128x32xbf16>
    %cst = arith.constant dense<0.000000e+00> : vector<128x32xf32>
    %3 = tpu.matmul %0, %2, %cst {dimension_numbers = #tpu.dot_dimension_numbers<[1], [0], [0], [1], [0, 0, 1, 1], [], []>} : vector<128x128xbf16>, vector<128x32xbf16>, vector<128x32xf32> -> vector<128x32xf32>
    %c0_3 = arith.constant 0 : index
    %c0_4 = arith.constant 0 : index
    %4 = vector.load %arg5[%c0_3, %c0_4] : memref<32x32xf32, #tpu.memory_space<vmem>>, vector<32x32xf32>
    %cst_5 = arith.constant dense<0.000000e+00> : vector<128x32xf32>
    %5 = tpu.matmul %3, %4, %cst_5 {dimension_numbers = #tpu.dot_dimension_numbers<[1], [0], [0], [1], [0, 0, 1, 1], [], []>} : vector<128x32xf32>, vector<32x32xf32>, vector<128x32xf32> -> vector<128x32xf32>
    %c0_6 = arith.constant 0 : index
    %c0_7 = arith.constant 0 : index
    %6 = vector.load %arg1[%c0_6, %c0_7] : memref<128x32xf32, #tpu.memory_space<vmem>>, vector<128x32xf32>
    %c0_8 = arith.constant 0 : index
    %c0_9 = arith.constant 0 : index
    %7 = vector.load %arg4[%c0_8, %c0_9] : memref<32x32xf32, #tpu.memory_space<vmem>>, vector<32x32xf32>
    %cst_10 = arith.constant dense<0.000000e+00> : vector<128x32xf32>
    %8 = tpu.matmul %6, %7, %cst_10 {dimension_numbers = #tpu.dot_dimension_numbers<[1], [0], [0], [1], [0, 0, 1, 1], [], []>} : vector<128x32xf32>, vector<32x32xf32>, vector<128x32xf32> -> vector<128x32xf32>
    %9 = arith.addf %8, %5 : vector<128x32xf32>
    %c0_11 = arith.constant 0 : index
    %c0_12 = arith.constant 0 : index
    %10 = vector.load %arg6[%c0_11, %c0_12] : memref<1x32xf32, #tpu.memory_space<vmem>>, vector<1x32xf32>
    %11 = vector.broadcast %10 : vector<1x32xf32> to vector<128x32xf32>
    %12 = arith.addf %9, %11 : vector<128x32xf32>
    %13 = arith.mulf %12, %12 : vector<128x32xf32>
    %cst_13 = arith.constant dense<0.000000e+00> : vector<128xf32>
    %14 = vector.multi_reduction <add>, %13, %cst_13 [1] : vector<128x32xf32> to vector<128xf32>
    %15 = vector.shape_cast %14 : vector<128xf32> to vector<128x1xf32>
    %cst_14 = arith.constant 1.000000e-24 : f32
    %16 = vector.broadcast %cst_14 : f32 to vector<128x1xf32>
    %17 = arith.maximumf %15, %16 : vector<128x1xf32>
    %18 = math.rsqrt %17 : vector<128x1xf32>
    %19 = vector.broadcast %18 : vector<128x1xf32> to vector<128x32xf32>
    %20 = arith.mulf %12, %19 : vector<128x32xf32>
    %cst_15 = arith.constant 0.000000e+00 : f32
    %21 = vector.broadcast %cst_15 : f32 to vector<128x32xf32>
    %22 = arith.cmpf oge, %20, %21 : vector<128x32xf32>
    %cst_16 = arith.constant 0.00999999977 : f32
    %23 = vector.broadcast %cst_16 : f32 to vector<128x32xf32>
    %24 = arith.mulf %23, %20 : vector<128x32xf32>
    %25 = arith.select %22, %20, %24 : vector<128x32xi1>, vector<128x32xf32>
    %c0_17 = arith.constant 0 : index
    %c0_18 = arith.constant 0 : index
    %26 = vector.load %arg7[%c0_17, %c0_18] : memref<128x32xf32, #tpu.memory_space<vmem>>, vector<128x32xf32>
    tpu.vector_store %arg7[%c0_17, %c0_18], %25 {strides = array<i32>} : memref<128x32xf32, #tpu.memory_space<vmem>>, vector<128x32xf32>,
    return
  }
  func.func @transform_0(%arg0: i32) -> (i32, i32) {
    %c0_i32 = arith.constant 0 : i32
    %c0_i32_0 = arith.constant 0 : i32
    return %arg0, %c0_i32 : i32, i32
  }
  func.func @transform_1(%arg0: i32) -> (i32, i32) {
    %c0_i32 = arith.constant 0 : i32
    %c0_i32_0 = arith.constant 0 : i32
    %c0_i32_1 = arith.constant 0 : i32
    return %c0_i32, %c0_i32_0 : i32, i32
  }
  func.func @transform_2(%arg0: i32) -> (i32, i32) {
    %c0_i32 = arith.constant 0 : i32
    %c0_i32_0 = arith.constant 0 : i32
    return %arg0, %c0_i32 : i32, i32
  }
  func.func @transform_3(%arg0: i32) -> (i32, i32) {
    %c0_i32 = arith.constant 0 : i32
    %c0_i32_0 = arith.constant 0 : i32
    %c0_i32_1 = arith.constant 0 : i32
    return %c0_i32, %c0_i32_0 : i32, i32
  }
  func.func @transform_4(%arg0: i32) -> (i32, i32) {
    %c0_i32 = arith.constant 0 : i32
    %c0_i32_0 = arith.constant 0 : i32
    %c0_i32_1 = arith.constant 0 : i32
    return %c0_i32, %c0_i32_0 : i32, i32
  }
  func.func @transform_5(%arg0: i32) -> (i32, i32) {
    %c0_i32 = arith.constant 0 : i32
    %c0_i32_0 = arith.constant 0 : i32
    %c0_i32_1 = arith.constant 0 : i32
    return %c0_i32, %c0_i32_0 : i32, i32
  }
  func.func @transform_6(%arg0: i32) -> (i32, i32) {
    %c0_i32 = arith.constant 0 : i32
    %c0_i32_0 = arith.constant 0 : i32
    return %arg0, %c0_i32 : i32, i32
  }
}

module attributes {stable_mosaic.version = 11 : i64} {
  func.func @_tag_last_kernel(%arg0: i32, %arg1: memref<128x32xf32, #tpu.memory_space<vmem>>, %arg2: memref<128x32xf32, #tpu.memory_space<vmem>>, %arg3: memref<128x32xf32, #tpu.memory_space<vmem>>, %arg4: memref<128x32xf32, #tpu.memory_space<vmem>>, %arg5: memref<128x128xbf16, #tpu.memory_space<vmem>>, %arg6: memref<32x32xf32, #tpu.memory_space<vmem>>, %arg7: memref<32x32xf32, #tpu.memory_space<vmem>>, %arg8: memref<1x32xf32, #tpu.memory_space<vmem>>, %arg9: memref<32x128xf32, #tpu.memory_space<vmem>>, %arg10: memref<32x128xf32, #tpu.memory_space<vmem>>, %arg11: memref<1x128xf32, #tpu.memory_space<vmem>>, %arg12: memref<128x128xf32, #tpu.memory_space<vmem>>) attributes {dimension_semantics = [#tpu.dimension_semantics<parallel>], iteration_bounds = array<i64: 1>, scalar_prefetch = 0 : i64, scratch_operands = 0 : i64, tpu.core_type = #tpu.core_type<tc>, window_params = [{transform_indices = @transform_0, window_bounds = array<i64: 128, 32>}, {transform_indices = @transform_1, window_bounds = array<i64: 128, 32>}, {transform_indices = @transform_2, window_bounds = array<i64: 128, 32>}, {pipeline_mode = #tpu.pipeline_mode<synchronous>, transform_indices = @transform_3, window_bounds = array<i64: 128, 32>}, {transform_indices = @transform_4, window_bounds = array<i64: 128, 128>}, {pipeline_mode = #tpu.pipeline_mode<synchronous>, transform_indices = @transform_5, window_bounds = array<i64: 32, 32>}, {pipeline_mode = #tpu.pipeline_mode<synchronous>, transform_indices = @transform_6, window_bounds = array<i64: 32, 32>}, {pipeline_mode = #tpu.pipeline_mode<synchronous>, transform_indices = @transform_7, window_bounds = array<i64: 1, 32>}, {pipeline_mode = #tpu.pipeline_mode<synchronous>, transform_indices = @transform_8, window_bounds = array<i64: 32, 128>}, {pipeline_mode = #tpu.pipeline_mode<synchronous>, transform_indices = @transform_9, window_bounds = array<i64: 32, 128>}, {pipeline_mode = #tpu.pipeline_mode<synchronous>, transform_indices = @transform_10, window_bounds = array<i64: 1, 128>}, {transform_indices = @transform_11, window_bounds = array<i64: 128, 128>}]} {
    %c0 = arith.constant 0 : index
    %c0_0 = arith.constant 0 : index
    %0 = vector.load %arg5[%c0, %c0_0] : memref<128x128xbf16, #tpu.memory_space<vmem>>, vector<128x128xbf16>
    %c0_1 = arith.constant 0 : index
    %c0_2 = arith.constant 0 : index
    %1 = vector.load %arg4[%c0_1, %c0_2] : memref<128x32xf32, #tpu.memory_space<vmem>>, vector<128x32xf32>
    %2 = arith.truncf %1 : vector<128x32xf32> to vector<128x32xbf16>
    %cst = arith.constant dense<0.000000e+00> : vector<128x32xf32>
    %3 = tpu.matmul %0, %2, %cst {dimension_numbers = #tpu.dot_dimension_numbers<[1], [0], [0], [1], [0, 0, 1, 1], [], []>} : vector<128x128xbf16>, vector<128x32xbf16>, vector<128x32xf32> -> vector<128x32xf32>
    %c0_3 = arith.constant 0 : index
    %c0_4 = arith.constant 0 : index
    %4 = vector.load %arg7[%c0_3, %c0_4] : memref<32x32xf32, #tpu.memory_space<vmem>>, vector<32x32xf32>
    %cst_5 = arith.constant dense<0.000000e+00> : vector<128x32xf32>
    %5 = tpu.matmul %3, %4, %cst_5 {dimension_numbers = #tpu.dot_dimension_numbers<[1], [0], [0], [1], [0, 0, 1, 1], [], []>} : vector<128x32xf32>, vector<32x32xf32>, vector<128x32xf32> -> vector<128x32xf32>
    %c0_6 = arith.constant 0 : index
    %c0_7 = arith.constant 0 : index
    %6 = vector.load %arg3[%c0_6, %c0_7] : memref<128x32xf32, #tpu.memory_space<vmem>>, vector<128x32xf32>
    %c0_8 = arith.constant 0 : index
    %c0_9 = arith.constant 0 : index
    %7 = vector.load %arg6[%c0_8, %c0_9] : memref<32x32xf32, #tpu.memory_space<vmem>>, vector<32x32xf32>
    %cst_10 = arith.constant dense<0.000000e+00> : vector<128x32xf32>
    %8 = tpu.matmul %6, %7, %cst_10 {dimension_numbers = #tpu.dot_dimension_numbers<[1], [0], [0], [1], [0, 0, 1, 1], [], []>} : vector<128x32xf32>, vector<32x32xf32>, vector<128x32xf32> -> vector<128x32xf32>
    %9 = arith.addf %8, %5 : vector<128x32xf32>
    %c0_11 = arith.constant 0 : index
    %c0_12 = arith.constant 0 : index
    %10 = vector.load %arg8[%c0_11, %c0_12] : memref<1x32xf32, #tpu.memory_space<vmem>>, vector<1x32xf32>
    %11 = vector.broadcast %10 : vector<1x32xf32> to vector<128x32xf32>
    %12 = arith.addf %9, %11 : vector<128x32xf32>
    %13 = arith.mulf %12, %12 : vector<128x32xf32>
    %cst_13 = arith.constant dense<0.000000e+00> : vector<128xf32>
    %14 = vector.multi_reduction <add>, %13, %cst_13 [1] : vector<128x32xf32> to vector<128xf32>
    %15 = vector.shape_cast %14 : vector<128xf32> to vector<128x1xf32>
    %cst_14 = arith.constant 1.000000e-24 : f32
    %16 = vector.broadcast %cst_14 : f32 to vector<128x1xf32>
    %17 = arith.maximumf %15, %16 : vector<128x1xf32>
    %18 = math.rsqrt %17 : vector<128x1xf32>
    %19 = vector.broadcast %18 : vector<128x1xf32> to vector<128x32xf32>
    %20 = arith.mulf %12, %19 : vector<128x32xf32>
    %cst_15 = arith.constant 0.000000e+00 : f32
    %21 = vector.broadcast %cst_15 : f32 to vector<128x32xf32>
    %22 = arith.cmpf oge, %20, %21 : vector<128x32xf32>
    %cst_16 = arith.constant 0.00999999977 : f32
    %23 = vector.broadcast %cst_16 : f32 to vector<128x32xf32>
    %24 = arith.mulf %23, %20 : vector<128x32xf32>
    %25 = arith.select %22, %20, %24 : vector<128x32xi1>, vector<128x32xf32>
    %c0_17 = arith.constant 0 : index
    %c0_18 = arith.constant 0 : index
    %26 = vector.load %arg1[%c0_17, %c0_18] : memref<128x32xf32, #tpu.memory_space<vmem>>, vector<128x32xf32>
    %c0_19 = arith.constant 0 : index
    %c0_20 = arith.constant 0 : index
    %27 = vector.load %arg2[%c0_19, %c0_20] : memref<128x32xf32, #tpu.memory_space<vmem>>, vector<128x32xf32>
    %28 = arith.addf %26, %27 : vector<128x32xf32>
    %29 = arith.addf %28, %6 : vector<128x32xf32>
    %30 = arith.addf %29, %25 : vector<128x32xf32>
    %cst_21 = arith.constant 2.500000e-01 : f32
    %31 = vector.broadcast %cst_21 : f32 to vector<128x32xf32>
    %32 = arith.mulf %30, %31 : vector<128x32xf32>
    %33 = arith.maximumf %26, %27 : vector<128x32xf32>
    %34 = arith.maximumf %6, %25 : vector<128x32xf32>
    %35 = arith.maximumf %33, %34 : vector<128x32xf32>
    %c0_22 = arith.constant 0 : index
    %c0_23 = arith.constant 0 : index
    %36 = vector.load %arg9[%c0_22, %c0_23] : memref<32x128xf32, #tpu.memory_space<vmem>>, vector<32x128xf32>
    %cst_24 = arith.constant dense<0.000000e+00> : vector<128x128xf32>
    %37 = tpu.matmul %32, %36, %cst_24 {dimension_numbers = #tpu.dot_dimension_numbers<[1], [0], [0], [1], [0, 0, 1, 1], [], []>} : vector<128x32xf32>, vector<32x128xf32>, vector<128x128xf32> -> vector<128x128xf32>
    %c0_25 = arith.constant 0 : index
    %c0_26 = arith.constant 0 : index
    %38 = vector.load %arg10[%c0_25, %c0_26] : memref<32x128xf32, #tpu.memory_space<vmem>>, vector<32x128xf32>
    %cst_27 = arith.constant dense<0.000000e+00> : vector<128x128xf32>
    %39 = tpu.matmul %35, %38, %cst_27 {dimension_numbers = #tpu.dot_dimension_numbers<[1], [0], [0], [1], [0, 0, 1, 1], [], []>} : vector<128x32xf32>, vector<32x128xf32>, vector<128x128xf32> -> vector<128x128xf32>
    %40 = arith.addf %37, %39 : vector<128x128xf32>
    %c0_28 = arith.constant 0 : index
    %c0_29 = arith.constant 0 : index
    %41 = vector.load %arg11[%c0_28, %c0_29] : memref<1x128xf32, #tpu.memory_space<vmem>>, vector<1x128xf32>
    %42 = vector.broadcast %41 : vector<1x128xf32> to vector<128x128xf32>
    %43 = arith.addf %40, %42 : vector<128x128xf32>
    %c0_30 = arith.constant 0 : index
    %c0_31 = arith.constant 0 : index
    %44 = vector.load %arg12[%c0_30, %c0_31] : memref<128x128xf32, #tpu.memory_space<vmem>>, vector<128x128xf32>
    tpu.vector_store %arg12[%c0_30, %c0_31], %43 {strides = array<i32>} : memref<128x128xf32, #tpu.memory_space<vmem>>, vector<128x128xf32>,
    return
  }
  func.func @transform_0(%arg0: i32) -> (i32, i32) {
    %c0_i32 = arith.constant 0 : i32
    %c0_i32_0 = arith.constant 0 : i32
    return %arg0, %c0_i32 : i32, i32
  }
  func.func @transform_1(%arg0: i32) -> (i32, i32) {
    %c0_i32 = arith.constant 0 : i32
    %c0_i32_0 = arith.constant 0 : i32
    return %arg0, %c0_i32 : i32, i32
  }
  func.func @transform_2(%arg0: i32) -> (i32, i32) {
    %c0_i32 = arith.constant 0 : i32
    %c0_i32_0 = arith.constant 0 : i32
    return %arg0, %c0_i32 : i32, i32
  }
  func.func @transform_3(%arg0: i32) -> (i32, i32) {
    %c0_i32 = arith.constant 0 : i32
    %c0_i32_0 = arith.constant 0 : i32
    %c0_i32_1 = arith.constant 0 : i32
    return %c0_i32, %c0_i32_0 : i32, i32
  }
  func.func @transform_4(%arg0: i32) -> (i32, i32) {
    %c0_i32 = arith.constant 0 : i32
    %c0_i32_0 = arith.constant 0 : i32
    return %arg0, %c0_i32 : i32, i32
  }
  func.func @transform_5(%arg0: i32) -> (i32, i32) {
    %c0_i32 = arith.constant 0 : i32
    %c0_i32_0 = arith.constant 0 : i32
    %c0_i32_1 = arith.constant 0 : i32
    return %c0_i32, %c0_i32_0 : i32, i32
  }
  func.func @transform_6(%arg0: i32) -> (i32, i32) {
    %c0_i32 = arith.constant 0 : i32
    %c0_i32_0 = arith.constant 0 : i32
    %c0_i32_1 = arith.constant 0 : i32
    return %c0_i32, %c0_i32_0 : i32, i32
  }
  func.func @transform_7(%arg0: i32) -> (i32, i32) {
    %c0_i32 = arith.constant 0 : i32
    %c0_i32_0 = arith.constant 0 : i32
    %c0_i32_1 = arith.constant 0 : i32
    return %c0_i32, %c0_i32_0 : i32, i32
  }
  func.func @transform_8(%arg0: i32) -> (i32, i32) {
    %c0_i32 = arith.constant 0 : i32
    %c0_i32_0 = arith.constant 0 : i32
    %c0_i32_1 = arith.constant 0 : i32
    return %c0_i32, %c0_i32_0 : i32, i32
  }
  func.func @transform_9(%arg0: i32) -> (i32, i32) {
    %c0_i32 = arith.constant 0 : i32
    %c0_i32_0 = arith.constant 0 : i32
    %c0_i32_1 = arith.constant 0 : i32
    return %c0_i32, %c0_i32_0 : i32, i32
  }
  func.func @transform_10(%arg0: i32) -> (i32, i32) {
    %c0_i32 = arith.constant 0 : i32
    %c0_i32_0 = arith.constant 0 : i32
    %c0_i32_1 = arith.constant 0 : i32
    return %c0_i32, %c0_i32_0 : i32, i32
  }
  func.func @transform_11(%arg0: i32) -> (i32, i32) {
    %c0_i32 = arith.constant 0 : i32
    %c0_i32_0 = arith.constant 0 : i32
    return %arg0, %c0_i32 : i32, i32
  }
}

</mosaic_0001>

<llo_original>
// kernel: daftstone_sur_forward.5
$region0: #{daftstone_sur_forward.5}
  #allocation0 [shape = 'u32[]', space=smem, size = 0x4, offset = 0x4, fixed_abs, tag = 'smem constant byte address 0x4 - core index']
  #allocation1 [shape = 'u32[144,128]{1,0:T(1,128)}', space=vmem, size = 0x12000, scoped, tag = 'internal scratch']
  %s0 = inlined_call_operand.vmem [shape: f32[128,128], index: 0, kind: input, shape index: {}]
  %s1 = inlined_call_operand.vmem [shape: f32[128,32], index: 1, kind: input, shape index: {}]
  %s2 = inlined_call_operand.vmem [shape: bf16[128,32], index: 2, kind: output, shape index: {}]
  %s3 = sld [smem:[#allocation0]]
  $region18: #{daftstone_sur_forward.5} parent=0
    _
  %s5 = ssub.s32 1, %s3
  %s6 = scalar_select 0, %s5, %s3
  // Predicated region
  $region2: #{daftstone_sur_forward.5} parent=0 // pred_check
    _
  $region3: #{daftstone_sur_forward.5} parent=0 // pred_check_branch
    %8 = sbr.rel (0) target = $region5
  $region4: #{daftstone_sur_forward.5} parent=0 // pred_region
    _
  $region5: #{daftstone_sur_forward.5} parent=0 // pred_fallthru
    _
  // Predicated region
  $region6: #{daftstone_sur_forward.5} parent=0 // pred_check
    _
  $region7: #{daftstone_sur_forward.5} parent=0 // pred_check_branch
    %10 = sbr.rel (0) target = $region9
  $region8: #{daftstone_sur_forward.5} parent=0 // pred_region
    _
  $region9: #{daftstone_sur_forward.5} parent=0 // pred_fallthru
    _
  %v11 = vld [vmem:[%s0] sm:$0xff]
  %v12 = vld [vmem:[%s0 + $0x8] sm:$0xff]
  %v13 = vld [vmem:[%s0 + $0x10] sm:$0xff]
  %v14 = vld [vmem:[%s0 + $0x18] sm:$0xff]
  %v15 = vld [vmem:[%s0 + $0x20] sm:$0xff]
  %v16 = vld [vmem:[%s0 + $0x28] sm:$0xff]
  %v17 = vld [vmem:[%s0 + $0x30] sm:$0xff]
  %v18 = vld [vmem:[%s0 + $0x38] sm:$0xff]
  %v19 = vld [vmem:[%s0 + $0x40] sm:$0xff]
  %v20 = vld [vmem:[%s0 + $0x48] sm:$0xff]
  %v21 = vld [vmem:[%s0 + $0x50] sm:$0xff]
  %v22 = vld [vmem:[%s0 + $0x58] sm:$0xff]
  %v23 = vld [vmem:[%s0 + $0x60] sm:$0xff]
  %v24 = vld [vmem:[%s0 + $0x68] sm:$0xff]
  %v25 = vld [vmem:[%s0 + $0x70] sm:$0xff]
  %v26 = vld [vmem:[%s0 + $0x78] sm:$0xff]
  %v27 = vld [vmem:[%s1] sm:$0xff]
  %v28 = vld [vmem:[%s1 + $0x8] sm:$0xff]
  %v29 = vld [vmem:[%s1 + $0x10] sm:$0xff]
  %v30 = vld [vmem:[%s1 + $0x18] sm:$0xff]
  %v31 = vld [vmem:[%s1 + $0x20] sm:$0xff]
  %v32 = vld [vmem:[%s1 + $0x28] sm:$0xff]
  %v33 = vld [vmem:[%s1 + $0x30] sm:$0xff]
  %v34 = vld [vmem:[%s1 + $0x38] sm:$0xff]
  %v35 = vld [vmem:[%s1 + $0x40] sm:$0xff]
  %v36 = vld [vmem:[%s1 + $0x48] sm:$0xff]
  %v37 = vld [vmem:[%s1 + $0x50] sm:$0xff]
  %v38 = vld [vmem:[%s1 + $0x58] sm:$0xff]
  %v39 = vld [vmem:[%s1 + $0x60] sm:$0xff]
  %v40 = vld [vmem:[%s1 + $0x68] sm:$0xff]
  %v41 = vld [vmem:[%s1 + $0x70] sm:$0xff]
  %v42 = vld [vmem:[%s1 + $0x78] sm:$0xff]
  %43 = vmatprep.subr.mxu0 0.0
  %44 = vmatpush1.msra.mxu0 %v27
  %45 = vmatprep.subr.mxu0 0.0
  %46 = vmatpush1.msra.mxu0 %v28
  %47 = vmatprep.subr.mxu0 0.0
  %48 = vmatpush1.msra.mxu0 %v29
  %49 = vmatprep.subr.mxu0 0.0
  %50 = vmatpush1.msra.mxu0 %v30
  %51 = vmatprep.subr.mxu0 0.0
  %52 = vmatpush1.msra.mxu0 %v31
  %53 = vmatprep.subr.mxu0 0.0
  %54 = vmatpush1.msra.mxu0 %v32
  %55 = vmatprep.subr.mxu0 0.0
  %56 = vmatpush1.msra.mxu0 %v33
  %57 = vmatprep.subr.mxu0 0.0
  %58 = vmatpush1.msra.mxu0 %v34
  %59 = vmatprep.subr.mxu0 0.0
  %60 = vmatpush1.msra.mxu0 %v35
  %61 = vmatprep.subr.mxu0 0.0
  %62 = vmatpush1.msra.mxu0 %v36
  %63 = vmatprep.subr.mxu0 0.0
  %64 = vmatpush1.msra.mxu0 %v37
  %65 = vmatprep.subr.mxu0 0.0
  %66 = vmatpush1.msra.mxu0 %v38
  %67 = vmatprep.subr.mxu0 0.0
  %68 = vmatpush1.msra.mxu0 %v39
  %69 = vmatprep.subr.mxu0 0.0
  %70 = vmatpush1.msra.mxu0 %v40
  %71 = vmatprep.subr.mxu0 0.0
  %72 = vmatpush1.msra.mxu0 %v41
  %73 = vmatprep.subr.mxu0 0.0
  %74 = vmatpush1.msra.mxu0 %v42
  %75 = vmatprep.subr.mxu0 0.0
  %76 = vmatpush1.msra.mxu0 0.0
  %77 = vmatprep.subr.mxu0 0.0
  %78 = vmatpush1.msra.mxu0 0.0
  %79 = vmatprep.subr.mxu0 0.0
  %80 = vmatpush1.msra.mxu0 0.0
  %81 = vmatprep.subr.mxu0 0.0
  %82 = vmatpush1.msra.mxu0 0.0
  %83 = vmatprep.subr.mxu0 0.0
  %84 = vmatpush1.msra.mxu0 0.0
  %85 = vmatprep.subr.mxu0 0.0
  %86 = vmatpush1.msra.mxu0 0.0
  %87 = vmatprep.subr.mxu0 0.0
  %88 = vmatpush1.msra.mxu0 0.0
  %89 = vmatprep.subr.mxu0 0.0
  %90 = vmatpush1.msra.mxu0 0.0
  %91 = vmatprep.subr.mxu0 0.0
  %92 = vmatpush1.msra.mxu0 0.0
  %93 = vmatprep.subr.mxu0 0.0
  %94 = vmatpush1.msra.mxu0 0.0
  %95 = vmatprep.subr.mxu0 0.0
  %96 = vmatpush1.msra.mxu0 0.0
  %97 = vmatprep.subr.mxu0 0.0
  %98 = vmatpush1.msra.mxu0 0.0
  %99 = vmatprep.subr.mxu0 0.0
  %100 = vmatpush1.msra.mxu0 0.0
  %101 = vmatprep.subr.mxu0 0.0
  %102 = vmatpush1.msra.mxu0 0.0
  %103 = vmatprep.subr.mxu0 0.0
  %104 = vmatpush1.msra.mxu0 0.0
  %105 = vmatprep.subr.mxu0 0.0
  %106 = vmatpush1.msra.mxu0 0.0
  %107 = vmatprep.mubr.f32.mxu0 0.0
  %108 = vmatmul.mubr.f32.gmra.mrb[0].mxu0 %v11
  %v109 = vpop.f32.mrb[0].mxu0
  %v110 = vadd.f32 0.0, %v109
  %v111 = vpop.f32.mrb[0].mxu0
  %112 = vmatprep.mubr.f32.mxu0 0.0
  %113 = vmatmul.mubr.f32.gmra.mrb[0].mxu0 %v12
  %v114 = vpop.f32.mrb[0].mxu0
  %v115 = vadd.f32 0.0, %v114
  %v116 = vpop.f32.mrb[0].mxu0
  %117 = vmatprep.mubr.f32.mxu0 0.0
  %118 = vmatmul.mubr.f32.gmra.mrb[0].mxu0 %v13
  %v119 = vpop.f32.mrb[0].mxu0
  %v120 = vadd.f32 0.0, %v119
  %v121 = vpop.f32.mrb[0].mxu0
  %122 = vmatprep.mubr.f32.mxu0 0.0
  %123 = vmatmul.mubr.f32.gmra.mrb[0].mxu0 %v14
  %v124 = vpop.f32.mrb[0].mxu0
  %v125 = vadd.f32 0.0, %v124
  %v126 = vpop.f32.mrb[0].mxu0
  %127 = vmatprep.mubr.f32.mxu0 0.0
  %128 = vmatmul.mubr.f32.gmra.mrb[0].mxu0 %v15
  %v129 = vpop.f32.mrb[0].mxu0
  %v130 = vadd.f32 0.0, %v129
  %v131 = vpop.f32.mrb[0].mxu0
  %132 = vmatprep.mubr.f32.mxu0 0.0
  %133 = vmatmul.mubr.f32.gmra.mrb[0].mxu0 %v16
  %v134 = vpop.f32.mrb[0].mxu0
  %v135 = vadd.f32 0.0, %v134
  %v136 = vpop.f32.mrb[0].mxu0
  %137 = vmatprep.mubr.f32.mxu0 0.0
  %138 = vmatmul.mubr.f32.gmra.mrb[0].mxu0 %v17
  %v139 = vpop.f32.mrb[0].mxu0
  %v140 = vadd.f32 0.0, %v139
  %v141 = vpop.f32.mrb[0].mxu0
  %142 = vmatprep.mubr.f32.mxu0 0.0
  %143 = vmatmul.mubr.f32.gmra.mrb[0].mxu0 %v18
  %v144 = vpop.f32.mrb[0].mxu0
  %v145 = vadd.f32 0.0, %v144
  %v146 = vpop.f32.mrb[0].mxu0
  %147 = vmatprep.mubr.f32.mxu0 0.0
  %148 = vmatmul.mubr.f32.gmra.mrb[0].mxu0 %v19
  %v149 = vpop.f32.mrb[0].mxu0
  %v150 = vadd.f32 0.0, %v149
  %v151 = vpop.f32.mrb[0].mxu0
  %152 = vmatprep.mubr.f32.mxu0 0.0
  %153 = vmatmul.mubr.f32.gmra.mrb[0].mxu0 %v20
  %v154 = vpop.f32.mrb[0].mxu0
  %v155 = vadd.f32 0.0, %v154
  %v156 = vpop.f32.mrb[0].mxu0
  %157 = vmatprep.mubr.f32.mxu0 0.0
  %158 = vmatmul.mubr.f32.gmra.mrb[0].mxu0 %v21
  %v159 = vpop.f32.mrb[0].mxu0
  %v160 = vadd.f32 0.0, %v159
  %v161 = vpop.f32.mrb[0].mxu0
  %162 = vmatprep.mubr.f32.mxu0 0.0
  %163 = vmatmul.mubr.f32.gmra.mrb[0].mxu0 %v22
  %v164 = vpop.f32.mrb[0].mxu0
  %v165 = vadd.f32 0.0, %v164
  %v166 = vpop.f32.mrb[0].mxu0
  %167 = vmatprep.mubr.f32.mxu0 0.0
  %168 = vmatmul.mubr.f32.gmra.mrb[0].mxu0 %v23
  %v169 = vpop.f32.mrb[0].mxu0
  %v170 = vadd.f32 0.0, %v169
  %v171 = vpop.f32.mrb[0].mxu0
  %172 = vmatprep.mubr.f32.mxu0 0.0
  %173 = vmatmul.mubr.f32.gmra.mrb[0].mxu0 %v24
  %v174 = vpop.f32.mrb[0].mxu0
  %v175 = vadd.f32 0.0, %v174
  %v176 = vpop.f32.mrb[0].mxu0
  %177 = vmatprep.mubr.f32.mxu0 0.0
  %178 = vmatmul.mubr.f32.gmra.mrb[0].mxu0 %v25
  %v179 = vpop.f32.mrb[0].mxu0
  %v180 = vadd.f32 0.0, %v179
  %v181 = vpop.f32.mrb[0].mxu0
  %182 = vmatprep.mubr.f32.mxu0 0.0
  %183 = vmatmul.mubr.f32.gmra.mrb[0].mxu0 %v26
  %v184 = vpop.f32.mrb[0].mxu0
  %v185 = vadd.f32 0.0, %v184
  %v186 = vpop.f32.mrb[0].mxu0
  %187 = vdwg.mxu0
  %v188 = vpack.c.bf16 %v115, %v110
  %v189 = vpack.c.bf16 %v125, %v120
  %v190 = vpack.c.bf16 %v135, %v130
  %v191 = vpack.c.bf16 %v145, %v140
  %v192 = vpack.c.bf16 %v155, %v150
  %v193 = vpack.c.bf16 %v165, %v160
  %v194 = vpack.c.bf16 %v175, %v170
  %v195 = vpack.c.bf16 %v185, %v180
  %v204 = vunpack.c.l.b16 %v188
  %v205 = vunpack.c.h.b16 %v188
  %v206 = vunpack.c.l.b16 %v189
  %v207 = vunpack.c.h.b16 %v189
  %v208 = vunpack.c.l.b16 %v190
  %v209 = vunpack.c.h.b16 %v190
  %v210 = vunpack.c.l.b16 %v191
  %v211 = vunpack.c.h.b16 %v191
  %v212 = vunpack.c.l.b16 %v192
  %v213 = vunpack.c.h.b16 %v192
  %v214 = vunpack.c.l.b16 %v193
  %v215 = vunpack.c.h.b16 %v193
  %v216 = vunpack.c.l.b16 %v194
  %v217 = vunpack.c.h.b16 %v194
  %v218 = vunpack.c.l.b16 %v195
  %v219 = vunpack.c.h.b16 %v195
  %v220 = vpack.c.b16 %v204, %v204
  %v221 = vpack.c.b16 %v205, %v205
  %v222 = vpack.c.b16 %v206, %v206
  %v223 = vpack.c.b16 %v207, %v207
  %v224 = vpack.c.b16 %v208, %v208
  %v225 = vpack.c.b16 %v209, %v209
  %v226 = vpack.c.b16 %v210, %v210
  %v227 = vpack.c.b16 %v211, %v211
  %v228 = vpack.c.b16 %v212, %v212
  %v229 = vpack.c.b16 %v213, %v213
  %v230 = vpack.c.b16 %v214, %v214
  %v231 = vpack.c.b16 %v215, %v215
  %v232 = vpack.c.b16 %v216, %v216
  %v233 = vpack.c.b16 %v217, %v217
  %v234 = vpack.c.b16 %v218, %v218
  %v235 = vpack.c.b16 %v219, %v219
  %vm252 = vcmask 257024
  %253 = vst.msk [vmem:[%s2] sm:$0xf] %vm252, %v220
  %254 = vst.msk [vmem:[%s2 + $0x4] sm:$0xf] %vm252, %v221
  %255 = vst.msk [vmem:[%s2 + $0x8] sm:$0xf] %vm252, %v222
  %256 = vst.msk [vmem:[%s2 + $0xc] sm:$0xf] %vm252, %v223
  %257 = vst.msk [vmem:[%s2 + $0x10] sm:$0xf] %vm252, %v224
  %258 = vst.msk [vmem:[%s2 + $0x14] sm:$0xf] %vm252, %v225
  %259 = vst.msk [vmem:[%s2 + $0x18] sm:$0xf] %vm252, %v226
  %260 = vst.msk [vmem:[%s2 + $0x1c] sm:$0xf] %vm252, %v227
  %261 = vst.msk [vmem:[%s2 + $0x20] sm:$0xf] %vm252, %v228
  %262 = vst.msk [vmem:[%s2 + $0x24] sm:$0xf] %vm252, %v229
  %263 = vst.msk [vmem:[%s2 + $0x28] sm:$0xf] %vm252, %v230
  %264 = vst.msk [vmem:[%s2 + $0x2c] sm:$0xf] %vm252, %v231
  %265 = vst.msk [vmem:[%s2 + $0x30] sm:$0xf] %vm252, %v232
  %266 = vst.msk [vmem:[%s2 + $0x34] sm:$0xf] %vm252, %v233
  %267 = vst.msk [vmem:[%s2 + $0x38] sm:$0xf] %vm252, %v234
  %268 = vst.msk [vmem:[%s2 + $0x3c] sm:$0xf] %vm252, %v235
  // Predicated region
  $region10: #{daftstone_sur_forward.5} parent=0 // pred_check
    _
  $region11: #{daftstone_sur_forward.5} parent=0 // pred_check_branch
    %270 = sbr.rel (0) target = $region13
  $region12: #{daftstone_sur_forward.5} parent=0 // pred_region
    _
  $region13: #{daftstone_sur_forward.5} parent=0 // pred_fallthru
    _
  // Predicated region
  $region14: #{daftstone_sur_forward.5} parent=0 // pred_check
    _
  $region15: #{daftstone_sur_forward.5} parent=0 // pred_check_branch
    %272 = sbr.rel (0) target = $region17
  $region16: #{daftstone_sur_forward.5} parent=0 // pred_region
    _
  $region17: #{daftstone_sur_forward.5} parent=0 // pred_fallthru
    _

// kernel: daftstone_sur_forward.6
$region0: #{daftstone_sur_forward.6}
  #allocation0 [shape = 'u32[]', space=smem, size = 0x4, offset = 0x4, fixed_abs, tag = 'smem constant byte address 0x4 - core index']
  #allocation1 [shape = 'u32[144,128]{1,0:T(1,128)}', space=vmem, size = 0x12000, scoped, tag = 'internal scratch']
  %s0 = inlined_call_operand.vmem [shape: f32[128,128], index: 0, kind: input, shape index: {}]
  %s1 = inlined_call_operand.vmem [shape: bf16[128,32], index: 1, kind: input, shape index: {}]
  %s2 = inlined_call_operand.vmem [shape: bf16[128,128], index: 2, kind: input, shape index: {}]
  %s3 = inlined_call_operand.vmem [shape: f32[128,32], index: 3, kind: input, shape index: {}]
  %s4 = inlined_call_operand.vmem [shape: f32[1,32], index: 4, kind: input, shape index: {}]
  %s5 = inlined_call_operand.vmem [shape: f32[128,32], index: 5, kind: output, shape index: {}]
  %s6 = sld [smem:[#allocation0]]
  $region30: #{daftstone_sur_forward.6} parent=0
    _
  %s8 = ssub.s32 1, %s6
  %s9 = scalar_select 0, %s8, %s6
  // Predicated region
  $region2: #{daftstone_sur_forward.6} parent=0 // pred_check
    _
  $region3: #{daftstone_sur_forward.6} parent=0 // pred_check_branch
    %11 = sbr.rel (0) target = $region5
  $region4: #{daftstone_sur_forward.6} parent=0 // pred_region
    _
  $region5: #{daftstone_sur_forward.6} parent=0 // pred_fallthru
    _
  // Predicated region
  $region6: #{daftstone_sur_forward.6} parent=0 // pred_check
    _
  $region7: #{daftstone_sur_forward.6} parent=0 // pred_check_branch
    %13 = sbr.rel (0) target = $region9
  $region8: #{daftstone_sur_forward.6} parent=0 // pred_region
    _
  $region9: #{daftstone_sur_forward.6} parent=0 // pred_fallthru
    _
  // Predicated region
  $region10: #{daftstone_sur_forward.6} parent=0 // pred_check
    _
  $region11: #{daftstone_sur_forward.6} parent=0 // pred_check_branch
    %15 = sbr.rel (0) target = $region13
  $region12: #{daftstone_sur_forward.6} parent=0 // pred_region
    _
  $region13: #{daftstone_sur_forward.6} parent=0 // pred_fallthru
    _
  // Predicated region
  $region14: #{daftstone_sur_forward.6} parent=0 // pred_check
    _
  $region15: #{daftstone_sur_forward.6} parent=0 // pred_check_branch
    %17 = sbr.rel (0) target = $region17
  $region16: #{daftstone_sur_forward.6} parent=0 // pred_region
    _
  $region17: #{daftstone_sur_forward.6} parent=0 // pred_fallthru
    _
  // Predicated region
  $region18: #{daftstone_sur_forward.6} parent=0 // pred_check
    _
  $region19: #{daftstone_sur_forward.6} parent=0 // pred_check_branch
    %19 = sbr.rel (0) target = $region21
  $region20: #{daftstone_sur_forward.6} parent=0 // pred_region
    _
  $region21: #{daftstone_sur_forward.6} parent=0 // pred_fallthru
    _
  %v21 = vld [vmem:[%s2] sm:$0xf]
  %v22 = vld [vmem:[%s2 + $0x4] sm:$0xf]
  %v23 = vld [vmem:[%s2 + $0x8] sm:$0xf]
  %v24 = vld [vmem:[%s2 + $0xc] sm:$0xf]
  %v25 = vld [vmem:[%s2 + $0x10] sm:$0xf]
  %v26 = vld [vmem:[%s2 + $0x14] sm:$0xf]
  %v27 = vld [vmem:[%s2 + $0x18] sm:$0xf]
  %v28 = vld [vmem:[%s2 + $0x1c] sm:$0xf]
  %v29 = vld [vmem:[%s2 + $0x20] sm:$0xf]
  %v30 = vld [vmem:[%s2 + $0x24] sm:$0xf]
  %v31 = vld [vmem:[%s2 + $0x28] sm:$0xf]
  %v32 = vld [vmem:[%s2 + $0x2c] sm:$0xf]
  %v33 = vld [vmem:[%s2 + $0x30] sm:$0xf]
  %v34 = vld [vmem:[%s2 + $0x34] sm:$0xf]
  %v35 = vld [vmem:[%s2 + $0x38] sm:$0xf]
  %v36 = vld [vmem:[%s2 + $0x3c] sm:$0xf]
  %v37 = vld [vmem:[%s1] sm:$0xf]
  %v38 = vld [vmem:[%s1 + $0x4] sm:$0xf]
  %v39 = vld [vmem:[%s1 + $0x8] sm:$0xf]
  %v40 = vld [vmem:[%s1 + $0xc] sm:$0xf]
  %v41 = vld [vmem:[%s1 + $0x10] sm:$0xf]
  %v42 = vld [vmem:[%s1 + $0x14] sm:$0xf]
  %v43 = vld [vmem:[%s1 + $0x18] sm:$0xf]
  %v44 = vld [vmem:[%s1 + $0x1c] sm:$0xf]
  %v45 = vld [vmem:[%s1 + $0x20] sm:$0xf]
  %v46 = vld [vmem:[%s1 + $0x24] sm:$0xf]
  %v47 = vld [vmem:[%s1 + $0x28] sm:$0xf]
  %v48 = vld [vmem:[%s1 + $0x2c] sm:$0xf]
  %v49 = vld [vmem:[%s1 + $0x30] sm:$0xf]
  %v50 = vld [vmem:[%s1 + $0x34] sm:$0xf]
  %v51 = vld [vmem:[%s1 + $0x38] sm:$0xf]
  %v52 = vld [vmem:[%s1 + $0x3c] sm:$0xf]
  %v69 = vunpack.c.l.b16 %v21
  %v70 = vunpack.c.l.b16 %v22
  %v71 = vunpack.c.l.b16 %v23
  %v72 = vunpack.c.l.b16 %v24
  %v73 = vunpack.c.l.b16 %v25
  %v74 = vunpack.c.l.b16 %v26
  %v75 = vunpack.c.l.b16 %v27
  %v76 = vunpack.c.l.b16 %v28
  %v77 = vunpack.c.l.b16 %v29
  %v78 = vunpack.c.l.b16 %v30
  %v79 = vunpack.c.l.b16 %v31
  %v80 = vunpack.c.l.b16 %v32
  %v81 = vunpack.c.l.b16 %v33
  %v82 = vunpack.c.l.b16 %v34
  %v83 = vunpack.c.l.b16 %v35
  %v84 = vunpack.c.l.b16 %v36
  %v85 = vpack.c.b16 %v70, %v69
  %v86 = vpack.c.b16 %v72, %v71
  %v87 = vpack.c.b16 %v74, %v73
  %v88 = vpack.c.b16 %v76, %v75
  %v89 = vpack.c.b16 %v78, %v77
  %v90 = vpack.c.b16 %v80, %v79
  %v91 = vpack.c.b16 %v82, %v81
  %v92 = vpack.c.b16 %v84, %v83
  %v117 = vunpack.c.l.b16 %v37
  %v118 = vunpack.c.l.b16 %v38
  %v119 = vunpack.c.l.b16 %v39
  %v120 = vunpack.c.l.b16 %v40
  %v121 = vunpack.c.l.b16 %v41
  %v122 = vunpack.c.l.b16 %v42
  %v123 = vunpack.c.l.b16 %v43
  %v124 = vunpack.c.l.b16 %v44
  %v125 = vunpack.c.l.b16 %v45
  %v126 = vunpack.c.l.b16 %v46
  %v127 = vunpack.c.l.b16 %v47
  %v128 = vunpack.c.l.b16 %v48
  %v129 = vunpack.c.l.b16 %v49
  %v130 = vunpack.c.l.b16 %v50
  %v131 = vunpack.c.l.b16 %v51
  %v132 = vunpack.c.l.b16 %v52
  %v133 = vpack.c.b16 %v118, %v117
  %v134 = vpack.c.b16 %v120, %v119
  %v135 = vpack.c.b16 %v122, %v121
  %v136 = vpack.c.b16 %v124, %v123
  %v137 = vpack.c.b16 %v126, %v125
  %v138 = vpack.c.b16 %v128, %v127
  %v139 = vpack.c.b16 %v130, %v129
  %v140 = vpack.c.b16 %v132, %v131
  %149 = vmatprep.subr.bf16.mxu0 0
  %150 = vmatpush1.bf16.msra.mxu0 %v133
  %151 = vmatprep.subr.bf16.mxu0 0
  %152 = vmatpush1.bf16.msra.mxu0 %v134
  %153 = vmatprep.subr.bf16.mxu0 0
  %154 = vmatpush1.bf16.msra.mxu0 %v135
  %155 = vmatprep.subr.bf16.mxu0 0
  %156 = vmatpush1.bf16.msra.mxu0 %v136
  %157 = vmatprep.subr.bf16.mxu0 0
  %158 = vmatpush1.bf16.msra.mxu0 %v137
  %159 = vmatprep.subr.bf16.mxu0 0
  %160 = vmatpush1.bf16.msra.mxu0 %v138
  %161 = vmatprep.subr.bf16.mxu0 0
  %162 = vmatpush1.bf16.msra.mxu0 %v139
  %163 = vmatprep.subr.bf16.mxu0 0
  %164 = vmatpush1.bf16.msra.mxu0 %v140
  %165 = vmatprep.subr.bf16.mxu0 0
  %166 = vmatpush1.bf16.msra.mxu0 0
  %167 = vmatprep.subr.bf16.mxu0 0
  %168 = vmatpush1.bf16.msra.mxu0 0
  %169 = vmatprep.subr.bf16.mxu0 0
  %170 = vmatpush1.bf16.msra.mxu0 0
  %171 = vmatprep.subr.bf16.mxu0 0
  %172 = vmatpush1.bf16.msra.mxu0 0
  %173 = vmatprep.subr.bf16.mxu0 0
  %174 = vmatpush1.bf16.msra.mxu0 0
  %175 = vmatprep.subr.bf16.mxu0 0
  %176 = vmatpush1.bf16.msra.mxu0 0
  %177 = vmatprep.subr.bf16.mxu0 0
  %178 = vmatpush1.bf16.msra.mxu0 0
  %179 = vmatprep.subr.bf16.mxu0 0
  %180 = vmatpush1.bf16.msra.mxu0 0
  %181 = vmatprep.mubr.bf16.mxu0 0
  %182 = vmatmul.mubr.bf16.gmra.mrb[0].mxu0 %v85
  %v183 = vpop.f32.mrb[0].mxu0
  %v184 = vadd.f32 0.0, %v183
  %v185 = vpop.f32.mrb[0].mxu0
  %v186 = vpop.f32.mrb[0].mxu0
  %v187 = vadd.f32 0.0, %v186
  %v188 = vpop.f32.mrb[0].mxu0
  %189 = vmatprep.mubr.bf16.mxu0 0
  %190 = vmatmul.mubr.bf16.gmra.mrb[0].mxu0 %v86
  %v191 = vpop.f32.mrb[0].mxu0
  %v192 = vadd.f32 0.0, %v191
  %v193 = vpop.f32.mrb[0].mxu0
  %v194 = vpop.f32.mrb[0].mxu0
  %v195 = vadd.f32 0.0, %v194
  %v196 = vpop.f32.mrb[0].mxu0
  %197 = vmatprep.mubr.bf16.mxu0 0
  %198 = vmatmul.mubr.bf16.gmra.mrb[0].mxu0 %v87
  %v199 = vpop.f32.mrb[0].mxu0
  %v200 = vadd.f32 0.0, %v199
  %v201 = vpop.f32.mrb[0].mxu0
  %v202 = vpop.f32.mrb[0].mxu0
  %v203 = vadd.f32 0.0, %v202
  %v204 = vpop.f32.mrb[0].mxu0
  %205 = vmatprep.mubr.bf16.mxu0 0
  %206 = vmatmul.mubr.bf16.gmra.mrb[0].mxu0 %v88
  %v207 = vpop.f32.mrb[0].mxu0
  %v208 = vadd.f32 0.0, %v207
  %v209 = vpop.f32.mrb[0].mxu0
  %v210 = vpop.f32.mrb[0].mxu0
  %v211 = vadd.f32 0.0, %v210
  %v212 = vpop.f32.mrb[0].mxu0
  %213 = vmatprep.mubr.bf16.mxu0 0
  %214 = vmatmul.mubr.bf16.gmra.mrb[0].mxu0 %v89
  %v215 = vpop.f32.mrb[0].mxu0
  %v216 = vadd.f32 0.0, %v215
  %v217 = vpop.f32.mrb[0].mxu0
  %v218 = vpop.f32.mrb[0].mxu0
  %v219 = vadd.f32 0.0, %v218
  %v220 = vpop.f32.mrb[0].mxu0
  %221 = vmatprep.mubr.bf16.mxu0 0
  %222 = vmatmul.mubr.bf16.gmra.mrb[0].mxu0 %v90
  %v223 = vpop.f32.mrb[0].mxu0
  %v224 = vadd.f32 0.0, %v223
  %v225 = vpop.f32.mrb[0].mxu0
  %v226 = vpop.f32.mrb[0].mxu0
  %v227 = vadd.f32 0.0, %v226
  %v228 = vpop.f32.mrb[0].mxu0
  %229 = vmatprep.mubr.bf16.mxu0 0
  %230 = vmatmul.mubr.bf16.gmra.mrb[0].mxu0 %v91
  %v231 = vpop.f32.mrb[0].mxu0
  %v232 = vadd.f32 0.0, %v231
  %v233 = vpop.f32.mrb[0].mxu0
  %v234 = vpop.f32.mrb[0].mxu0
  %v235 = vadd.f32 0.0, %v234
  %v236 = vpop.f32.mrb[0].mxu0
  %237 = vmatprep.mubr.bf16.mxu0 0
  %238 = vmatmul.mubr.bf16.gmra.mrb[0].mxu0 %v92
  %v239 = vpop.f32.mrb[0].mxu0
  %v240 = vadd.f32 0.0, %v239
  %v241 = vpop.f32.mrb[0].mxu0
  %v242 = vpop.f32.mrb[0].mxu0
  %v243 = vadd.f32 0.0, %v242
  %v244 = vpop.f32.mrb[0].mxu0
  %245 = vdwg.mxu0
  %v246 = vld [vmem:[%s0] sm:$0xff]
  %v247 = vld [vmem:[%s0 + $0x8] sm:$0xff]
  %v248 = vld [vmem:[%s0 + $0x10] sm:$0xff]
  %v249 = vld [vmem:[%s0 + $0x18] sm:$0xff]
  %v250 = vld [vmem:[%s0 + $0x20] sm:$0xff]
  %v251 = vld [vmem:[%s0 + $0x28] sm:$0xff]
  %v252 = vld [vmem:[%s0 + $0x30] sm:$0xff]
  %v253 = vld [vmem:[%s0 + $0x38] sm:$0xff]
  %v254 = vld [vmem:[%s0 + $0x40] sm:$0xff]
  %v255 = vld [vmem:[%s0 + $0x48] sm:$0xff]
  %v256 = vld [vmem:[%s0 + $0x50] sm:$0xff]
  %v257 = vld [vmem:[%s0 + $0x58] sm:$0xff]
  %v258 = vld [vmem:[%s0 + $0x60] sm:$0xff]
  %v259 = vld [vmem:[%s0 + $0x68] sm:$0xff]
  %v260 = vld [vmem:[%s0 + $0x70] sm:$0xff]
  %v261 = vld [vmem:[%s0 + $0x78] sm:$0xff]
  %v262 = vld [vmem:[%s3] sm:$0xff]
  %v263 = vld [vmem:[%s3 + $0x8] sm:$0xff]
  %v264 = vld [vmem:[%s3 + $0x10] sm:$0xff]
  %v265 = vld [vmem:[%s3 + $0x18] sm:$0xff]
  %v266 = vld [vmem:[%s3 + $0x20] sm:$0xff]
  %v267 = vld [vmem:[%s3 + $0x28] sm:$0xff]
  %v268 = vld [vmem:[%s3 + $0x30] sm:$0xff]
  %v269 = vld [vmem:[%s3 + $0x38] sm:$0xff]
  %v270 = vld [vmem:[%s3 + $0x40] sm:$0xff]
  %v271 = vld [vmem:[%s3 + $0x48] sm:$0xff]
  %v272 = vld [vmem:[%s3 + $0x50] sm:$0xff]
  %v273 = vld [vmem:[%s3 + $0x58] sm:$0xff]
  %v274 = vld [vmem:[%s3 + $0x60] sm:$0xff]
  %v275 = vld [vmem:[%s3 + $0x68] sm:$0xff]
  %v276 = vld [vmem:[%s3 + $0x70] sm:$0xff]
  %v277 = vld [vmem:[%s3 + $0x78] sm:$0xff]
  %278 = vmatprep.subr.mxu0 0.0
  %279 = vmatpush1.msra.mxu0 %v262
  %280 = vmatprep.subr.mxu0 0.0
  %281 = vmatpush1.msra.mxu0 %v263
  %282 = vmatprep.subr.mxu0 0.0
  %283 = vmatpush1.msra.mxu0 %v264
  %284 = vmatprep.subr.mxu0 0.0
  %285 = vmatpush1.msra.mxu0 %v265
  %286 = vmatprep.subr.mxu0 0.0
  %287 = vmatpush1.msra.mxu0 %v266
  %288 = vmatprep.subr.mxu0 0.0
  %289 = vmatpush1.msra.mxu0 %v267
  %290 = vmatprep.subr.mxu0 0.0
  %291 = vmatpush1.msra.mxu0 %v268
  %292 = vmatprep.subr.mxu0 0.0
  %293 = vmatpush1.msra.mxu0 %v269
  %294 = vmatprep.subr.mxu0 0.0
  %295 = vmatpush1.msra.mxu0 %v270
  %296 = vmatprep.subr.mxu0 0.0
  %297 = vmatpush1.msra.mxu0 %v271
  %298 = vmatprep.subr.mxu0 0.0
  %299 = vmatpush1.msra.mxu0 %v272
  %300 = vmatprep.subr.mxu0 0.0
  %301 = vmatpush1.msra.mxu0 %v273
  %302 = vmatprep.subr.mxu0 0.0
  %303 = vmatpush1.msra.mxu0 %v274
  %304 = vmatprep.subr.mxu0 0.0
  %305 = vmatpush1.msra.mxu0 %v275
  %306 = vmatprep.subr.mxu0 0.0
  %307 = vmatpush1.msra.mxu0 %v276
  %308 = vmatprep.subr.mxu0 0.0
  %309 = vmatpush1.msra.mxu0 %v277
  %310 = vmatprep.subr.mxu0 0.0
  %311 = vmatpush1.msra.mxu0 0.0
  %312 = vmatprep.subr.mxu0 0.0
  %313 = vmatpush1.msra.mxu0 0.0
  %314 = vmatprep.subr.mxu0 0.0
  %315 = vmatpush1.msra.mxu0 0.0
  %316 = vmatprep.subr.mxu0 0.0
  %317 = vmatpush1.msra.mxu0 0.0
  %318 = vmatprep.subr.mxu0 0.0
  %319 = vmatpush1.msra.mxu0 0.0
  %320 = vmatprep.subr.mxu0 0.0
  %321 = vmatpush1.msra.mxu0 0.0
  %322 = vmatprep.subr.mxu0 0.0
  %323 = vmatpush1.msra.mxu0 0.0
  %324 = vmatprep.subr.mxu0 0.0
  %325 = vmatpush1.msra.mxu0 0.0
  %326 = vmatprep.subr.mxu0 0.0
  %327 = vmatpush1.msra.mxu0 0.0
  %328 = vmatprep.subr.mxu0 0.0
  %329 = vmatpush1.msra.mxu0 0.0
  %330 = vmatprep.subr.mxu0 0.0
  %331 = vmatpush1.msra.mxu0 0.0
  %332 = vmatprep.subr.mxu0 0.0
  %333 = vmatpush1.msra.mxu0 0.0
  %334 = vmatprep.subr.mxu0 0.0
  %335 = vmatpush1.msra.mxu0 0.0
  %336 = vmatprep.subr.mxu0 0.0
  %337 = vmatpush1.msra.mxu0 0.0
  %338 = vmatprep.subr.mxu0 0.0
  %339 = vmatpush1.msra.mxu0 0.0
  %340 = vmatprep.subr.mxu0 0.0
  %341 = vmatpush1.msra.mxu0 0.0
  %342 = vmatprep.mubr.f32.mxu0 0.0
  %343 = vmatmul.mubr.f32.gmra.mrb[0].mxu0 %v246
  %v344 = vpop.f32.mrb[0].mxu0
  %v345 = vadd.f32 %v184, %v344
  %v346 = vpop.f32.mrb[0].mxu0
  %347 = vmatprep.mubr.f32.mxu0 0.0
  %348 = vmatmul.mubr.f32.gmra.mrb[0].mxu0 %v247
  %v349 = vpop.f32.mrb[0].mxu0
  %v350 = vadd.f32 %v187, %v349
  %v351 = vpop.f32.mrb[0].mxu0
  %352 = vmatprep.mubr.f32.mxu0 0.0
  %353 = vmatmul.mubr.f32.gmra.mrb[0].mxu0 %v248
  %v354 = vpop.f32.mrb[0].mxu0
  %v355 = vadd.f32 %v192, %v354
  %v356 = vpop.f32.mrb[0].mxu0
  %357 = vmatprep.mubr.f32.mxu0 0.0
  %358 = vmatmul.mubr.f32.gmra.mrb[0].mxu0 %v249
  %v359 = vpop.f32.mrb[0].mxu0
  %v360 = vadd.f32 %v195, %v359
  %v361 = vpop.f32.mrb[0].mxu0
  %362 = vmatprep.mubr.f32.mxu0 0.0
  %363 = vmatmul.mubr.f32.gmra.mrb[0].mxu0 %v250
  %v364 = vpop.f32.mrb[0].mxu0
  %v365 = vadd.f32 %v200, %v364
  %v366 = vpop.f32.mrb[0].mxu0
  %367 = vmatprep.mubr.f32.mxu0 0.0
  %368 = vmatmul.mubr.f32.gmra.mrb[0].mxu0 %v251
  %v369 = vpop.f32.mrb[0].mxu0
  %v370 = vadd.f32 %v203, %v369
  %v371 = vpop.f32.mrb[0].mxu0
  %372 = vmatprep.mubr.f32.mxu0 0.0
  %373 = vmatmul.mubr.f32.gmra.mrb[0].mxu0 %v252
  %v374 = vpop.f32.mrb[0].mxu0
  %v375 = vadd.f32 %v208, %v374
  %v376 = vpop.f32.mrb[0].mxu0
  %377 = vmatprep.mubr.f32.mxu0 0.0
  %378 = vmatmul.mubr.f32.gmra.mrb[0].mxu0 %v253
  %v379 = vpop.f32.mrb[0].mxu0
  %v380 = vadd.f32 %v211, %v379
  %v381 = vpop.f32.mrb[0].mxu0
  %382 = vmatprep.mubr.f32.mxu0 0.0
  %383 = vmatmul.mubr.f32.gmra.mrb[0].mxu0 %v254
  %v384 = vpop.f32.mrb[0].mxu0
  %v385 = vadd.f32 %v216, %v384
  %v386 = vpop.f32.mrb[0].mxu0
  %387 = vmatprep.mubr.f32.mxu0 0.0
  %388 = vmatmul.mubr.f32.gmra.mrb[0].mxu0 %v255
  %v389 = vpop.f32.mrb[0].mxu0
  %v390 = vadd.f32 %v219, %v389
  %v391 = vpop.f32.mrb[0].mxu0
  %392 = vmatprep.mubr.f32.mxu0 0.0
  %393 = vmatmul.mubr.f32.gmra.mrb[0].mxu0 %v256
  %v394 = vpop.f32.mrb[0].mxu0
  %v395 = vadd.f32 %v224, %v394
  %v396 = vpop.f32.mrb[0].mxu0
  %397 = vmatprep.mubr.f32.mxu0 0.0
  %398 = vmatmul.mubr.f32.gmra.mrb[0].mxu0 %v257
  %v399 = vpop.f32.mrb[0].mxu0
  %v400 = vadd.f32 %v227, %v399
  %v401 = vpop.f32.mrb[0].mxu0
  %402 = vmatprep.mubr.f32.mxu0 0.0
  %403 = vmatmul.mubr.f32.gmra.mrb[0].mxu0 %v258
  %v404 = vpop.f32.mrb[0].mxu0
  %v405 = vadd.f32 %v232, %v404
  %v406 = vpop.f32.mrb[0].mxu0
  %407 = vmatprep.mubr.f32.mxu0 0.0
  %408 = vmatmul.mubr.f32.gmra.mrb[0].mxu0 %v259
  %v409 = vpop.f32.mrb[0].mxu0
  %v410 = vadd.f32 %v235, %v409
  %v411 = vpop.f32.mrb[0].mxu0
  %412 = vmatprep.mubr.f32.mxu0 0.0
  %413 = vmatmul.mubr.f32.gmra.mrb[0].mxu0 %v260
  %v414 = vpop.f32.mrb[0].mxu0
  %v415 = vadd.f32 %v240, %v414
  %v416 = vpop.f32.mrb[0].mxu0
  %417 = vmatprep.mubr.f32.mxu0 0.0
  %418 = vmatmul.mubr.f32.gmra.mrb[0].mxu0 %v261
  %v419 = vpop.f32.mrb[0].mxu0
  %v420 = vadd.f32 %v243, %v419
  %v421 = vpop.f32.mrb[0].mxu0
  %422 = vdwg.mxu0
  %v423 = vld [vmem:[%s4] sm:$0x1]
  %v425 = vlaneseq
  %v426 = vshrl.u32 %v425, 7
  %v427 = vsub.s32 0, %v426
  %v428 = vrot.slane %v423, %v427
  %v430 = vadd.f32 %v345, %v428
  %v431 = vadd.f32 %v350, %v428
  %v432 = vadd.f32 %v355, %v428
  %v433 = vadd.f32 %v360, %v428
  %v434 = vadd.f32 %v365, %v428
  %v435 = vadd.f32 %v370, %v428
  %v436 = vadd.f32 %v375, %v428
  %v437 = vadd.f32 %v380, %v428
  %v438 = vadd.f32 %v385, %v428
  %v439 = vadd.f32 %v390, %v428
  %v440 = vadd.f32 %v395, %v428
  %v441 = vadd.f32 %v400, %v428
  %v442 = vadd.f32 %v405, %v428
  %v443 = vadd.f32 %v410, %v428
  %v444 = vadd.f32 %v415, %v428
  %v445 = vadd.f32 %v420, %v428
  %vm446 = vcmp.ge.f32.partialorder %v430, 0.0
  %vm447 = vcmp.ge.f32.partialorder %v431, 0.0
  %vm448 = vcmp.ge.f32.partialorder %v432, 0.0
  %vm449 = vcmp.ge.f32.partialorder %v433, 0.0
  %vm450 = vcmp.ge.f32.partialorder %v434, 0.0
  %vm451 = vcmp.ge.f32.partialorder %v435, 0.0
  %vm452 = vcmp.ge.f32.partialorder %v436, 0.0
  %vm453 = vcmp.ge.f32.partialorder %v437, 0.0
  %vm454 = vcmp.ge.f32.partialorder %v438, 0.0
  %vm455 = vcmp.ge.f32.partialorder %v439, 0.0
  %vm456 = vcmp.ge.f32.partialorder %v440, 0.0
  %vm457 = vcmp.ge.f32.partialorder %v441, 0.0
  %vm458 = vcmp.ge.f32.partialorder %v442, 0.0
  %vm459 = vcmp.ge.f32.partialorder %v443, 0.0
  %vm460 = vcmp.ge.f32.partialorder %v444, 0.0
  %vm461 = vcmp.ge.f32.partialorder %v445, 0.0
  %v462 = vmul.f32 %v430, 0.01
  %v463 = vmul.f32 %v431, 0.01
  %v464 = vmul.f32 %v432, 0.01
  %v465 = vmul.f32 %v433, 0.01
  %v466 = vmul.f32 %v434, 0.01
  %v467 = vmul.f32 %v435, 0.01
  %v468 = vmul.f32 %v436, 0.01
  %v469 = vmul.f32 %v437, 0.01
  %v470 = vmul.f32 %v438, 0.01
  %v471 = vmul.f32 %v439, 0.01
  %v472 = vmul.f32 %v440, 0.01
  %v473 = vmul.f32 %v441, 0.01
  %v474 = vmul.f32 %v442, 0.01
  %v475 = vmul.f32 %v443, 0.01
  %v476 = vmul.f32 %v444, 0.01
  %v477 = vmul.f32 %v445, 0.01
  %v478 = vsel %vm446, %v430, %v462
  %v479 = vsel %vm447, %v431, %v463
  %v480 = vsel %vm448, %v432, %v464
  %v481 = vsel %vm449, %v433, %v465
  %v482 = vsel %vm450, %v434, %v466
  %v483 = vsel %vm451, %v435, %v467
  %v484 = vsel %vm452, %v436, %v468
  %v485 = vsel %vm453, %v437, %v469
  %v486 = vsel %vm454, %v438, %v470
  %v487 = vsel %vm455, %v439, %v471
  %v488 = vsel %vm456, %v440, %v472
  %v489 = vsel %vm457, %v441, %v473
  %v490 = vsel %vm458, %v442, %v474
  %v491 = vsel %vm459, %v443, %v475
  %v492 = vsel %vm460, %v444, %v476
  %v493 = vsel %vm461, %v445, %v477
  %vm494 = vcmask 261120
  %495 = vst.msk [vmem:[%s5] sm:$0xff] %vm494, %v478
  %496 = vst.msk [vmem:[%s5 + $0x8] sm:$0xff] %vm494, %v479
  %497 = vst.msk [vmem:[%s5 + $0x10] sm:$0xff] %vm494, %v480
  %498 = vst.msk [vmem:[%s5 + $0x18] sm:$0xff] %vm494, %v481
  %499 = vst.msk [vmem:[%s5 + $0x20] sm:$0xff] %vm494, %v482
  %500 = vst.msk [vmem:[%s5 + $0x28] sm:$0xff] %vm494, %v483
  %501 = vst.msk [vmem:[%s5 + $0x30] sm:$0xff] %vm494, %v484
  %502 = vst.msk [vmem:[%s5 + $0x38] sm:$0xff] %vm494, %v485
  %503 = vst.msk [vmem:[%s5 + $0x40] sm:$0xff] %vm494, %v486
  %504 = vst.msk [vmem:[%s5 + $0x48] sm:$0xff] %vm494, %v487
  %505 = vst.msk [vmem:[%s5 + $0x50] sm:$0xff] %vm494, %v488
  %506 = vst.msk [vmem:[%s5 + $0x58] sm:$0xff] %vm494, %v489
  %507 = vst.msk [vmem:[%s5 + $0x60] sm:$0xff] %vm494, %v490
  %508 = vst.msk [vmem:[%s5 + $0x68] sm:$0xff] %vm494, %v491
  %509 = vst.msk [vmem:[%s5 + $0x70] sm:$0xff] %vm494, %v492
  %510 = vst.msk [vmem:[%s5 + $0x78] sm:$0xff] %vm494, %v493
  // Predicated region
  $region22: #{daftstone_sur_forward.6} parent=0 // pred_check
    _
  $region23: #{daftstone_sur_forward.6} parent=0 // pred_check_branch
    %512 = sbr.rel (0) target = $region25
  $region24: #{daftstone_sur_forward.6} parent=0 // pred_region
    _
  $region25: #{daftstone_sur_forward.6} parent=0 // pred_fallthru
    _
  // Predicated region
  $region26: #{daftstone_sur_forward.6} parent=0 // pred_check
    _
  $region27: #{daftstone_sur_forward.6} parent=0 // pred_check_branch
    %514 = sbr.rel (0) target = $region29
  $region28: #{daftstone_sur_forward.6} parent=0 // pred_region
    _
  $region29: #{daftstone_sur_forward.6} parent=0 // pred_fallthru
    _

// kernel: daftstone_sur_forward.8
$region0: #{daftstone_sur_forward.8}
  #allocation0 [shape = 'u32[]', space=smem, size = 0x4, offset = 0x4, fixed_abs, tag = 'smem constant byte address 0x4 - core index']
  #allocation1 [shape = 'u32[144,128]{1,0:T(1,128)}', space=vmem, size = 0x12000, scoped, tag = 'internal scratch']
  %s0 = inlined_call_operand.vmem [shape: f32[128,32], index: 0, kind: input, shape index: {}, may-alias: {0,1}]
  %s1 = inlined_call_operand.vmem [shape: f32[128,32], index: 1, kind: input, shape index: {}, may-alias: {0,1}]
  %s2 = inlined_call_operand.vmem [shape: bf16[128,128], index: 2, kind: input, shape index: {}]
  %s3 = inlined_call_operand.vmem [shape: f32[32,32], index: 3, kind: input, shape index: {}]
  %s4 = inlined_call_operand.vmem [shape: f32[32,32], index: 4, kind: input, shape index: {}]
  %s5 = inlined_call_operand.vmem [shape: f32[1,32], index: 5, kind: input, shape index: {}]
  %s6 = inlined_call_operand.vmem [shape: f32[128,32], index: 6, kind: output, shape index: {}]
  %s7 = sld [smem:[#allocation0]]
  $region34: #{daftstone_sur_forward.8} parent=0
    _
  %s9 = ssub.s32 1, %s7
  %s10 = scalar_select 0, %s9, %s7
  // Predicated region
  $region2: #{daftstone_sur_forward.8} parent=0 // pred_check
    _
  $region3: #{daftstone_sur_forward.8} parent=0 // pred_check_branch
    %12 = sbr.rel (0) target = $region5
  $region4: #{daftstone_sur_forward.8} parent=0 // pred_region
    _
  $region5: #{daftstone_sur_forward.8} parent=0 // pred_fallthru
    _
  // Predicated region
  $region6: #{daftstone_sur_forward.8} parent=0 // pred_check
    _
  $region7: #{daftstone_sur_forward.8} parent=0 // pred_check_branch
    %14 = sbr.rel (0) target = $region9
  $region8: #{daftstone_sur_forward.8} parent=0 // pred_region
    _
  $region9: #{daftstone_sur_forward.8} parent=0 // pred_fallthru
    _
  // Predicated region
  $region10: #{daftstone_sur_forward.8} parent=0 // pred_check
    _
  $region11: #{daftstone_sur_forward.8} parent=0 // pred_check_branch
    %16 = sbr.rel (0) target = $region13
  $region12: #{daftstone_sur_forward.8} parent=0 // pred_region
    _
  $region13: #{daftstone_sur_forward.8} parent=0 // pred_fallthru
    _
  // Predicated region
  $region14: #{daftstone_sur_forward.8} parent=0 // pred_check
    _
  $region15: #{daftstone_sur_forward.8} parent=0 // pred_check_branch
    %18 = sbr.rel (0) target = $region17
  $region16: #{daftstone_sur_forward.8} parent=0 // pred_region
    _
  $region17: #{daftstone_sur_forward.8} parent=0 // pred_fallthru
    _
  // Predicated region
  $region18: #{daftstone_sur_forward.8} parent=0 // pred_check
    _
  $region19: #{daftstone_sur_forward.8} parent=0 // pred_check_branch
    %20 = sbr.rel (0) target = $region21
  $region20: #{daftstone_sur_forward.8} parent=0 // pred_region
    _
  $region21: #{daftstone_sur_forward.8} parent=0 // pred_fallthru
    _
  // Predicated region
  $region22: #{daftstone_sur_forward.8} parent=0 // pred_check
    _
  $region23: #{daftstone_sur_forward.8} parent=0 // pred_check_branch
    %22 = sbr.rel (0) target = $region25
  $region24: #{daftstone_sur_forward.8} parent=0 // pred_region
    _
  $region25: #{daftstone_sur_forward.8} parent=0 // pred_fallthru
    _
  %v24 = vld [vmem:[%s2] sm:$0xf]
  %v25 = vld [vmem:[%s2 + $0x4] sm:$0xf]
  %v26 = vld [vmem:[%s2 + $0x8] sm:$0xf]
  %v27 = vld [vmem:[%s2 + $0xc] sm:$0xf]
  %v28 = vld [vmem:[%s2 + $0x10] sm:$0xf]
  %v29 = vld [vmem:[%s2 + $0x14] sm:$0xf]
  %v30 = vld [vmem:[%s2 + $0x18] sm:$0xf]
  %v31 = vld [vmem:[%s2 + $0x1c] sm:$0xf]
  %v32 = vld [vmem:[%s2 + $0x20] sm:$0xf]
  %v33 = vld [vmem:[%s2 + $0x24] sm:$0xf]
  %v34 = vld [vmem:[%s2 + $0x28] sm:$0xf]
  %v35 = vld [vmem:[%s2 + $0x2c] sm:$0xf]
  %v36 = vld [vmem:[%s2 + $0x30] sm:$0xf]
  %v37 = vld [vmem:[%s2 + $0x34] sm:$0xf]
  %v38 = vld [vmem:[%s2 + $0x38] sm:$0xf]
  %v39 = vld [vmem:[%s2 + $0x3c] sm:$0xf]
  %v40 = vld [vmem:[%s1] sm:$0xff]
  %v41 = vld [vmem:[%s1 + $0x8] sm:$0xff]
  %v42 = vld [vmem:[%s1 + $0x10] sm:$0xff]
  %v43 = vld [vmem:[%s1 + $0x18] sm:$0xff]
  %v44 = vld [vmem:[%s1 + $0x20] sm:$0xff]
  %v45 = vld [vmem:[%s1 + $0x28] sm:$0xff]
  %v46 = vld [vmem:[%s1 + $0x30] sm:$0xff]
  %v47 = vld [vmem:[%s1 + $0x38] sm:$0xff]
  %v48 = vld [vmem:[%s1 + $0x40] sm:$0xff]
  %v49 = vld [vmem:[%s1 + $0x48] sm:$0xff]
  %v50 = vld [vmem:[%s1 + $0x50] sm:$0xff]
  %v51 = vld [vmem:[%s1 + $0x58] sm:$0xff]
  %v52 = vld [vmem:[%s1 + $0x60] sm:$0xff]
  %v53 = vld [vmem:[%s1 + $0x68] sm:$0xff]
  %v54 = vld [vmem:[%s1 + $0x70] sm:$0xff]
  %v55 = vld [vmem:[%s1 + $0x78] sm:$0xff]
  %v56 = vpack.c.bf16 %v41, %v40
  %v57 = vpack.c.bf16 %v43, %v42
  %v58 = vpack.c.bf16 %v45, %v44
  %v59 = vpack.c.bf16 %v47, %v46
  %v60 = vpack.c.bf16 %v49, %v48
  %v61 = vpack.c.bf16 %v51, %v50
  %v62 = vpack.c.bf16 %v53, %v52
  %v63 = vpack.c.bf16 %v55, %v54
  %v80 = vunpack.c.l.b16 %v24
  %v81 = vunpack.c.l.b16 %v25
  %v82 = vunpack.c.l.b16 %v26
  %v83 = vunpack.c.l.b16 %v27
  %v84 = vunpack.c.l.b16 %v28
  %v85 = vunpack.c.l.b16 %v29
  %v86 = vunpack.c.l.b16 %v30
  %v87 = vunpack.c.l.b16 %v31
  %v88 = vunpack.c.l.b16 %v32
  %v89 = vunpack.c.l.b16 %v33
  %v90 = vunpack.c.l.b16 %v34
  %v91 = vunpack.c.l.b16 %v35
  %v92 = vunpack.c.l.b16 %v36
  %v93 = vunpack.c.l.b16 %v37
  %v94 = vunpack.c.l.b16 %v38
  %v95 = vunpack.c.l.b16 %v39
  %v96 = vpack.c.b16 %v81, %v80
  %v97 = vpack.c.b16 %v83, %v82
  %v98 = vpack.c.b16 %v85, %v84
  %v99 = vpack.c.b16 %v87, %v86
  %v100 = vpack.c.b16 %v89, %v88
  %v101 = vpack.c.b16 %v91, %v90
  %v102 = vpack.c.b16 %v93, %v92
  %v103 = vpack.c.b16 %v95, %v94
  %112 = vmatprep.subr.bf16.mxu0 0
  %113 = vmatpush1.bf16.msra.mxu0 %v56
  %114 = vmatprep.subr.bf16.mxu0 0
  %115 = vmatpush1.bf16.msra.mxu0 %v57
  %116 = vmatprep.subr.bf16.mxu0 0
  %117 = vmatpush1.bf16.msra.mxu0 %v58
  %118 = vmatprep.subr.bf16.mxu0 0
  %119 = vmatpush1.bf16.msra.mxu0 %v59
  %120 = vmatprep.subr.bf16.mxu0 0
  %121 = vmatpush1.bf16.msra.mxu0 %v60
  %122 = vmatprep.subr.bf16.mxu0 0
  %123 = vmatpush1.bf16.msra.mxu0 %v61
  %124 = vmatprep.subr.bf16.mxu0 0
  %125 = vmatpush1.bf16.msra.mxu0 %v62
  %126 = vmatprep.subr.bf16.mxu0 0
  %127 = vmatpush1.bf16.msra.mxu0 %v63
  %128 = vmatprep.subr.bf16.mxu0 0
  %129 = vmatpush1.bf16.msra.mxu0 0
  %130 = vmatprep.subr.bf16.mxu0 0
  %131 = vmatpush1.bf16.msra.mxu0 0
  %132 = vmatprep.subr.bf16.mxu0 0
  %133 = vmatpush1.bf16.msra.mxu0 0
  %134 = vmatprep.subr.bf16.mxu0 0
  %135 = vmatpush1.bf16.msra.mxu0 0
  %136 = vmatprep.subr.bf16.mxu0 0
  %137 = vmatpush1.bf16.msra.mxu0 0
  %138 = vmatprep.subr.bf16.mxu0 0
  %139 = vmatpush1.bf16.msra.mxu0 0
  %140 = vmatprep.subr.bf16.mxu0 0
  %141 = vmatpush1.bf16.msra.mxu0 0
  %142 = vmatprep.subr.bf16.mxu0 0
  %143 = vmatpush1.bf16.msra.mxu0 0
  %144 = vmatprep.mubr.bf16.mxu0 0
  %145 = vmatmul.mubr.bf16.gmra.mrb[0].mxu0 %v96
  %v146 = vpop.f32.mrb[0].mxu0
  %v147 = vadd.f32 0.0, %v146
  %v148 = vpop.f32.mrb[0].mxu0
  %v149 = vpop.f32.mrb[0].mxu0
  %v150 = vadd.f32 0.0, %v149
  %v151 = vpop.f32.mrb[0].mxu0
  %152 = vmatprep.mubr.bf16.mxu0 0
  %153 = vmatmul.mubr.bf16.gmra.mrb[0].mxu0 %v97
  %v154 = vpop.f32.mrb[0].mxu0
  %v155 = vadd.f32 0.0, %v154
  %v156 = vpop.f32.mrb[0].mxu0
  %v157 = vpop.f32.mrb[0].mxu0
  %v158 = vadd.f32 0.0, %v157
  %v159 = vpop.f32.mrb[0].mxu0
  %160 = vmatprep.mubr.bf16.mxu0 0
  %161 = vmatmul.mubr.bf16.gmra.mrb[0].mxu0 %v98
  %v162 = vpop.f32.mrb[0].mxu0
  %v163 = vadd.f32 0.0, %v162
  %v164 = vpop.f32.mrb[0].mxu0
  %v165 = vpop.f32.mrb[0].mxu0
  %v166 = vadd.f32 0.0, %v165
  %v167 = vpop.f32.mrb[0].mxu0
  %168 = vmatprep.mubr.bf16.mxu0 0
  %169 = vmatmul.mubr.bf16.gmra.mrb[0].mxu0 %v99
  %v170 = vpop.f32.mrb[0].mxu0
  %v171 = vadd.f32 0.0, %v170
  %v172 = vpop.f32.mrb[0].mxu0
  %v173 = vpop.f32.mrb[0].mxu0
  %v174 = vadd.f32 0.0, %v173
  %v175 = vpop.f32.mrb[0].mxu0
  %176 = vmatprep.mubr.bf16.mxu0 0
  %177 = vmatmul.mubr.bf16.gmra.mrb[0].mxu0 %v100
  %v178 = vpop.f32.mrb[0].mxu0
  %v179 = vadd.f32 0.0, %v178
  %v180 = vpop.f32.mrb[0].mxu0
  %v181 = vpop.f32.mrb[0].mxu0
  %v182 = vadd.f32 0.0, %v181
  %v183 = vpop.f32.mrb[0].mxu0
  %184 = vmatprep.mubr.bf16.mxu0 0
  %185 = vmatmul.mubr.bf16.gmra.mrb[0].mxu0 %v101
  %v186 = vpop.f32.mrb[0].mxu0
  %v187 = vadd.f32 0.0, %v186
  %v188 = vpop.f32.mrb[0].mxu0
  %v189 = vpop.f32.mrb[0].mxu0
  %v190 = vadd.f32 0.0, %v189
  %v191 = vpop.f32.mrb[0].mxu0
  %192 = vmatprep.mubr.bf16.mxu0 0
  %193 = vmatmul.mubr.bf16.gmra.mrb[0].mxu0 %v102
  %v194 = vpop.f32.mrb[0].mxu0
  %v195 = vadd.f32 0.0, %v194
  %v196 = vpop.f32.mrb[0].mxu0
  %v197 = vpop.f32.mrb[0].mxu0
  %v198 = vadd.f32 0.0, %v197
  %v199 = vpop.f32.mrb[0].mxu0
  %200 = vmatprep.mubr.bf16.mxu0 0
  %201 = vmatmul.mubr.bf16.gmra.mrb[0].mxu0 %v103
  %v202 = vpop.f32.mrb[0].mxu0
  %v203 = vadd.f32 0.0, %v202
  %v204 = vpop.f32.mrb[0].mxu0
  %v205 = vpop.f32.mrb[0].mxu0
  %v206 = vadd.f32 0.0, %v205
  %v207 = vpop.f32.mrb[0].mxu0
  %208 = vdwg.mxu0
  %v209 = vld [vmem:[%s4] sm:$0xff]
  %v210 = vld [vmem:[%s4 + $0x8] sm:$0xff]
  %v211 = vld [vmem:[%s4 + $0x10] sm:$0xff]
  %v212 = vld [vmem:[%s4 + $0x18] sm:$0xff]
  %vm213 = vcmask 261120
  %v215 = vsel %vm213, %v147, 0
  %v218 = vsel %vm213, %v150, 0
  %v221 = vsel %vm213, %v155, 0
  %v224 = vsel %vm213, %v158, 0
  %v227 = vsel %vm213, %v163, 0
  %v230 = vsel %vm213, %v166, 0
  %v233 = vsel %vm213, %v171, 0
  %v236 = vsel %vm213, %v174, 0
  %v239 = vsel %vm213, %v179, 0
  %v242 = vsel %vm213, %v182, 0
  %v245 = vsel %vm213, %v187, 0
  %v248 = vsel %vm213, %v190, 0
  %v251 = vsel %vm213, %v195, 0
  %v254 = vsel %vm213, %v198, 0
  %v257 = vsel %vm213, %v203, 0
  %v260 = vsel %vm213, %v206, 0
  %262 = vmatprep.subr.mxu0 0.0
  %263 = vmatpush1.msra.mxu0 %v209
  %264 = vmatprep.subr.mxu0 0.0
  %265 = vmatpush1.msra.mxu0 %v210
  %266 = vmatprep.subr.mxu0 0.0
  %267 = vmatpush1.msra.mxu0 %v211
  %268 = vmatprep.subr.mxu0 0.0
  %269 = vmatpush1.msra.mxu0 %v212
  %270 = vmatprep.subr.mxu0 0.0
  %271 = vmatpush1.msra.mxu0 0.0
  %272 = vmatprep.subr.mxu0 0.0
  %273 = vmatpush1.msra.mxu0 0.0
  %274 = vmatprep.subr.mxu0 0.0
  %275 = vmatpush1.msra.mxu0 0.0
  %276 = vmatprep.subr.mxu0 0.0
  %277 = vmatpush1.msra.mxu0 0.0
  %278 = vmatprep.subr.mxu0 0.0
  %279 = vmatpush1.msra.mxu0 0.0
  %280 = vmatprep.subr.mxu0 0.0
  %281 = vmatpush1.msra.mxu0 0.0
  %282 = vmatprep.subr.mxu0 0.0
  %283 = vmatpush1.msra.mxu0 0.0
  %284 = vmatprep.subr.mxu0 0.0
  %285 = vmatpush1.msra.mxu0 0.0
  %286 = vmatprep.subr.mxu0 0.0
  %287 = vmatpush1.msra.mxu0 0.0
  %288 = vmatprep.subr.mxu0 0.0
  %289 = vmatpush1.msra.mxu0 0.0
  %290 = vmatprep.subr.mxu0 0.0
  %291 = vmatpush1.msra.mxu0 0.0
  %292 = vmatprep.subr.mxu0 0.0
  %293 = vmatpush1.msra.mxu0 0.0
  %294 = vmatprep.subr.mxu0 0.0
  %295 = vmatpush1.msra.mxu0 0.0
  %296 = vmatprep.subr.mxu0 0.0
  %297 = vmatpush1.msra.mxu0 0.0
  %298 = vmatprep.subr.mxu0 0.0
  %299 = vmatpush1.msra.mxu0 0.0
  %300 = vmatprep.subr.mxu0 0.0
  %301 = vmatpush1.msra.mxu0 0.0
  %302 = vmatprep.subr.mxu0 0.0
  %303 = vmatpush1.msra.mxu0 0.0
  %304 = vmatprep.subr.mxu0 0.0
  %305 = vmatpush1.msra.mxu0 0.0
  %306 = vmatprep.subr.mxu0 0.0
  %307 = vmatpush1.msra.mxu0 0.0
  %308 = vmatprep.subr.mxu0 0.0
  %309 = vmatpush1.msra.mxu0 0.0
  %310 = vmatprep.subr.mxu0 0.0
  %311 = vmatpush1.msra.mxu0 0.0
  %312 = vmatprep.subr.mxu0 0.0
  %313 = vmatpush1.msra.mxu0 0.0
  %314 = vmatprep.subr.mxu0 0.0
  %315 = vmatpush1.msra.mxu0 0.0
  %316 = vmatprep.subr.mxu0 0.0
  %317 = vmatpush1.msra.mxu0 0.0
  %318 = vmatprep.subr.mxu0 0.0
  %319 = vmatpush1.msra.mxu0 0.0
  %320 = vmatprep.subr.mxu0 0.0
  %321 = vmatpush1.msra.mxu0 0.0
  %322 = vmatprep.subr.mxu0 0.0
  %323 = vmatpush1.msra.mxu0 0.0
  %324 = vmatprep.subr.mxu0 0.0
  %325 = vmatpush1.msra.mxu0 0.0
  %326 = vmatprep.mubr.f32.mxu0 0.0
  %327 = vmatmul.mubr.f32.gmra.mrb[0].mxu0 %v215
  %v328 = vpop.f32.mrb[0].mxu0
  %v329 = vadd.f32 0.0, %v328
  %v330 = vpop.f32.mrb[0].mxu0
  %331 = vmatprep.mubr.f32.mxu0 0.0
  %332 = vmatmul.mubr.f32.gmra.mrb[0].mxu0 %v218
  %v333 = vpop.f32.mrb[0].mxu0
  %v334 = vadd.f32 0.0, %v333
  %v335 = vpop.f32.mrb[0].mxu0
  %336 = vmatprep.mubr.f32.mxu0 0.0
  %337 = vmatmul.mubr.f32.gmra.mrb[0].mxu0 %v221
  %v338 = vpop.f32.mrb[0].mxu0
  %v339 = vadd.f32 0.0, %v338
  %v340 = vpop.f32.mrb[0].mxu0
  %341 = vmatprep.mubr.f32.mxu0 0.0
  %342 = vmatmul.mubr.f32.gmra.mrb[0].mxu0 %v224
  %v343 = vpop.f32.mrb[0].mxu0
  %v344 = vadd.f32 0.0, %v343
  %v345 = vpop.f32.mrb[0].mxu0
  %346 = vmatprep.mubr.f32.mxu0 0.0
  %347 = vmatmul.mubr.f32.gmra.mrb[0].mxu0 %v227
  %v348 = vpop.f32.mrb[0].mxu0
  %v349 = vadd.f32 0.0, %v348
  %v350 = vpop.f32.mrb[0].mxu0
  %351 = vmatprep.mubr.f32.mxu0 0.0
  %352 = vmatmul.mubr.f32.gmra.mrb[0].mxu0 %v230
  %v353 = vpop.f32.mrb[0].mxu0
  %v354 = vadd.f32 0.0, %v353
  %v355 = vpop.f32.mrb[0].mxu0
  %356 = vmatprep.mubr.f32.mxu0 0.0
  %357 = vmatmul.mubr.f32.gmra.mrb[0].mxu0 %v233
  %v358 = vpop.f32.mrb[0].mxu0
  %v359 = vadd.f32 0.0, %v358
  %v360 = vpop.f32.mrb[0].mxu0
  %361 = vmatprep.mubr.f32.mxu0 0.0
  %362 = vmatmul.mubr.f32.gmra.mrb[0].mxu0 %v236
  %v363 = vpop.f32.mrb[0].mxu0
  %v364 = vadd.f32 0.0, %v363
  %v365 = vpop.f32.mrb[0].mxu0
  %366 = vmatprep.mubr.f32.mxu0 0.0
  %367 = vmatmul.mubr.f32.gmra.mrb[0].mxu0 %v239
  %v368 = vpop.f32.mrb[0].mxu0
  %v369 = vadd.f32 0.0, %v368
  %v370 = vpop.f32.mrb[0].mxu0
  %371 = vmatprep.mubr.f32.mxu0 0.0
  %372 = vmatmul.mubr.f32.gmra.mrb[0].mxu0 %v242
  %v373 = vpop.f32.mrb[0].mxu0
  %v374 = vadd.f32 0.0, %v373
  %v375 = vpop.f32.mrb[0].mxu0
  %376 = vmatprep.mubr.f32.mxu0 0.0
  %377 = vmatmul.mubr.f32.gmra.mrb[0].mxu0 %v245
  %v378 = vpop.f32.mrb[0].mxu0
  %v379 = vadd.f32 0.0, %v378
  %v380 = vpop.f32.mrb[0].mxu0
  %381 = vmatprep.mubr.f32.mxu0 0.0
  %382 = vmatmul.mubr.f32.gmra.mrb[0].mxu0 %v248
  %v383 = vpop.f32.mrb[0].mxu0
  %v384 = vadd.f32 0.0, %v383
  %v385 = vpop.f32.mrb[0].mxu0
  %386 = vmatprep.mubr.f32.mxu0 0.0
  %387 = vmatmul.mubr.f32.gmra.mrb[0].mxu0 %v251
  %v388 = vpop.f32.mrb[0].mxu0
  %v389 = vadd.f32 0.0, %v388
  %v390 = vpop.f32.mrb[0].mxu0
  %391 = vmatprep.mubr.f32.mxu0 0.0
  %392 = vmatmul.mubr.f32.gmra.mrb[0].mxu0 %v254
  %v393 = vpop.f32.mrb[0].mxu0
  %v394 = vadd.f32 0.0, %v393
  %v395 = vpop.f32.mrb[0].mxu0
  %396 = vmatprep.mubr.f32.mxu0 0.0
  %397 = vmatmul.mubr.f32.gmra.mrb[0].mxu0 %v257
  %v398 = vpop.f32.mrb[0].mxu0
  %v399 = vadd.f32 0.0, %v398
  %v400 = vpop.f32.mrb[0].mxu0
  %401 = vmatprep.mubr.f32.mxu0 0.0
  %402 = vmatmul.mubr.f32.gmra.mrb[0].mxu0 %v260
  %v403 = vpop.f32.mrb[0].mxu0
  %v404 = vadd.f32 0.0, %v403
  %v405 = vpop.f32.mrb[0].mxu0
  %406 = vdwg.mxu0
  %v407 = vld [vmem:[%s0] sm:$0xff]
  %v408 = vld [vmem:[%s0 + $0x8] sm:$0xff]
  %v409 = vld [vmem:[%s0 + $0x10] sm:$0xff]
  %v410 = vld [vmem:[%s0 + $0x18] sm:$0xff]
  %v411 = vld [vmem:[%s0 + $0x20] sm:$0xff]
  %v412 = vld [vmem:[%s0 + $0x28] sm:$0xff]
  %v413 = vld [vmem:[%s0 + $0x30] sm:$0xff]
  %v414 = vld [vmem:[%s0 + $0x38] sm:$0xff]
  %v415 = vld [vmem:[%s0 + $0x40] sm:$0xff]
  %v416 = vld [vmem:[%s0 + $0x48] sm:$0xff]
  %v417 = vld [vmem:[%s0 + $0x50] sm:$0xff]
  %v418 = vld [vmem:[%s0 + $0x58] sm:$0xff]
  %v419 = vld [vmem:[%s0 + $0x60] sm:$0xff]
  %v420 = vld [vmem:[%s0 + $0x68] sm:$0xff]
  %v421 = vld [vmem:[%s0 + $0x70] sm:$0xff]
  %v422 = vld [vmem:[%s0 + $0x78] sm:$0xff]
  %v423 = vld [vmem:[%s3] sm:$0xff]
  %v424 = vld [vmem:[%s3 + $0x8] sm:$0xff]
  %v425 = vld [vmem:[%s3 + $0x10] sm:$0xff]
  %v426 = vld [vmem:[%s3 + $0x18] sm:$0xff]
  %v428 = vsel %vm213, %v407, 0
  %v431 = vsel %vm213, %v408, 0
  %v434 = vsel %vm213, %v409, 0
  %v437 = vsel %vm213, %v410, 0
  %v440 = vsel %vm213, %v411, 0
  %v443 = vsel %vm213, %v412, 0
  %v446 = vsel %vm213, %v413, 0
  %v449 = vsel %vm213, %v414, 0
  %v452 = vsel %vm213, %v415, 0
  %v455 = vsel %vm213, %v416, 0
  %v458 = vsel %vm213, %v417, 0
  %v461 = vsel %vm213, %v418, 0
  %v464 = vsel %vm213, %v419, 0
  %v467 = vsel %vm213, %v420, 0
  %v470 = vsel %vm213, %v421, 0
  %v473 = vsel %vm213, %v422, 0
  %475 = vmatprep.subr.mxu0 0.0
  %476 = vmatpush1.msra.mxu0 %v423
  %477 = vmatprep.subr.mxu0 0.0
  %478 = vmatpush1.msra.mxu0 %v424
  %479 = vmatprep.subr.mxu0 0.0
  %480 = vmatpush1.msra.mxu0 %v425
  %481 = vmatprep.subr.mxu0 0.0
  %482 = vmatpush1.msra.mxu0 %v426
  %483 = vmatprep.subr.mxu0 0.0
  %484 = vmatpush1.msra.mxu0 0.0
  %485 = vmatprep.subr.mxu0 0.0
  %486 = vmatpush1.msra.mxu0 0.0
  %487 = vmatprep.subr.mxu0 0.0
  %488 = vmatpush1.msra.mxu0 0.0
  %489 = vmatprep.subr.mxu0 0.0
  %490 = vmatpush1.msra.mxu0 0.0
  %491 = vmatprep.subr.mxu0 0.0
  %492 = vmatpush1.msra.mxu0 0.0
  %493 = vmatprep.subr.mxu0 0.0
  %494 = vmatpush1.msra.mxu0 0.0
  %495 = vmatprep.subr.mxu0 0.0
  %496 = vmatpush1.msra.mxu0 0.0
  %497 = vmatprep.subr.mxu0 0.0
  %498 = vmatpush1.msra.mxu0 0.0
  %499 = vmatprep.subr.mxu0 0.0
  %500 = vmatpush1.msra.mxu0 0.0
  %501 = vmatprep.subr.mxu0 0.0
  %502 = vmatpush1.msra.mxu0 0.0
  %503 = vmatprep.subr.mxu0 0.0
  %504 = vmatpush1.msra.mxu0 0.0
  %505 = vmatprep.subr.mxu0 0.0
  %506 = vmatpush1.msra.mxu0 0.0
  %507 = vmatprep.subr.mxu0 0.0
  %508 = vmatpush1.msra.mxu0 0.0
  %509 = vmatprep.subr.mxu0 0.0
  %510 = vmatpush1.msra.mxu0 0.0
  %511 = vmatprep.subr.mxu0 0.0
  %512 = vmatpush1.msra.mxu0 0.0
  %513 = vmatprep.subr.mxu0 0.0
  %514 = vmatpush1.msra.mxu0 0.0
  %515 = vmatprep.subr.mxu0 0.0
  %516 = vmatpush1.msra.mxu0 0.0
  %517 = vmatprep.subr.mxu0 0.0
  %518 = vmatpush1.msra.mxu0 0.0
  %519 = vmatprep.subr.mxu0 0.0
  %520 = vmatpush1.msra.mxu0 0.0
  %521 = vmatprep.subr.mxu0 0.0
  %522 = vmatpush1.msra.mxu0 0.0
  %523 = vmatprep.subr.mxu0 0.0
  %524 = vmatpush1.msra.mxu0 0.0
  %525 = vmatprep.subr.mxu0 0.0
  %526 = vmatpush1.msra.mxu0 0.0
  %527 = vmatprep.subr.mxu0 0.0
  %528 = vmatpush1.msra.mxu0 0.0
  %529 = vmatprep.subr.mxu0 0.0
  %530 = vmatpush1.msra.mxu0 0.0
  %531 = vmatprep.subr.mxu0 0.0
  %532 = vmatpush1.msra.mxu0 0.0
  %533 = vmatprep.subr.mxu0 0.0
  %534 = vmatpush1.msra.mxu0 0.0
  %535 = vmatprep.subr.mxu0 0.0
  %536 = vmatpush1.msra.mxu0 0.0
  %537 = vmatprep.subr.mxu0 0.0
  %538 = vmatpush1.msra.mxu0 0.0
  %539 = vmatprep.mubr.f32.mxu0 0.0
  %540 = vmatmul.mubr.f32.gmra.mrb[0].mxu0 %v428
  %v541 = vpop.f32.mrb[0].mxu0
  %v542 = vadd.f32 %v329, %v541
  %v543 = vpop.f32.mrb[0].mxu0
  %544 = vmatprep.mubr.f32.mxu0 0.0
  %545 = vmatmul.mubr.f32.gmra.mrb[0].mxu0 %v431
  %v546 = vpop.f32.mrb[0].mxu0
  %v547 = vadd.f32 %v334, %v546
  %v548 = vpop.f32.mrb[0].mxu0
  %549 = vmatprep.mubr.f32.mxu0 0.0
  %550 = vmatmul.mubr.f32.gmra.mrb[0].mxu0 %v434
  %v551 = vpop.f32.mrb[0].mxu0
  %v552 = vadd.f32 %v339, %v551
  %v553 = vpop.f32.mrb[0].mxu0
  %554 = vmatprep.mubr.f32.mxu0 0.0
  %555 = vmatmul.mubr.f32.gmra.mrb[0].mxu0 %v437
  %v556 = vpop.f32.mrb[0].mxu0
  %v557 = vadd.f32 %v344, %v556
  %v558 = vpop.f32.mrb[0].mxu0
  %559 = vmatprep.mubr.f32.mxu0 0.0
  %560 = vmatmul.mubr.f32.gmra.mrb[0].mxu0 %v440
  %v561 = vpop.f32.mrb[0].mxu0
  %v562 = vadd.f32 %v349, %v561
  %v563 = vpop.f32.mrb[0].mxu0
  %564 = vmatprep.mubr.f32.mxu0 0.0
  %565 = vmatmul.mubr.f32.gmra.mrb[0].mxu0 %v443
  %v566 = vpop.f32.mrb[0].mxu0
  %v567 = vadd.f32 %v354, %v566
  %v568 = vpop.f32.mrb[0].mxu0
  %569 = vmatprep.mubr.f32.mxu0 0.0
  %570 = vmatmul.mubr.f32.gmra.mrb[0].mxu0 %v446
  %v571 = vpop.f32.mrb[0].mxu0
  %v572 = vadd.f32 %v359, %v571
  %v573 = vpop.f32.mrb[0].mxu0
  %574 = vmatprep.mubr.f32.mxu0 0.0
  %575 = vmatmul.mubr.f32.gmra.mrb[0].mxu0 %v449
  %v576 = vpop.f32.mrb[0].mxu0
  %v577 = vadd.f32 %v364, %v576
  %v578 = vpop.f32.mrb[0].mxu0
  %579 = vmatprep.mubr.f32.mxu0 0.0
  %580 = vmatmul.mubr.f32.gmra.mrb[0].mxu0 %v452
  %v581 = vpop.f32.mrb[0].mxu0
  %v582 = vadd.f32 %v369, %v581
  %v583 = vpop.f32.mrb[0].mxu0
  %584 = vmatprep.mubr.f32.mxu0 0.0
  %585 = vmatmul.mubr.f32.gmra.mrb[0].mxu0 %v455
  %v586 = vpop.f32.mrb[0].mxu0
  %v587 = vadd.f32 %v374, %v586
  %v588 = vpop.f32.mrb[0].mxu0
  %589 = vmatprep.mubr.f32.mxu0 0.0
  %590 = vmatmul.mubr.f32.gmra.mrb[0].mxu0 %v458
  %v591 = vpop.f32.mrb[0].mxu0
  %v592 = vadd.f32 %v379, %v591
  %v593 = vpop.f32.mrb[0].mxu0
  %594 = vmatprep.mubr.f32.mxu0 0.0
  %595 = vmatmul.mubr.f32.gmra.mrb[0].mxu0 %v461
  %v596 = vpop.f32.mrb[0].mxu0
  %v597 = vadd.f32 %v384, %v596
  %v598 = vpop.f32.mrb[0].mxu0
  %599 = vmatprep.mubr.f32.mxu0 0.0
  %600 = vmatmul.mubr.f32.gmra.mrb[0].mxu0 %v464
  %v601 = vpop.f32.mrb[0].mxu0
  %v602 = vadd.f32 %v389, %v601
  %v603 = vpop.f32.mrb[0].mxu0
  %604 = vmatprep.mubr.f32.mxu0 0.0
  %605 = vmatmul.mubr.f32.gmra.mrb[0].mxu0 %v467
  %v606 = vpop.f32.mrb[0].mxu0
  %v607 = vadd.f32 %v394, %v606
  %v608 = vpop.f32.mrb[0].mxu0
  %609 = vmatprep.mubr.f32.mxu0 0.0
  %610 = vmatmul.mubr.f32.gmra.mrb[0].mxu0 %v470
  %v611 = vpop.f32.mrb[0].mxu0
  %v612 = vadd.f32 %v399, %v611
  %v613 = vpop.f32.mrb[0].mxu0
  %614 = vmatprep.mubr.f32.mxu0 0.0
  %615 = vmatmul.mubr.f32.gmra.mrb[0].mxu0 %v473
  %v616 = vpop.f32.mrb[0].mxu0
  %v617 = vadd.f32 %v404, %v616
  %v618 = vpop.f32.mrb[0].mxu0
  %619 = vdwg.mxu0
  %v620 = vld [vmem:[%s5] sm:$0x1]
  %v622 = vlaneseq
  %v623 = vshrl.u32 %v622, 7
  %v624 = vsub.s32 0, %v623
  %v625 = vrot.slane %v620, %v624
  %v627 = vadd.f32 %v542, %v625
  %v628 = vadd.f32 %v547, %v625
  %v629 = vadd.f32 %v552, %v625
  %v630 = vadd.f32 %v557, %v625
  %v631 = vadd.f32 %v562, %v625
  %v632 = vadd.f32 %v567, %v625
  %v633 = vadd.f32 %v572, %v625
  %v634 = vadd.f32 %v577, %v625
  %v635 = vadd.f32 %v582, %v625
  %v636 = vadd.f32 %v587, %v625
  %v637 = vadd.f32 %v592, %v625
  %v638 = vadd.f32 %v597, %v625
  %v639 = vadd.f32 %v602, %v625
  %v640 = vadd.f32 %v607, %v625
  %v641 = vadd.f32 %v612, %v625
  %v642 = vadd.f32 %v617, %v625
  %v643 = vmul.f32 %v627, %v627
  %v644 = vmul.f32 %v628, %v628
  %v645 = vmul.f32 %v629, %v629
  %v646 = vmul.f32 %v630, %v630
  %v647 = vmul.f32 %v631, %v631
  %v648 = vmul.f32 %v632, %v632
  %v649 = vmul.f32 %v633, %v633
  %v650 = vmul.f32 %v634, %v634
  %v651 = vmul.f32 %v635, %v635
  %v652 = vmul.f32 %v636, %v636
  %v653 = vmul.f32 %v637, %v637
  %v654 = vmul.f32 %v638, %v638
  %v655 = vmul.f32 %v639, %v639
  %v656 = vmul.f32 %v640, %v640
  %v657 = vmul.f32 %v641, %v641
  %v658 = vmul.f32 %v642, %v642
  %v659 = vsel %vm213, %v643, 0.0
  %660 = vadd.xlane.f32.xlu0 %v659
  %v661 = vpop.xlane.xlu0 %660
  %v662 = vsel %vm213, %v644, 0.0
  %663 = vadd.xlane.f32.xlu0 %v662
  %v664 = vpop.xlane.xlu0 %663
  %v665 = vsel %vm213, %v645, 0.0
  %666 = vadd.xlane.f32.xlu0 %v665
  %v667 = vpop.xlane.xlu0 %666
  %v668 = vsel %vm213, %v646, 0.0
  %669 = vadd.xlane.f32.xlu0 %v668
  %v670 = vpop.xlane.xlu0 %669
  %v671 = vsel %vm213, %v647, 0.0
  %672 = vadd.xlane.f32.xlu0 %v671
  %v673 = vpop.xlane.xlu0 %672
  %v674 = vsel %vm213, %v648, 0.0
  %675 = vadd.xlane.f32.xlu0 %v674
  %v676 = vpop.xlane.xlu0 %675
  %v677 = vsel %vm213, %v649, 0.0
  %678 = vadd.xlane.f32.xlu0 %v677
  %v679 = vpop.xlane.xlu0 %678
  %v680 = vsel %vm213, %v650, 0.0
  %681 = vadd.xlane.f32.xlu0 %v680
  %v682 = vpop.xlane.xlu0 %681
  %v683 = vsel %vm213, %v651, 0.0
  %684 = vadd.xlane.f32.xlu0 %v683
  %v685 = vpop.xlane.xlu0 %684
  %v686 = vsel %vm213, %v652, 0.0
  %687 = vadd.xlane.f32.xlu0 %v686
  %v688 = vpop.xlane.xlu0 %687
  %v689 = vsel %vm213, %v653, 0.0
  %690 = vadd.xlane.f32.xlu0 %v689
  %v691 = vpop.xlane.xlu0 %690
  %v692 = vsel %vm213, %v654, 0.0
  %693 = vadd.xlane.f32.xlu0 %v692
  %v694 = vpop.xlane.xlu0 %693
  %v695 = vsel %vm213, %v655, 0.0
  %696 = vadd.xlane.f32.xlu0 %v695
  %v697 = vpop.xlane.xlu0 %696
  %v698 = vsel %vm213, %v656, 0.0
  %699 = vadd.xlane.f32.xlu0 %v698
  %v700 = vpop.xlane.xlu0 %699
  %v701 = vsel %vm213, %v657, 0.0
  %702 = vadd.xlane.f32.xlu0 %v701
  %v703 = vpop.xlane.xlu0 %702
  %v704 = vsel %vm213, %v658, 0.0
  %705 = vadd.xlane.f32.xlu0 %v704
  %v706 = vpop.xlane.xlu0 %705
  %v707 = vmax.f32 %v661, 1e-24
  %v708 = vmax.f32 %v664, 1e-24
  %v709 = vmax.f32 %v667, 1e-24
  %v710 = vmax.f32 %v670, 1e-24
  %v711 = vmax.f32 %v673, 1e-24
  %v712 = vmax.f32 %v676, 1e-24
  %v713 = vmax.f32 %v679, 1e-24
  %v714 = vmax.f32 %v682, 1e-24
  %v715 = vmax.f32 %v685, 1e-24
  %v716 = vmax.f32 %v688, 1e-24
  %v717 = vmax.f32 %v691, 1e-24
  %v718 = vmax.f32 %v694, 1e-24
  %v719 = vmax.f32 %v697, 1e-24
  %v720 = vmax.f32 %v700, 1e-24
  %v721 = vmax.f32 %v703, 1e-24
  %v722 = vmax.f32 %v706, 1e-24
  %v723 = vrsqrt.pop %v707
  %v724 = vrsqrt.pop %v708
  %v725 = vrsqrt.pop %v709
  %v726 = vrsqrt.pop %v710
  %v727 = vrsqrt.pop %v711
  %v728 = vrsqrt.pop %v712
  %v729 = vrsqrt.pop %v713
  %v730 = vrsqrt.pop %v714
  %v731 = vrsqrt.pop %v715
  %v732 = vrsqrt.pop %v716
  %v733 = vrsqrt.pop %v717
  %v734 = vrsqrt.pop %v718
  %v735 = vrsqrt.pop %v719
  %v736 = vrsqrt.pop %v720
  %v737 = vrsqrt.pop %v721
  %v738 = vrsqrt.pop %v722
  %v739 = vmul.f32 %v627, %v723
  %v740 = vmul.f32 %v628, %v724
  %v741 = vmul.f32 %v629, %v725
  %v742 = vmul.f32 %v630, %v726
  %v743 = vmul.f32 %v631, %v727
  %v744 = vmul.f32 %v632, %v728
  %v745 = vmul.f32 %v633, %v729
  %v746 = vmul.f32 %v634, %v730
  %v747 = vmul.f32 %v635, %v731
  %v748 = vmul.f32 %v636, %v732
  %v749 = vmul.f32 %v637, %v733
  %v750 = vmul.f32 %v638, %v734
  %v751 = vmul.f32 %v639, %v735
  %v752 = vmul.f32 %v640, %v736
  %v753 = vmul.f32 %v641, %v737
  %v754 = vmul.f32 %v642, %v738
  %vm755 = vcmp.ge.f32.partialorder %v739, 0.0
  %vm756 = vcmp.ge.f32.partialorder %v740, 0.0
  %vm757 = vcmp.ge.f32.partialorder %v741, 0.0
  %vm758 = vcmp.ge.f32.partialorder %v742, 0.0
  %vm759 = vcmp.ge.f32.partialorder %v743, 0.0
  %vm760 = vcmp.ge.f32.partialorder %v744, 0.0
  %vm761 = vcmp.ge.f32.partialorder %v745, 0.0
  %vm762 = vcmp.ge.f32.partialorder %v746, 0.0
  %vm763 = vcmp.ge.f32.partialorder %v747, 0.0
  %vm764 = vcmp.ge.f32.partialorder %v748, 0.0
  %vm765 = vcmp.ge.f32.partialorder %v749, 0.0
  %vm766 = vcmp.ge.f32.partialorder %v750, 0.0
  %vm767 = vcmp.ge.f32.partialorder %v751, 0.0
  %vm768 = vcmp.ge.f32.partialorder %v752, 0.0
  %vm769 = vcmp.ge.f32.partialorder %v753, 0.0
  %vm770 = vcmp.ge.f32.partialorder %v754, 0.0
  %v771 = vmul.f32 %v739, 0.01
  %v772 = vmul.f32 %v740, 0.01
  %v773 = vmul.f32 %v741, 0.01
  %v774 = vmul.f32 %v742, 0.01
  %v775 = vmul.f32 %v743, 0.01
  %v776 = vmul.f32 %v744, 0.01
  %v777 = vmul.f32 %v745, 0.01
  %v778 = vmul.f32 %v746, 0.01
  %v779 = vmul.f32 %v747, 0.01
  %v780 = vmul.f32 %v748, 0.01
  %v781 = vmul.f32 %v749, 0.01
  %v782 = vmul.f32 %v750, 0.01
  %v783 = vmul.f32 %v751, 0.01
  %v784 = vmul.f32 %v752, 0.01
  %v785 = vmul.f32 %v753, 0.01
  %v786 = vmul.f32 %v754, 0.01
  %v787 = vsel %vm755, %v739, %v771
  %v788 = vsel %vm756, %v740, %v772
  %v789 = vsel %vm757, %v741, %v773
  %v790 = vsel %vm758, %v742, %v774
  %v791 = vsel %vm759, %v743, %v775
  %v792 = vsel %vm760, %v744, %v776
  %v793 = vsel %vm761, %v745, %v777
  %v794 = vsel %vm762, %v746, %v778
  %v795 = vsel %vm763, %v747, %v779
  %v796 = vsel %vm764, %v748, %v780
  %v797 = vsel %vm765, %v749, %v781
  %v798 = vsel %vm766, %v750, %v782
  %v799 = vsel %vm767, %v751, %v783
  %v800 = vsel %vm768, %v752, %v784
  %v801 = vsel %vm769, %v753, %v785
  %v802 = vsel %vm770, %v754, %v786
  %803 = vst.msk [vmem:[%s6] sm:$0xff] %vm213, %v787
  %804 = vst.msk [vmem:[%s6 + $0x8] sm:$0xff] %vm213, %v788
  %805 = vst.msk [vmem:[%s6 + $0x10] sm:$0xff] %vm213, %v789
  %806 = vst.msk [vmem:[%s6 + $0x18] sm:$0xff] %vm213, %v790
  %807 = vst.msk [vmem:[%s6 + $0x20] sm:$0xff] %vm213, %v791
  %808 = vst.msk [vmem:[%s6 + $0x28] sm:$0xff] %vm213, %v792
  %809 = vst.msk [vmem:[%s6 + $0x30] sm:$0xff] %vm213, %v793
  %810 = vst.msk [vmem:[%s6 + $0x38] sm:$0xff] %vm213, %v794
  %811 = vst.msk [vmem:[%s6 + $0x40] sm:$0xff] %vm213, %v795
  %812 = vst.msk [vmem:[%s6 + $0x48] sm:$0xff] %vm213, %v796
  %813 = vst.msk [vmem:[%s6 + $0x50] sm:$0xff] %vm213, %v797
  %814 = vst.msk [vmem:[%s6 + $0x58] sm:$0xff] %vm213, %v798
  %815 = vst.msk [vmem:[%s6 + $0x60] sm:$0xff] %vm213, %v799
  %816 = vst.msk [vmem:[%s6 + $0x68] sm:$0xff] %vm213, %v800
  %817 = vst.msk [vmem:[%s6 + $0x70] sm:$0xff] %vm213, %v801
  %818 = vst.msk [vmem:[%s6 + $0x78] sm:$0xff] %vm213, %v802
  // Predicated region
  $region26: #{daftstone_sur_forward.8} parent=0 // pred_check
    _
  $region27: #{daftstone_sur_forward.8} parent=0 // pred_check_branch
    %820 = sbr.rel (0) target = $region29
  $region28: #{daftstone_sur_forward.8} parent=0 // pred_region
    _
  $region29: #{daftstone_sur_forward.8} parent=0 // pred_fallthru
    _
  // Predicated region
  $region30: #{daftstone_sur_forward.8} parent=0 // pred_check
    _
  $region31: #{daftstone_sur_forward.8} parent=0 // pred_check_branch
    %822 = sbr.rel (0) target = $region33
  $region32: #{daftstone_sur_forward.8} parent=0 // pred_region
    _
  $region33: #{daftstone_sur_forward.8} parent=0 // pred_fallthru
    _

// kernel: daftstone_sur_forward.7
$region0: #{daftstone_sur_forward.7}
  #allocation0 [shape = 'u32[]', space=smem, size = 0x4, offset = 0x4, fixed_abs, tag = 'smem constant byte address 0x4 - core index']
  #allocation1 [shape = 'u32[144,128]{1,0:T(1,128)}', space=vmem, size = 0x12000, scoped, tag = 'internal scratch']
  %s0 = inlined_call_operand.vmem [shape: f32[128,32], index: 0, kind: input, shape index: {}, may-alias: {0,1}]
  %s1 = inlined_call_operand.vmem [shape: f32[128,32], index: 1, kind: input, shape index: {}, may-alias: {0,1}]
  %s2 = inlined_call_operand.vmem [shape: bf16[128,128], index: 2, kind: input, shape index: {}]
  %s3 = inlined_call_operand.vmem [shape: f32[32,32], index: 3, kind: input, shape index: {}]
  %s4 = inlined_call_operand.vmem [shape: f32[32,32], index: 4, kind: input, shape index: {}]
  %s5 = inlined_call_operand.vmem [shape: f32[1,32], index: 5, kind: input, shape index: {}]
  %s6 = inlined_call_operand.vmem [shape: f32[128,32], index: 6, kind: output, shape index: {}]
  %s7 = sld [smem:[#allocation0]]
  $region34: #{daftstone_sur_forward.7} parent=0
    _
  %s9 = ssub.s32 1, %s7
  %s10 = scalar_select 0, %s9, %s7
  // Predicated region
  $region2: #{daftstone_sur_forward.7} parent=0 // pred_check
    _
  $region3: #{daftstone_sur_forward.7} parent=0 // pred_check_branch
    %12 = sbr.rel (0) target = $region5
  $region4: #{daftstone_sur_forward.7} parent=0 // pred_region
    _
  $region5: #{daftstone_sur_forward.7} parent=0 // pred_fallthru
    _
  // Predicated region
  $region6: #{daftstone_sur_forward.7} parent=0 // pred_check
    _
  $region7: #{daftstone_sur_forward.7} parent=0 // pred_check_branch
    %14 = sbr.rel (0) target = $region9
  $region8: #{daftstone_sur_forward.7} parent=0 // pred_region
    _
  $region9: #{daftstone_sur_forward.7} parent=0 // pred_fallthru
    _
  // Predicated region
  $region10: #{daftstone_sur_forward.7} parent=0 // pred_check
    _
  $region11: #{daftstone_sur_forward.7} parent=0 // pred_check_branch
    %16 = sbr.rel (0) target = $region13
  $region12: #{daftstone_sur_forward.7} parent=0 // pred_region
    _
  $region13: #{daftstone_sur_forward.7} parent=0 // pred_fallthru
    _
  // Predicated region
  $region14: #{daftstone_sur_forward.7} parent=0 // pred_check
    _
  $region15: #{daftstone_sur_forward.7} parent=0 // pred_check_branch
    %18 = sbr.rel (0) target = $region17
  $region16: #{daftstone_sur_forward.7} parent=0 // pred_region
    _
  $region17: #{daftstone_sur_forward.7} parent=0 // pred_fallthru
    _
  // Predicated region
  $region18: #{daftstone_sur_forward.7} parent=0 // pred_check
    _
  $region19: #{daftstone_sur_forward.7} parent=0 // pred_check_branch
    %20 = sbr.rel (0) target = $region21
  $region20: #{daftstone_sur_forward.7} parent=0 // pred_region
    _
  $region21: #{daftstone_sur_forward.7} parent=0 // pred_fallthru
    _
  // Predicated region
  $region22: #{daftstone_sur_forward.7} parent=0 // pred_check
    _
  $region23: #{daftstone_sur_forward.7} parent=0 // pred_check_branch
    %22 = sbr.rel (0) target = $region25
  $region24: #{daftstone_sur_forward.7} parent=0 // pred_region
    _
  $region25: #{daftstone_sur_forward.7} parent=0 // pred_fallthru
    _
  %v24 = vld [vmem:[%s2] sm:$0xf]
  %v25 = vld [vmem:[%s2 + $0x4] sm:$0xf]
  %v26 = vld [vmem:[%s2 + $0x8] sm:$0xf]
  %v27 = vld [vmem:[%s2 + $0xc] sm:$0xf]
  %v28 = vld [vmem:[%s2 + $0x10] sm:$0xf]
  %v29 = vld [vmem:[%s2 + $0x14] sm:$0xf]
  %v30 = vld [vmem:[%s2 + $0x18] sm:$0xf]
  %v31 = vld [vmem:[%s2 + $0x1c] sm:$0xf]
  %v32 = vld [vmem:[%s2 + $0x20] sm:$0xf]
  %v33 = vld [vmem:[%s2 + $0x24] sm:$0xf]
  %v34 = vld [vmem:[%s2 + $0x28] sm:$0xf]
  %v35 = vld [vmem:[%s2 + $0x2c] sm:$0xf]
  %v36 = vld [vmem:[%s2 + $0x30] sm:$0xf]
  %v37 = vld [vmem:[%s2 + $0x34] sm:$0xf]
  %v38 = vld [vmem:[%s2 + $0x38] sm:$0xf]
  %v39 = vld [vmem:[%s2 + $0x3c] sm:$0xf]
  %v40 = vld [vmem:[%s1] sm:$0xff]
  %v41 = vld [vmem:[%s1 + $0x8] sm:$0xff]
  %v42 = vld [vmem:[%s1 + $0x10] sm:$0xff]
  %v43 = vld [vmem:[%s1 + $0x18] sm:$0xff]
  %v44 = vld [vmem:[%s1 + $0x20] sm:$0xff]
  %v45 = vld [vmem:[%s1 + $0x28] sm:$0xff]
  %v46 = vld [vmem:[%s1 + $0x30] sm:$0xff]
  %v47 = vld [vmem:[%s1 + $0x38] sm:$0xff]
  %v48 = vld [vmem:[%s1 + $0x40] sm:$0xff]
  %v49 = vld [vmem:[%s1 + $0x48] sm:$0xff]
  %v50 = vld [vmem:[%s1 + $0x50] sm:$0xff]
  %v51 = vld [vmem:[%s1 + $0x58] sm:$0xff]
  %v52 = vld [vmem:[%s1 + $0x60] sm:$0xff]
  %v53 = vld [vmem:[%s1 + $0x68] sm:$0xff]
  %v54 = vld [vmem:[%s1 + $0x70] sm:$0xff]
  %v55 = vld [vmem:[%s1 + $0x78] sm:$0xff]
  %v56 = vpack.c.bf16 %v41, %v40
  %v57 = vpack.c.bf16 %v43, %v42
  %v58 = vpack.c.bf16 %v45, %v44
  %v59 = vpack.c.bf16 %v47, %v46
  %v60 = vpack.c.bf16 %v49, %v48
  %v61 = vpack.c.bf16 %v51, %v50
  %v62 = vpack.c.bf16 %v53, %v52
  %v63 = vpack.c.bf16 %v55, %v54
  %v80 = vunpack.c.l.b16 %v24
  %v81 = vunpack.c.l.b16 %v25
  %v82 = vunpack.c.l.b16 %v26
  %v83 = vunpack.c.l.b16 %v27
  %v84 = vunpack.c.l.b16 %v28
  %v85 = vunpack.c.l.b16 %v29
  %v86 = vunpack.c.l.b16 %v30
  %v87 = vunpack.c.l.b16 %v31
  %v88 = vunpack.c.l.b16 %v32
  %v89 = vunpack.c.l.b16 %v33
  %v90 = vunpack.c.l.b16 %v34
  %v91 = vunpack.c.l.b16 %v35
  %v92 = vunpack.c.l.b16 %v36
  %v93 = vunpack.c.l.b16 %v37
  %v94 = vunpack.c.l.b16 %v38
  %v95 = vunpack.c.l.b16 %v39
  %v96 = vpack.c.b16 %v81, %v80
  %v97 = vpack.c.b16 %v83, %v82
  %v98 = vpack.c.b16 %v85, %v84
  %v99 = vpack.c.b16 %v87, %v86
  %v100 = vpack.c.b16 %v89, %v88
  %v101 = vpack.c.b16 %v91, %v90
  %v102 = vpack.c.b16 %v93, %v92
  %v103 = vpack.c.b16 %v95, %v94
  %112 = vmatprep.subr.bf16.mxu0 0
  %113 = vmatpush1.bf16.msra.mxu0 %v56
  %114 = vmatprep.subr.bf16.mxu0 0
  %115 = vmatpush1.bf16.msra.mxu0 %v57
  %116 = vmatprep.subr.bf16.mxu0 0
  %117 = vmatpush1.bf16.msra.mxu0 %v58
  %118 = vmatprep.subr.bf16.mxu0 0
  %119 = vmatpush1.bf16.msra.mxu0 %v59
  %120 = vmatprep.subr.bf16.mxu0 0
  %121 = vmatpush1.bf16.msra.mxu0 %v60
  %122 = vmatprep.subr.bf16.mxu0 0
  %123 = vmatpush1.bf16.msra.mxu0 %v61
  %124 = vmatprep.subr.bf16.mxu0 0
  %125 = vmatpush1.bf16.msra.mxu0 %v62
  %126 = vmatprep.subr.bf16.mxu0 0
  %127 = vmatpush1.bf16.msra.mxu0 %v63
  %128 = vmatprep.subr.bf16.mxu0 0
  %129 = vmatpush1.bf16.msra.mxu0 0
  %130 = vmatprep.subr.bf16.mxu0 0
  %131 = vmatpush1.bf16.msra.mxu0 0
  %132 = vmatprep.subr.bf16.mxu0 0
  %133 = vmatpush1.bf16.msra.mxu0 0
  %134 = vmatprep.subr.bf16.mxu0 0
  %135 = vmatpush1.bf16.msra.mxu0 0
  %136 = vmatprep.subr.bf16.mxu0 0
  %137 = vmatpush1.bf16.msra.mxu0 0
  %138 = vmatprep.subr.bf16.mxu0 0
  %139 = vmatpush1.bf16.msra.mxu0 0
  %140 = vmatprep.subr.bf16.mxu0 0
  %141 = vmatpush1.bf16.msra.mxu0 0
  %142 = vmatprep.subr.bf16.mxu0 0
  %143 = vmatpush1.bf16.msra.mxu0 0
  %144 = vmatprep.mubr.bf16.mxu0 0
  %145 = vmatmul.mubr.bf16.gmra.mrb[0].mxu0 %v96
  %v146 = vpop.f32.mrb[0].mxu0
  %v147 = vadd.f32 0.0, %v146
  %v148 = vpop.f32.mrb[0].mxu0
  %v149 = vpop.f32.mrb[0].mxu0
  %v150 = vadd.f32 0.0, %v149
  %v151 = vpop.f32.mrb[0].mxu0
  %152 = vmatprep.mubr.bf16.mxu0 0
  %153 = vmatmul.mubr.bf16.gmra.mrb[0].mxu0 %v97
  %v154 = vpop.f32.mrb[0].mxu0
  %v155 = vadd.f32 0.0, %v154
  %v156 = vpop.f32.mrb[0].mxu0
  %v157 = vpop.f32.mrb[0].mxu0
  %v158 = vadd.f32 0.0, %v157
  %v159 = vpop.f32.mrb[0].mxu0
  %160 = vmatprep.mubr.bf16.mxu0 0
  %161 = vmatmul.mubr.bf16.gmra.mrb[0].mxu0 %v98
  %v162 = vpop.f32.mrb[0].mxu0
  %v163 = vadd.f32 0.0, %v162
  %v164 = vpop.f32.mrb[0].mxu0
  %v165 = vpop.f32.mrb[0].mxu0
  %v166 = vadd.f32 0.0, %v165
  %v167 = vpop.f32.mrb[0].mxu0
  %168 = vmatprep.mubr.bf16.mxu0 0
  %169 = vmatmul.mubr.bf16.gmra.mrb[0].mxu0 %v99
  %v170 = vpop.f32.mrb[0].mxu0
  %v171 = vadd.f32 0.0, %v170
  %v172 = vpop.f32.mrb[0].mxu0
  %v173 = vpop.f32.mrb[0].mxu0
  %v174 = vadd.f32 0.0, %v173
  %v175 = vpop.f32.mrb[0].mxu0
  %176 = vmatprep.mubr.bf16.mxu0 0
  %177 = vmatmul.mubr.bf16.gmra.mrb[0].mxu0 %v100
  %v178 = vpop.f32.mrb[0].mxu0
  %v179 = vadd.f32 0.0, %v178
  %v180 = vpop.f32.mrb[0].mxu0
  %v181 = vpop.f32.mrb[0].mxu0
  %v182 = vadd.f32 0.0, %v181
  %v183 = vpop.f32.mrb[0].mxu0
  %184 = vmatprep.mubr.bf16.mxu0 0
  %185 = vmatmul.mubr.bf16.gmra.mrb[0].mxu0 %v101
  %v186 = vpop.f32.mrb[0].mxu0
  %v187 = vadd.f32 0.0, %v186
  %v188 = vpop.f32.mrb[0].mxu0
  %v189 = vpop.f32.mrb[0].mxu0
  %v190 = vadd.f32 0.0, %v189
  %v191 = vpop.f32.mrb[0].mxu0
  %192 = vmatprep.mubr.bf16.mxu0 0
  %193 = vmatmul.mubr.bf16.gmra.mrb[0].mxu0 %v102
  %v194 = vpop.f32.mrb[0].mxu0
  %v195 = vadd.f32 0.0, %v194
  %v196 = vpop.f32.mrb[0].mxu0
  %v197 = vpop.f32.mrb[0].mxu0
  %v198 = vadd.f32 0.0, %v197
  %v199 = vpop.f32.mrb[0].mxu0
  %200 = vmatprep.mubr.bf16.mxu0 0
  %201 = vmatmul.mubr.bf16.gmra.mrb[0].mxu0 %v103
  %v202 = vpop.f32.mrb[0].mxu0
  %v203 = vadd.f32 0.0, %v202
  %v204 = vpop.f32.mrb[0].mxu0
  %v205 = vpop.f32.mrb[0].mxu0
  %v206 = vadd.f32 0.0, %v205
  %v207 = vpop.f32.mrb[0].mxu0
  %208 = vdwg.mxu0
  %v209 = vld [vmem:[%s4] sm:$0xff]
  %v210 = vld [vmem:[%s4 + $0x8] sm:$0xff]
  %v211 = vld [vmem:[%s4 + $0x10] sm:$0xff]
  %v212 = vld [vmem:[%s4 + $0x18] sm:$0xff]
  %vm213 = vcmask 261120
  %v215 = vsel %vm213, %v147, 0
  %v218 = vsel %vm213, %v150, 0
  %v221 = vsel %vm213, %v155, 0
  %v224 = vsel %vm213, %v158, 0
  %v227 = vsel %vm213, %v163, 0
  %v230 = vsel %vm213, %v166, 0
  %v233 = vsel %vm213, %v171, 0
  %v236 = vsel %vm213, %v174, 0
  %v239 = vsel %vm213, %v179, 0
  %v242 = vsel %vm213, %v182, 0
  %v245 = vsel %vm213, %v187, 0
  %v248 = vsel %vm213, %v190, 0
  %v251 = vsel %vm213, %v195, 0
  %v254 = vsel %vm213, %v198, 0
  %v257 = vsel %vm213, %v203, 0
  %v260 = vsel %vm213, %v206, 0
  %262 = vmatprep.subr.mxu0 0.0
  %263 = vmatpush1.msra.mxu0 %v209
  %264 = vmatprep.subr.mxu0 0.0
  %265 = vmatpush1.msra.mxu0 %v210
  %266 = vmatprep.subr.mxu0 0.0
  %267 = vmatpush1.msra.mxu0 %v211
  %268 = vmatprep.subr.mxu0 0.0
  %269 = vmatpush1.msra.mxu0 %v212
  %270 = vmatprep.subr.mxu0 0.0
  %271 = vmatpush1.msra.mxu0 0.0
  %272 = vmatprep.subr.mxu0 0.0
  %273 = vmatpush1.msra.mxu0 0.0
  %274 = vmatprep.subr.mxu0 0.0
  %275 = vmatpush1.msra.mxu0 0.0
  %276 = vmatprep.subr.mxu0 0.0
  %277 = vmatpush1.msra.mxu0 0.0
  %278 = vmatprep.subr.mxu0 0.0
  %279 = vmatpush1.msra.mxu0 0.0
  %280 = vmatprep.subr.mxu0 0.0
  %281 = vmatpush1.msra.mxu0 0.0
  %282 = vmatprep.subr.mxu0 0.0
  %283 = vmatpush1.msra.mxu0 0.0
  %284 = vmatprep.subr.mxu0 0.0
  %285 = vmatpush1.msra.mxu0 0.0
  %286 = vmatprep.subr.mxu0 0.0
  %287 = vmatpush1.msra.mxu0 0.0
  %288 = vmatprep.subr.mxu0 0.0
  %289 = vmatpush1.msra.mxu0 0.0
  %290 = vmatprep.subr.mxu0 0.0
  %291 = vmatpush1.msra.mxu0 0.0
  %292 = vmatprep.subr.mxu0 0.0
  %293 = vmatpush1.msra.mxu0 0.0
  %294 = vmatprep.subr.mxu0 0.0
  %295 = vmatpush1.msra.mxu0 0.0
  %296 = vmatprep.subr.mxu0 0.0
  %297 = vmatpush1.msra.mxu0 0.0
  %298 = vmatprep.subr.mxu0 0.0
  %299 = vmatpush1.msra.mxu0 0.0
  %300 = vmatprep.subr.mxu0 0.0
  %301 = vmatpush1.msra.mxu0 0.0
  %302 = vmatprep.subr.mxu0 0.0
  %303 = vmatpush1.msra.mxu0 0.0
  %304 = vmatprep.subr.mxu0 0.0
  %305 = vmatpush1.msra.mxu0 0.0
  %306 = vmatprep.subr.mxu0 0.0
  %307 = vmatpush1.msra.mxu0 0.0
  %308 = vmatprep.subr.mxu0 0.0
  %309 = vmatpush1.msra.mxu0 0.0
  %310 = vmatprep.subr.mxu0 0.0
  %311 = vmatpush1.msra.mxu0 0.0
  %312 = vmatprep.subr.mxu0 0.0
  %313 = vmatpush1.msra.mxu0 0.0
  %314 = vmatprep.subr.mxu0 0.0
  %315 = vmatpush1.msra.mxu0 0.0
  %316 = vmatprep.subr.mxu0 0.0
  %317 = vmatpush1.msra.mxu0 0.0
  %318 = vmatprep.subr.mxu0 0.0
  %319 = vmatpush1.msra.mxu0 0.0
  %320 = vmatprep.subr.mxu0 0.0
  %321 = vmatpush1.msra.mxu0 0.0
  %322 = vmatprep.subr.mxu0 0.0
  %323 = vmatpush1.msra.mxu0 0.0
  %324 = vmatprep.subr.mxu0 0.0
  %325 = vmatpush1.msra.mxu0 0.0
  %326 = vmatprep.mubr.f32.mxu0 0.0
  %327 = vmatmul.mubr.f32.gmra.mrb[0].mxu0 %v215
  %v328 = vpop.f32.mrb[0].mxu0
  %v329 = vadd.f32 0.0, %v328
  %v330 = vpop.f32.mrb[0].mxu0
  %331 = vmatprep.mubr.f32.mxu0 0.0
  %332 = vmatmul.mubr.f32.gmra.mrb[0].mxu0 %v218
  %v333 = vpop.f32.mrb[0].mxu0
  %v334 = vadd.f32 0.0, %v333
  %v335 = vpop.f32.mrb[0].mxu0
  %336 = vmatprep.mubr.f32.mxu0 0.0
  %337 = vmatmul.mubr.f32.gmra.mrb[0].mxu0 %v221
  %v338 = vpop.f32.mrb[0].mxu0
  %v339 = vadd.f32 0.0, %v338
  %v340 = vpop.f32.mrb[0].mxu0
  %341 = vmatprep.mubr.f32.mxu0 0.0
  %342 = vmatmul.mubr.f32.gmra.mrb[0].mxu0 %v224
  %v343 = vpop.f32.mrb[0].mxu0
  %v344 = vadd.f32 0.0, %v343
  %v345 = vpop.f32.mrb[0].mxu0
  %346 = vmatprep.mubr.f32.mxu0 0.0
  %347 = vmatmul.mubr.f32.gmra.mrb[0].mxu0 %v227
  %v348 = vpop.f32.mrb[0].mxu0
  %v349 = vadd.f32 0.0, %v348
  %v350 = vpop.f32.mrb[0].mxu0
  %351 = vmatprep.mubr.f32.mxu0 0.0
  %352 = vmatmul.mubr.f32.gmra.mrb[0].mxu0 %v230
  %v353 = vpop.f32.mrb[0].mxu0
  %v354 = vadd.f32 0.0, %v353
  %v355 = vpop.f32.mrb[0].mxu0
  %356 = vmatprep.mubr.f32.mxu0 0.0
  %357 = vmatmul.mubr.f32.gmra.mrb[0].mxu0 %v233
  %v358 = vpop.f32.mrb[0].mxu0
  %v359 = vadd.f32 0.0, %v358
  %v360 = vpop.f32.mrb[0].mxu0
  %361 = vmatprep.mubr.f32.mxu0 0.0
  %362 = vmatmul.mubr.f32.gmra.mrb[0].mxu0 %v236
  %v363 = vpop.f32.mrb[0].mxu0
  %v364 = vadd.f32 0.0, %v363
  %v365 = vpop.f32.mrb[0].mxu0
  %366 = vmatprep.mubr.f32.mxu0 0.0
  %367 = vmatmul.mubr.f32.gmra.mrb[0].mxu0 %v239
  %v368 = vpop.f32.mrb[0].mxu0
  %v369 = vadd.f32 0.0, %v368
  %v370 = vpop.f32.mrb[0].mxu0
  %371 = vmatprep.mubr.f32.mxu0 0.0
  %372 = vmatmul.mubr.f32.gmra.mrb[0].mxu0 %v242
  %v373 = vpop.f32.mrb[0].mxu0
  %v374 = vadd.f32 0.0, %v373
  %v375 = vpop.f32.mrb[0].mxu0
  %376 = vmatprep.mubr.f32.mxu0 0.0
  %377 = vmatmul.mubr.f32.gmra.mrb[0].mxu0 %v245
  %v378 = vpop.f32.mrb[0].mxu0
  %v379 = vadd.f32 0.0, %v378
  %v380 = vpop.f32.mrb[0].mxu0
  %381 = vmatprep.mubr.f32.mxu0 0.0
  %382 = vmatmul.mubr.f32.gmra.mrb[0].mxu0 %v248
  %v383 = vpop.f32.mrb[0].mxu0
  %v384 = vadd.f32 0.0, %v383
  %v385 = vpop.f32.mrb[0].mxu0
  %386 = vmatprep.mubr.f32.mxu0 0.0
  %387 = vmatmul.mubr.f32.gmra.mrb[0].mxu0 %v251
  %v388 = vpop.f32.mrb[0].mxu0
  %v389 = vadd.f32 0.0, %v388
  %v390 = vpop.f32.mrb[0].mxu0
  %391 = vmatprep.mubr.f32.mxu0 0.0
  %392 = vmatmul.mubr.f32.gmra.mrb[0].mxu0 %v254
  %v393 = vpop.f32.mrb[0].mxu0
  %v394 = vadd.f32 0.0, %v393
  %v395 = vpop.f32.mrb[0].mxu0
  %396 = vmatprep.mubr.f32.mxu0 0.0
  %397 = vmatmul.mubr.f32.gmra.mrb[0].mxu0 %v257
  %v398 = vpop.f32.mrb[0].mxu0
  %v399 = vadd.f32 0.0, %v398
  %v400 = vpop.f32.mrb[0].mxu0
  %401 = vmatprep.mubr.f32.mxu0 0.0
  %402 = vmatmul.mubr.f32.gmra.mrb[0].mxu0 %v260
  %v403 = vpop.f32.mrb[0].mxu0
  %v404 = vadd.f32 0.0, %v403
  %v405 = vpop.f32.mrb[0].mxu0
  %406 = vdwg.mxu0
  %v407 = vld [vmem:[%s0] sm:$0xff]
  %v408 = vld [vmem:[%s0 + $0x8] sm:$0xff]
  %v409 = vld [vmem:[%s0 + $0x10] sm:$0xff]
  %v410 = vld [vmem:[%s0 + $0x18] sm:$0xff]
  %v411 = vld [vmem:[%s0 + $0x20] sm:$0xff]
  %v412 = vld [vmem:[%s0 + $0x28] sm:$0xff]
  %v413 = vld [vmem:[%s0 + $0x30] sm:$0xff]
  %v414 = vld [vmem:[%s0 + $0x38] sm:$0xff]
  %v415 = vld [vmem:[%s0 + $0x40] sm:$0xff]
  %v416 = vld [vmem:[%s0 + $0x48] sm:$0xff]
  %v417 = vld [vmem:[%s0 + $0x50] sm:$0xff]
  %v418 = vld [vmem:[%s0 + $0x58] sm:$0xff]
  %v419 = vld [vmem:[%s0 + $0x60] sm:$0xff]
  %v420 = vld [vmem:[%s0 + $0x68] sm:$0xff]
  %v421 = vld [vmem:[%s0 + $0x70] sm:$0xff]
  %v422 = vld [vmem:[%s0 + $0x78] sm:$0xff]
  %v423 = vld [vmem:[%s3] sm:$0xff]
  %v424 = vld [vmem:[%s3 + $0x8] sm:$0xff]
  %v425 = vld [vmem:[%s3 + $0x10] sm:$0xff]
  %v426 = vld [vmem:[%s3 + $0x18] sm:$0xff]
  %v428 = vsel %vm213, %v407, 0
  %v431 = vsel %vm213, %v408, 0
  %v434 = vsel %vm213, %v409, 0
  %v437 = vsel %vm213, %v410, 0
  %v440 = vsel %vm213, %v411, 0
  %v443 = vsel %vm213, %v412, 0
  %v446 = vsel %vm213, %v413, 0
  %v449 = vsel %vm213, %v414, 0
  %v452 = vsel %vm213, %v415, 0
  %v455 = vsel %vm213, %v416, 0
  %v458 = vsel %vm213, %v417, 0
  %v461 = vsel %vm213, %v418, 0
  %v464 = vsel %vm213, %v419, 0
  %v467 = vsel %vm213, %v420, 0
  %v470 = vsel %vm213, %v421, 0
  %v473 = vsel %vm213, %v422, 0
  %475 = vmatprep.subr.mxu0 0.0
  %476 = vmatpush1.msra.mxu0 %v423
  %477 = vmatprep.subr.mxu0 0.0
  %478 = vmatpush1.msra.mxu0 %v424
  %479 = vmatprep.subr.mxu0 0.0
  %480 = vmatpush1.msra.mxu0 %v425
  %481 = vmatprep.subr.mxu0 0.0
  %482 = vmatpush1.msra.mxu0 %v426
  %483 = vmatprep.subr.mxu0 0.0
  %484 = vmatpush1.msra.mxu0 0.0
  %485 = vmatprep.subr.mxu0 0.0
  %486 = vmatpush1.msra.mxu0 0.0
  %487 = vmatprep.subr.mxu0 0.0
  %488 = vmatpush1.msra.mxu0 0.0
  %489 = vmatprep.subr.mxu0 0.0
  %490 = vmatpush1.msra.mxu0 0.0
  %491 = vmatprep.subr.mxu0 0.0
  %492 = vmatpush1.msra.mxu0 0.0
  %493 = vmatprep.subr.mxu0 0.0
  %494 = vmatpush1.msra.mxu0 0.0
  %495 = vmatprep.subr.mxu0 0.0
  %496 = vmatpush1.msra.mxu0 0.0
  %497 = vmatprep.subr.mxu0 0.0
  %498 = vmatpush1.msra.mxu0 0.0
  %499 = vmatprep.subr.mxu0 0.0
  %500 = vmatpush1.msra.mxu0 0.0
  %501 = vmatprep.subr.mxu0 0.0
  %502 = vmatpush1.msra.mxu0 0.0
  %503 = vmatprep.subr.mxu0 0.0
  %504 = vmatpush1.msra.mxu0 0.0
  %505 = vmatprep.subr.mxu0 0.0
  %506 = vmatpush1.msra.mxu0 0.0
  %507 = vmatprep.subr.mxu0 0.0
  %508 = vmatpush1.msra.mxu0 0.0
  %509 = vmatprep.subr.mxu0 0.0
  %510 = vmatpush1.msra.mxu0 0.0
  %511 = vmatprep.subr.mxu0 0.0
  %512 = vmatpush1.msra.mxu0 0.0
  %513 = vmatprep.subr.mxu0 0.0
  %514 = vmatpush1.msra.mxu0 0.0
  %515 = vmatprep.subr.mxu0 0.0
  %516 = vmatpush1.msra.mxu0 0.0
  %517 = vmatprep.subr.mxu0 0.0
  %518 = vmatpush1.msra.mxu0 0.0
  %519 = vmatprep.subr.mxu0 0.0
  %520 = vmatpush1.msra.mxu0 0.0
  %521 = vmatprep.subr.mxu0 0.0
  %522 = vmatpush1.msra.mxu0 0.0
  %523 = vmatprep.subr.mxu0 0.0
  %524 = vmatpush1.msra.mxu0 0.0
  %525 = vmatprep.subr.mxu0 0.0
  %526 = vmatpush1.msra.mxu0 0.0
  %527 = vmatprep.subr.mxu0 0.0
  %528 = vmatpush1.msra.mxu0 0.0
  %529 = vmatprep.subr.mxu0 0.0
  %530 = vmatpush1.msra.mxu0 0.0
  %531 = vmatprep.subr.mxu0 0.0
  %532 = vmatpush1.msra.mxu0 0.0
  %533 = vmatprep.subr.mxu0 0.0
  %534 = vmatpush1.msra.mxu0 0.0
  %535 = vmatprep.subr.mxu0 0.0
  %536 = vmatpush1.msra.mxu0 0.0
  %537 = vmatprep.subr.mxu0 0.0
  %538 = vmatpush1.msra.mxu0 0.0
  %539 = vmatprep.mubr.f32.mxu0 0.0
  %540 = vmatmul.mubr.f32.gmra.mrb[0].mxu0 %v428
  %v541 = vpop.f32.mrb[0].mxu0
  %v542 = vadd.f32 %v329, %v541
  %v543 = vpop.f32.mrb[0].mxu0
  %544 = vmatprep.mubr.f32.mxu0 0.0
  %545 = vmatmul.mubr.f32.gmra.mrb[0].mxu0 %v431
  %v546 = vpop.f32.mrb[0].mxu0
  %v547 = vadd.f32 %v334, %v546
  %v548 = vpop.f32.mrb[0].mxu0
  %549 = vmatprep.mubr.f32.mxu0 0.0
  %550 = vmatmul.mubr.f32.gmra.mrb[0].mxu0 %v434
  %v551 = vpop.f32.mrb[0].mxu0
  %v552 = vadd.f32 %v339, %v551
  %v553 = vpop.f32.mrb[0].mxu0
  %554 = vmatprep.mubr.f32.mxu0 0.0
  %555 = vmatmul.mubr.f32.gmra.mrb[0].mxu0 %v437
  %v556 = vpop.f32.mrb[0].mxu0
  %v557 = vadd.f32 %v344, %v556
  %v558 = vpop.f32.mrb[0].mxu0
  %559 = vmatprep.mubr.f32.mxu0 0.0
  %560 = vmatmul.mubr.f32.gmra.mrb[0].mxu0 %v440
  %v561 = vpop.f32.mrb[0].mxu0
  %v562 = vadd.f32 %v349, %v561
  %v563 = vpop.f32.mrb[0].mxu0
  %564 = vmatprep.mubr.f32.mxu0 0.0
  %565 = vmatmul.mubr.f32.gmra.mrb[0].mxu0 %v443
  %v566 = vpop.f32.mrb[0].mxu0
  %v567 = vadd.f32 %v354, %v566
  %v568 = vpop.f32.mrb[0].mxu0
  %569 = vmatprep.mubr.f32.mxu0 0.0
  %570 = vmatmul.mubr.f32.gmra.mrb[0].mxu0 %v446
  %v571 = vpop.f32.mrb[0].mxu0
  %v572 = vadd.f32 %v359, %v571
  %v573 = vpop.f32.mrb[0].mxu0
  %574 = vmatprep.mubr.f32.mxu0 0.0
  %575 = vmatmul.mubr.f32.gmra.mrb[0].mxu0 %v449
  %v576 = vpop.f32.mrb[0].mxu0
  %v577 = vadd.f32 %v364, %v576
  %v578 = vpop.f32.mrb[0].mxu0
  %579 = vmatprep.mubr.f32.mxu0 0.0
  %580 = vmatmul.mubr.f32.gmra.mrb[0].mxu0 %v452
  %v581 = vpop.f32.mrb[0].mxu0
  %v582 = vadd.f32 %v369, %v581
  %v583 = vpop.f32.mrb[0].mxu0
  %584 = vmatprep.mubr.f32.mxu0 0.0
  %585 = vmatmul.mubr.f32.gmra.mrb[0].mxu0 %v455
  %v586 = vpop.f32.mrb[0].mxu0
  %v587 = vadd.f32 %v374, %v586
  %v588 = vpop.f32.mrb[0].mxu0
  %589 = vmatprep.mubr.f32.mxu0 0.0
  %590 = vmatmul.mubr.f32.gmra.mrb[0].mxu0 %v458
  %v591 = vpop.f32.mrb[0].mxu0
  %v592 = vadd.f32 %v379, %v591
  %v593 = vpop.f32.mrb[0].mxu0
  %594 = vmatprep.mubr.f32.mxu0 0.0
  %595 = vmatmul.mubr.f32.gmra.mrb[0].mxu0 %v461
  %v596 = vpop.f32.mrb[0].mxu0
  %v597 = vadd.f32 %v384, %v596
  %v598 = vpop.f32.mrb[0].mxu0
  %599 = vmatprep.mubr.f32.mxu0 0.0
  %600 = vmatmul.mubr.f32.gmra.mrb[0].mxu0 %v464
  %v601 = vpop.f32.mrb[0].mxu0
  %v602 = vadd.f32 %v389, %v601
  %v603 = vpop.f32.mrb[0].mxu0
  %604 = vmatprep.mubr.f32.mxu0 0.0
  %605 = vmatmul.mubr.f32.gmra.mrb[0].mxu0 %v467
  %v606 = vpop.f32.mrb[0].mxu0
  %v607 = vadd.f32 %v394, %v606
  %v608 = vpop.f32.mrb[0].mxu0
  %609 = vmatprep.mubr.f32.mxu0 0.0
  %610 = vmatmul.mubr.f32.gmra.mrb[0].mxu0 %v470
  %v611 = vpop.f32.mrb[0].mxu0
  %v612 = vadd.f32 %v399, %v611
  %v613 = vpop.f32.mrb[0].mxu0
  %614 = vmatprep.mubr.f32.mxu0 0.0
  %615 = vmatmul.mubr.f32.gmra.mrb[0].mxu0 %v473
  %v616 = vpop.f32.mrb[0].mxu0
  %v617 = vadd.f32 %v404, %v616
  %v618 = vpop.f32.mrb[0].mxu0
  %619 = vdwg.mxu0
  %v620 = vld [vmem:[%s5] sm:$0x1]
  %v622 = vlaneseq
  %v623 = vshrl.u32 %v622, 7
  %v624 = vsub.s32 0, %v623
  %v625 = vrot.slane %v620, %v624
  %v627 = vadd.f32 %v542, %v625
  %v628 = vadd.f32 %v547, %v625
  %v629 = vadd.f32 %v552, %v625
  %v630 = vadd.f32 %v557, %v625
  %v631 = vadd.f32 %v562, %v625
  %v632 = vadd.f32 %v567, %v625
  %v633 = vadd.f32 %v572, %v625
  %v634 = vadd.f32 %v577, %v625
  %v635 = vadd.f32 %v582, %v625
  %v636 = vadd.f32 %v587, %v625
  %v637 = vadd.f32 %v592, %v625
  %v638 = vadd.f32 %v597, %v625
  %v639 = vadd.f32 %v602, %v625
  %v640 = vadd.f32 %v607, %v625
  %v641 = vadd.f32 %v612, %v625
  %v642 = vadd.f32 %v617, %v625
  %vm643 = vcmp.ge.f32.partialorder %v627, 0.0
  %vm644 = vcmp.ge.f32.partialorder %v628, 0.0
  %vm645 = vcmp.ge.f32.partialorder %v629, 0.0
  %vm646 = vcmp.ge.f32.partialorder %v630, 0.0
  %vm647 = vcmp.ge.f32.partialorder %v631, 0.0
  %vm648 = vcmp.ge.f32.partialorder %v632, 0.0
  %vm649 = vcmp.ge.f32.partialorder %v633, 0.0
  %vm650 = vcmp.ge.f32.partialorder %v634, 0.0
  %vm651 = vcmp.ge.f32.partialorder %v635, 0.0
  %vm652 = vcmp.ge.f32.partialorder %v636, 0.0
  %vm653 = vcmp.ge.f32.partialorder %v637, 0.0
  %vm654 = vcmp.ge.f32.partialorder %v638, 0.0
  %vm655 = vcmp.ge.f32.partialorder %v639, 0.0
  %vm656 = vcmp.ge.f32.partialorder %v640, 0.0
  %vm657 = vcmp.ge.f32.partialorder %v641, 0.0
  %vm658 = vcmp.ge.f32.partialorder %v642, 0.0
  %v659 = vmul.f32 %v627, 0.01
  %v660 = vmul.f32 %v628, 0.01
  %v661 = vmul.f32 %v629, 0.01
  %v662 = vmul.f32 %v630, 0.01
  %v663 = vmul.f32 %v631, 0.01
  %v664 = vmul.f32 %v632, 0.01
  %v665 = vmul.f32 %v633, 0.01
  %v666 = vmul.f32 %v634, 0.01
  %v667 = vmul.f32 %v635, 0.01
  %v668 = vmul.f32 %v636, 0.01
  %v669 = vmul.f32 %v637, 0.01
  %v670 = vmul.f32 %v638, 0.01
  %v671 = vmul.f32 %v639, 0.01
  %v672 = vmul.f32 %v640, 0.01
  %v673 = vmul.f32 %v641, 0.01
  %v674 = vmul.f32 %v642, 0.01
  %v675 = vsel %vm643, %v627, %v659
  %v676 = vsel %vm644, %v628, %v660
  %v677 = vsel %vm645, %v629, %v661
  %v678 = vsel %vm646, %v630, %v662
  %v679 = vsel %vm647, %v631, %v663
  %v680 = vsel %vm648, %v632, %v664
  %v681 = vsel %vm649, %v633, %v665
  %v682 = vsel %vm650, %v634, %v666
  %v683 = vsel %vm651, %v635, %v667
  %v684 = vsel %vm652, %v636, %v668
  %v685 = vsel %vm653, %v637, %v669
  %v686 = vsel %vm654, %v638, %v670
  %v687 = vsel %vm655, %v639, %v671
  %v688 = vsel %vm656, %v640, %v672
  %v689 = vsel %vm657, %v641, %v673
  %v690 = vsel %vm658, %v642, %v674
  %691 = vst.msk [vmem:[%s6] sm:$0xff] %vm213, %v675
  %692 = vst.msk [vmem:[%s6 + $0x8] sm:$0xff] %vm213, %v676
  %693 = vst.msk [vmem:[%s6 + $0x10] sm:$0xff] %vm213, %v677
  %694 = vst.msk [vmem:[%s6 + $0x18] sm:$0xff] %vm213, %v678
  %695 = vst.msk [vmem:[%s6 + $0x20] sm:$0xff] %vm213, %v679
  %696 = vst.msk [vmem:[%s6 + $0x28] sm:$0xff] %vm213, %v680
  %697 = vst.msk [vmem:[%s6 + $0x30] sm:$0xff] %vm213, %v681
  %698 = vst.msk [vmem:[%s6 + $0x38] sm:$0xff] %vm213, %v682
  %699 = vst.msk [vmem:[%s6 + $0x40] sm:$0xff] %vm213, %v683
  %700 = vst.msk [vmem:[%s6 + $0x48] sm:$0xff] %vm213, %v684
  %701 = vst.msk [vmem:[%s6 + $0x50] sm:$0xff] %vm213, %v685
  %702 = vst.msk [vmem:[%s6 + $0x58] sm:$0xff] %vm213, %v686
  %703 = vst.msk [vmem:[%s6 + $0x60] sm:$0xff] %vm213, %v687
  %704 = vst.msk [vmem:[%s6 + $0x68] sm:$0xff] %vm213, %v688
  %705 = vst.msk [vmem:[%s6 + $0x70] sm:$0xff] %vm213, %v689
  %706 = vst.msk [vmem:[%s6 + $0x78] sm:$0xff] %vm213, %v690
  // Predicated region
  $region26: #{daftstone_sur_forward.7} parent=0 // pred_check
    _
  $region27: #{daftstone_sur_forward.7} parent=0 // pred_check_branch
    %708 = sbr.rel (0) target = $region29
  $region28: #{daftstone_sur_forward.7} parent=0 // pred_region
    _
  $region29: #{daftstone_sur_forward.7} parent=0 // pred_fallthru
    _
  // Predicated region
  $region30: #{daftstone_sur_forward.7} parent=0 // pred_check
    _
  $region31: #{daftstone_sur_forward.7} parent=0 // pred_check_branch
    %710 = sbr.rel (0) target = $region33
  $region32: #{daftstone_sur_forward.7} parent=0 // pred_region
    _
  $region33: #{daftstone_sur_forward.7} parent=0 // pred_fallthru
    _

// kernel: daftstone_sur_forward.9
$region0: #{daftstone_sur_forward.9}
  #allocation0 [shape = 'u32[]', space=smem, size = 0x4, offset = 0x4, fixed_abs, tag = 'smem constant byte address 0x4 - core index']
  #allocation1 [shape = 'u32[144,128]{1,0:T(1,128)}', space=vmem, size = 0x12000, scoped, tag = 'internal scratch']
  %s0 = inlined_call_operand.vmem [shape: f32[128,32], index: 0, kind: input, shape index: {}]
  %s1 = inlined_call_operand.vmem [shape: f32[128,32], index: 1, kind: input, shape index: {}]
  %s2 = inlined_call_operand.vmem [shape: f32[128,32], index: 2, kind: input, shape index: {}, may-alias: {2,3}]
  %s3 = inlined_call_operand.vmem [shape: f32[128,32], index: 3, kind: input, shape index: {}, may-alias: {2,3}]
  %s4 = inlined_call_operand.vmem [shape: bf16[128,128], index: 4, kind: input, shape index: {}]
  %s5 = inlined_call_operand.vmem [shape: f32[32,32], index: 5, kind: input, shape index: {}]
  %s6 = inlined_call_operand.vmem [shape: f32[32,32], index: 6, kind: input, shape index: {}]
  %s7 = inlined_call_operand.vmem [shape: f32[1,32], index: 7, kind: input, shape index: {}]
  %s8 = inlined_call_operand.vmem [shape: f32[32,128], index: 8, kind: input, shape index: {}]
  %s9 = inlined_call_operand.vmem [shape: f32[32,128], index: 9, kind: input, shape index: {}]
  %s10 = inlined_call_operand.vmem [shape: f32[1,128], index: 10, kind: input, shape index: {}]
  %s11 = inlined_call_operand.vmem [shape: f32[128,128], index: 11, kind: output, shape index: {}]
  %s12 = sld [smem:[#allocation0]]
  $region54: #{daftstone_sur_forward.9} parent=0
    _
  %s14 = ssub.s32 1, %s12
  %s15 = scalar_select 0, %s14, %s12
  // Predicated region
  $region2: #{daftstone_sur_forward.9} parent=0 // pred_check
    _
  $region3: #{daftstone_sur_forward.9} parent=0 // pred_check_branch
    %17 = sbr.rel (0) target = $region5
  $region4: #{daftstone_sur_forward.9} parent=0 // pred_region
    _
  $region5: #{daftstone_sur_forward.9} parent=0 // pred_fallthru
    _
  // Predicated region
  $region6: #{daftstone_sur_forward.9} parent=0 // pred_check
    _
  $region7: #{daftstone_sur_forward.9} parent=0 // pred_check_branch
    %19 = sbr.rel (0) target = $region9
  $region8: #{daftstone_sur_forward.9} parent=0 // pred_region
    _
  $region9: #{daftstone_sur_forward.9} parent=0 // pred_fallthru
    _
  // Predicated region
  $region10: #{daftstone_sur_forward.9} parent=0 // pred_check
    _
  $region11: #{daftstone_sur_forward.9} parent=0 // pred_check_branch
    %21 = sbr.rel (0) target = $region13
  $region12: #{daftstone_sur_forward.9} parent=0 // pred_region
    _
  $region13: #{daftstone_sur_forward.9} parent=0 // pred_fallthru
    _
  // Predicated region
  $region14: #{daftstone_sur_forward.9} parent=0 // pred_check
    _
  $region15: #{daftstone_sur_forward.9} parent=0 // pred_check_branch
    %23 = sbr.rel (0) target = $region17
  $region16: #{daftstone_sur_forward.9} parent=0 // pred_region
    _
  $region17: #{daftstone_sur_forward.9} parent=0 // pred_fallthru
    _
  // Predicated region
  $region18: #{daftstone_sur_forward.9} parent=0 // pred_check
    _
  $region19: #{daftstone_sur_forward.9} parent=0 // pred_check_branch
    %25 = sbr.rel (0) target = $region21
  $region20: #{daftstone_sur_forward.9} parent=0 // pred_region
    _
  $region21: #{daftstone_sur_forward.9} parent=0 // pred_fallthru
    _
  // Predicated region
  $region22: #{daftstone_sur_forward.9} parent=0 // pred_check
    _
  $region23: #{daftstone_sur_forward.9} parent=0 // pred_check_branch
    %27 = sbr.rel (0) target = $region25
  $region24: #{daftstone_sur_forward.9} parent=0 // pred_region
    _
  $region25: #{daftstone_sur_forward.9} parent=0 // pred_fallthru
    _
  // Predicated region
  $region26: #{daftstone_sur_forward.9} parent=0 // pred_check
    _
  $region27: #{daftstone_sur_forward.9} parent=0 // pred_check_branch
    %29 = sbr.rel (0) target = $region29
  $region28: #{daftstone_sur_forward.9} parent=0 // pred_region
    _
  $region29: #{daftstone_sur_forward.9} parent=0 // pred_fallthru
    _
  // Predicated region
  $region30: #{daftstone_sur_forward.9} parent=0 // pred_check
    _
  $region31: #{daftstone_sur_forward.9} parent=0 // pred_check_branch
    %31 = sbr.rel (0) target = $region33
  $region32: #{daftstone_sur_forward.9} parent=0 // pred_region
    _
  $region33: #{daftstone_sur_forward.9} parent=0 // pred_fallthru
    _
  // Predicated region
  $region34: #{daftstone_sur_forward.9} parent=0 // pred_check
    _
  $region35: #{daftstone_sur_forward.9} parent=0 // pred_check_branch
    %33 = sbr.rel (0) target = $region37
  $region36: #{daftstone_sur_forward.9} parent=0 // pred_region
    _
  $region37: #{daftstone_sur_forward.9} parent=0 // pred_fallthru
    _
  // Predicated region
  $region38: #{daftstone_sur_forward.9} parent=0 // pred_check
    _
  $region39: #{daftstone_sur_forward.9} parent=0 // pred_check_branch
    %35 = sbr.rel (0) target = $region41
  $region40: #{daftstone_sur_forward.9} parent=0 // pred_region
    _
  $region41: #{daftstone_sur_forward.9} parent=0 // pred_fallthru
    _
  // Predicated region
  $region42: #{daftstone_sur_forward.9} parent=0 // pred_check
    _
  $region43: #{daftstone_sur_forward.9} parent=0 // pred_check_branch
    %37 = sbr.rel (0) target = $region45
  $region44: #{daftstone_sur_forward.9} parent=0 // pred_region
    _
  $region45: #{daftstone_sur_forward.9} parent=0 // pred_fallthru
    _
  %v39 = vld [vmem:[%s4] sm:$0xf]
  %v40 = vld [vmem:[%s4 + $0x4] sm:$0xf]
  %v41 = vld [vmem:[%s4 + $0x8] sm:$0xf]
  %v42 = vld [vmem:[%s4 + $0xc] sm:$0xf]
  %v43 = vld [vmem:[%s4 + $0x10] sm:$0xf]
  %v44 = vld [vmem:[%s4 + $0x14] sm:$0xf]
  %v45 = vld [vmem:[%s4 + $0x18] sm:$0xf]
  %v46 = vld [vmem:[%s4 + $0x1c] sm:$0xf]
  %v47 = vld [vmem:[%s4 + $0x20] sm:$0xf]
  %v48 = vld [vmem:[%s4 + $0x24] sm:$0xf]
  %v49 = vld [vmem:[%s4 + $0x28] sm:$0xf]
  %v50 = vld [vmem:[%s4 + $0x2c] sm:$0xf]
  %v51 = vld [vmem:[%s4 + $0x30] sm:$0xf]
  %v52 = vld [vmem:[%s4 + $0x34] sm:$0xf]
  %v53 = vld [vmem:[%s4 + $0x38] sm:$0xf]
  %v54 = vld [vmem:[%s4 + $0x3c] sm:$0xf]
  %v55 = vld [vmem:[%s3] sm:$0xff]
  %v56 = vld [vmem:[%s3 + $0x8] sm:$0xff]
  %v57 = vld [vmem:[%s3 + $0x10] sm:$0xff]
  %v58 = vld [vmem:[%s3 + $0x18] sm:$0xff]
  %v59 = vld [vmem:[%s3 + $0x20] sm:$0xff]
  %v60 = vld [vmem:[%s3 + $0x28] sm:$0xff]
  %v61 = vld [vmem:[%s3 + $0x30] sm:$0xff]
  %v62 = vld [vmem:[%s3 + $0x38] sm:$0xff]
  %v63 = vld [vmem:[%s3 + $0x40] sm:$0xff]
  %v64 = vld [vmem:[%s3 + $0x48] sm:$0xff]
  %v65 = vld [vmem:[%s3 + $0x50] sm:$0xff]
  %v66 = vld [vmem:[%s3 + $0x58] sm:$0xff]
  %v67 = vld [vmem:[%s3 + $0x60] sm:$0xff]
  %v68 = vld [vmem:[%s3 + $0x68] sm:$0xff]
  %v69 = vld [vmem:[%s3 + $0x70] sm:$0xff]
  %v70 = vld [vmem:[%s3 + $0x78] sm:$0xff]
  %v71 = vpack.c.bf16 %v56, %v55
  %v72 = vpack.c.bf16 %v58, %v57
  %v73 = vpack.c.bf16 %v60, %v59
  %v74 = vpack.c.bf16 %v62, %v61
  %v75 = vpack.c.bf16 %v64, %v63
  %v76 = vpack.c.bf16 %v66, %v65
  %v77 = vpack.c.bf16 %v68, %v67
  %v78 = vpack.c.bf16 %v70, %v69
  %v95 = vunpack.c.l.b16 %v39
  %v96 = vunpack.c.l.b16 %v40
  %v97 = vunpack.c.l.b16 %v41
  %v98 = vunpack.c.l.b16 %v42
  %v99 = vunpack.c.l.b16 %v43
  %v100 = vunpack.c.l.b16 %v44
  %v101 = vunpack.c.l.b16 %v45
  %v102 = vunpack.c.l.b16 %v46
  %v103 = vunpack.c.l.b16 %v47
  %v104 = vunpack.c.l.b16 %v48
  %v105 = vunpack.c.l.b16 %v49
  %v106 = vunpack.c.l.b16 %v50
  %v107 = vunpack.c.l.b16 %v51
  %v108 = vunpack.c.l.b16 %v52
  %v109 = vunpack.c.l.b16 %v53
  %v110 = vunpack.c.l.b16 %v54
  %v111 = vpack.c.b16 %v96, %v95
  %v112 = vpack.c.b16 %v98, %v97
  %v113 = vpack.c.b16 %v100, %v99
  %v114 = vpack.c.b16 %v102, %v101
  %v115 = vpack.c.b16 %v104, %v103
  %v116 = vpack.c.b16 %v106, %v105
  %v117 = vpack.c.b16 %v108, %v107
  %v118 = vpack.c.b16 %v110, %v109
  %127 = vmatprep.subr.bf16.mxu0 0
  %128 = vmatpush1.bf16.msra.mxu0 %v71
  %129 = vmatprep.subr.bf16.mxu0 0
  %130 = vmatpush1.bf16.msra.mxu0 %v72
  %131 = vmatprep.subr.bf16.mxu0 0
  %132 = vmatpush1.bf16.msra.mxu0 %v73
  %133 = vmatprep.subr.bf16.mxu0 0
  %134 = vmatpush1.bf16.msra.mxu0 %v74
  %135 = vmatprep.subr.bf16.mxu0 0
  %136 = vmatpush1.bf16.msra.mxu0 %v75
  %137 = vmatprep.subr.bf16.mxu0 0
  %138 = vmatpush1.bf16.msra.mxu0 %v76
  %139 = vmatprep.subr.bf16.mxu0 0
  %140 = vmatpush1.bf16.msra.mxu0 %v77
  %141 = vmatprep.subr.bf16.mxu0 0
  %142 = vmatpush1.bf16.msra.mxu0 %v78
  %143 = vmatprep.subr.bf16.mxu0 0
  %144 = vmatpush1.bf16.msra.mxu0 0
  %145 = vmatprep.subr.bf16.mxu0 0
  %146 = vmatpush1.bf16.msra.mxu0 0
  %147 = vmatprep.subr.bf16.mxu0 0
  %148 = vmatpush1.bf16.msra.mxu0 0
  %149 = vmatprep.subr.bf16.mxu0 0
  %150 = vmatpush1.bf16.msra.mxu0 0
  %151 = vmatprep.subr.bf16.mxu0 0
  %152 = vmatpush1.bf16.msra.mxu0 0
  %153 = vmatprep.subr.bf16.mxu0 0
  %154 = vmatpush1.bf16.msra.mxu0 0
  %155 = vmatprep.subr.bf16.mxu0 0
  %156 = vmatpush1.bf16.msra.mxu0 0
  %157 = vmatprep.subr.bf16.mxu0 0
  %158 = vmatpush1.bf16.msra.mxu0 0
  %159 = vmatprep.mubr.bf16.mxu0 0
  %160 = vmatmul.mubr.bf16.gmra.mrb[0].mxu0 %v111
  %v161 = vpop.f32.mrb[0].mxu0
  %v162 = vadd.f32 0.0, %v161
  %v163 = vpop.f32.mrb[0].mxu0
  %v164 = vpop.f32.mrb[0].mxu0
  %v165 = vadd.f32 0.0, %v164
  %v166 = vpop.f32.mrb[0].mxu0
  %167 = vmatprep.mubr.bf16.mxu0 0
  %168 = vmatmul.mubr.bf16.gmra.mrb[0].mxu0 %v112
  %v169 = vpop.f32.mrb[0].mxu0
  %v170 = vadd.f32 0.0, %v169
  %v171 = vpop.f32.mrb[0].mxu0
  %v172 = vpop.f32.mrb[0].mxu0
  %v173 = vadd.f32 0.0, %v172
  %v174 = vpop.f32.mrb[0].mxu0
  %175 = vmatprep.mubr.bf16.mxu0 0
  %176 = vmatmul.mubr.bf16.gmra.mrb[0].mxu0 %v113
  %v177 = vpop.f32.mrb[0].mxu0
  %v178 = vadd.f32 0.0, %v177
  %v179 = vpop.f32.mrb[0].mxu0
  %v180 = vpop.f32.mrb[0].mxu0
  %v181 = vadd.f32 0.0, %v180
  %v182 = vpop.f32.mrb[0].mxu0
  %183 = vmatprep.mubr.bf16.mxu0 0
  %184 = vmatmul.mubr.bf16.gmra.mrb[0].mxu0 %v114
  %v185 = vpop.f32.mrb[0].mxu0
  %v186 = vadd.f32 0.0, %v185
  %v187 = vpop.f32.mrb[0].mxu0
  %v188 = vpop.f32.mrb[0].mxu0
  %v189 = vadd.f32 0.0, %v188
  %v190 = vpop.f32.mrb[0].mxu0
  %191 = vmatprep.mubr.bf16.mxu0 0
  %192 = vmatmul.mubr.bf16.gmra.mrb[0].mxu0 %v115
  %v193 = vpop.f32.mrb[0].mxu0
  %v194 = vadd.f32 0.0, %v193
  %v195 = vpop.f32.mrb[0].mxu0
  %v196 = vpop.f32.mrb[0].mxu0
  %v197 = vadd.f32 0.0, %v196
  %v198 = vpop.f32.mrb[0].mxu0
  %199 = vmatprep.mubr.bf16.mxu0 0
  %200 = vmatmul.mubr.bf16.gmra.mrb[0].mxu0 %v116
  %v201 = vpop.f32.mrb[0].mxu0
  %v202 = vadd.f32 0.0, %v201
  %v203 = vpop.f32.mrb[0].mxu0
  %v204 = vpop.f32.mrb[0].mxu0
  %v205 = vadd.f32 0.0, %v204
  %v206 = vpop.f32.mrb[0].mxu0
  %207 = vmatprep.mubr.bf16.mxu0 0
  %208 = vmatmul.mubr.bf16.gmra.mrb[0].mxu0 %v117
  %v209 = vpop.f32.mrb[0].mxu0
  %v210 = vadd.f32 0.0, %v209
  %v211 = vpop.f32.mrb[0].mxu0
  %v212 = vpop.f32.mrb[0].mxu0
  %v213 = vadd.f32 0.0, %v212
  %v214 = vpop.f32.mrb[0].mxu0
  %215 = vmatprep.mubr.bf16.mxu0 0
  %216 = vmatmul.mubr.bf16.gmra.mrb[0].mxu0 %v118
  %v217 = vpop.f32.mrb[0].mxu0
  %v218 = vadd.f32 0.0, %v217
  %v219 = vpop.f32.mrb[0].mxu0
  %v220 = vpop.f32.mrb[0].mxu0
  %v221 = vadd.f32 0.0, %v220
  %v222 = vpop.f32.mrb[0].mxu0
  %223 = vdwg.mxu0
  %v224 = vld [vmem:[%s6] sm:$0xff]
  %v225 = vld [vmem:[%s6 + $0x8] sm:$0xff]
  %v226 = vld [vmem:[%s6 + $0x10] sm:$0xff]
  %v227 = vld [vmem:[%s6 + $0x18] sm:$0xff]
  %vm228 = vcmask 261120
  %v230 = vsel %vm228, %v162, 0
  %v233 = vsel %vm228, %v165, 0
  %v236 = vsel %vm228, %v170, 0
  %v239 = vsel %vm228, %v173, 0
  %v242 = vsel %vm228, %v178, 0
  %v245 = vsel %vm228, %v181, 0
  %v248 = vsel %vm228, %v186, 0
  %v251 = vsel %vm228, %v189, 0
  %v254 = vsel %vm228, %v194, 0
  %v257 = vsel %vm228, %v197, 0
  %v260 = vsel %vm228, %v202, 0
  %v263 = vsel %vm228, %v205, 0
  %v266 = vsel %vm228, %v210, 0
  %v269 = vsel %vm228, %v213, 0
  %v272 = vsel %vm228, %v218, 0
  %v275 = vsel %vm228, %v221, 0
  %277 = vmatprep.subr.mxu0 0.0
  %278 = vmatpush1.msra.mxu0 %v224
  %279 = vmatprep.subr.mxu0 0.0
  %280 = vmatpush1.msra.mxu0 %v225
  %281 = vmatprep.subr.mxu0 0.0
  %282 = vmatpush1.msra.mxu0 %v226
  %283 = vmatprep.subr.mxu0 0.0
  %284 = vmatpush1.msra.mxu0 %v227
  %285 = vmatprep.subr.mxu0 0.0
  %286 = vmatpush1.msra.mxu0 0.0
  %287 = vmatprep.subr.mxu0 0.0
  %288 = vmatpush1.msra.mxu0 0.0
  %289 = vmatprep.subr.mxu0 0.0
  %290 = vmatpush1.msra.mxu0 0.0
  %291 = vmatprep.subr.mxu0 0.0
  %292 = vmatpush1.msra.mxu0 0.0
  %293 = vmatprep.subr.mxu0 0.0
  %294 = vmatpush1.msra.mxu0 0.0
  %295 = vmatprep.subr.mxu0 0.0
  %296 = vmatpush1.msra.mxu0 0.0
  %297 = vmatprep.subr.mxu0 0.0
  %298 = vmatpush1.msra.mxu0 0.0
  %299 = vmatprep.subr.mxu0 0.0
  %300 = vmatpush1.msra.mxu0 0.0
  %301 = vmatprep.subr.mxu0 0.0
  %302 = vmatpush1.msra.mxu0 0.0
  %303 = vmatprep.subr.mxu0 0.0
  %304 = vmatpush1.msra.mxu0 0.0
  %305 = vmatprep.subr.mxu0 0.0
  %306 = vmatpush1.msra.mxu0 0.0
  %307 = vmatprep.subr.mxu0 0.0
  %308 = vmatpush1.msra.mxu0 0.0
  %309 = vmatprep.subr.mxu0 0.0
  %310 = vmatpush1.msra.mxu0 0.0
  %311 = vmatprep.subr.mxu0 0.0
  %312 = vmatpush1.msra.mxu0 0.0
  %313 = vmatprep.subr.mxu0 0.0
  %314 = vmatpush1.msra.mxu0 0.0
  %315 = vmatprep.subr.mxu0 0.0
  %316 = vmatpush1.msra.mxu0 0.0
  %317 = vmatprep.subr.mxu0 0.0
  %318 = vmatpush1.msra.mxu0 0.0
  %319 = vmatprep.subr.mxu0 0.0
  %320 = vmatpush1.msra.mxu0 0.0
  %321 = vmatprep.subr.mxu0 0.0
  %322 = vmatpush1.msra.mxu0 0.0
  %323 = vmatprep.subr.mxu0 0.0
  %324 = vmatpush1.msra.mxu0 0.0
  %325 = vmatprep.subr.mxu0 0.0
  %326 = vmatpush1.msra.mxu0 0.0
  %327 = vmatprep.subr.mxu0 0.0
  %328 = vmatpush1.msra.mxu0 0.0
  %329 = vmatprep.subr.mxu0 0.0
  %330 = vmatpush1.msra.mxu0 0.0
  %331 = vmatprep.subr.mxu0 0.0
  %332 = vmatpush1.msra.mxu0 0.0
  %333 = vmatprep.subr.mxu0 0.0
  %334 = vmatpush1.msra.mxu0 0.0
  %335 = vmatprep.subr.mxu0 0.0
  %336 = vmatpush1.msra.mxu0 0.0
  %337 = vmatprep.subr.mxu0 0.0
  %338 = vmatpush1.msra.mxu0 0.0
  %339 = vmatprep.subr.mxu0 0.0
  %340 = vmatpush1.msra.mxu0 0.0
  %341 = vmatprep.mubr.f32.mxu0 0.0
  %342 = vmatmul.mubr.f32.gmra.mrb[0].mxu0 %v230
  %v343 = vpop.f32.mrb[0].mxu0
  %v344 = vadd.f32 0.0, %v343
  %v345 = vpop.f32.mrb[0].mxu0
  %346 = vmatprep.mubr.f32.mxu0 0.0
  %347 = vmatmul.mubr.f32.gmra.mrb[0].mxu0 %v233
  %v348 = vpop.f32.mrb[0].mxu0
  %v349 = vadd.f32 0.0, %v348
  %v350 = vpop.f32.mrb[0].mxu0
  %351 = vmatprep.mubr.f32.mxu0 0.0
  %352 = vmatmul.mubr.f32.gmra.mrb[0].mxu0 %v236
  %v353 = vpop.f32.mrb[0].mxu0
  %v354 = vadd.f32 0.0, %v353
  %v355 = vpop.f32.mrb[0].mxu0
  %356 = vmatprep.mubr.f32.mxu0 0.0
  %357 = vmatmul.mubr.f32.gmra.mrb[0].mxu0 %v239
  %v358 = vpop.f32.mrb[0].mxu0
  %v359 = vadd.f32 0.0, %v358
  %v360 = vpop.f32.mrb[0].mxu0
  %361 = vmatprep.mubr.f32.mxu0 0.0
  %362 = vmatmul.mubr.f32.gmra.mrb[0].mxu0 %v242
  %v363 = vpop.f32.mrb[0].mxu0
  %v364 = vadd.f32 0.0, %v363
  %v365 = vpop.f32.mrb[0].mxu0
  %366 = vmatprep.mubr.f32.mxu0 0.0
  %367 = vmatmul.mubr.f32.gmra.mrb[0].mxu0 %v245
  %v368 = vpop.f32.mrb[0].mxu0
  %v369 = vadd.f32 0.0, %v368
  %v370 = vpop.f32.mrb[0].mxu0
  %371 = vmatprep.mubr.f32.mxu0 0.0
  %372 = vmatmul.mubr.f32.gmra.mrb[0].mxu0 %v248
  %v373 = vpop.f32.mrb[0].mxu0
  %v374 = vadd.f32 0.0, %v373
  %v375 = vpop.f32.mrb[0].mxu0
  %376 = vmatprep.mubr.f32.mxu0 0.0
  %377 = vmatmul.mubr.f32.gmra.mrb[0].mxu0 %v251
  %v378 = vpop.f32.mrb[0].mxu0
  %v379 = vadd.f32 0.0, %v378
  %v380 = vpop.f32.mrb[0].mxu0
  %381 = vmatprep.mubr.f32.mxu0 0.0
  %382 = vmatmul.mubr.f32.gmra.mrb[0].mxu0 %v254
  %v383 = vpop.f32.mrb[0].mxu0
  %v384 = vadd.f32 0.0, %v383
  %v385 = vpop.f32.mrb[0].mxu0
  %386 = vmatprep.mubr.f32.mxu0 0.0
  %387 = vmatmul.mubr.f32.gmra.mrb[0].mxu0 %v257
  %v388 = vpop.f32.mrb[0].mxu0
  %v389 = vadd.f32 0.0, %v388
  %v390 = vpop.f32.mrb[0].mxu0
  %391 = vmatprep.mubr.f32.mxu0 0.0
  %392 = vmatmul.mubr.f32.gmra.mrb[0].mxu0 %v260
  %v393 = vpop.f32.mrb[0].mxu0
  %v394 = vadd.f32 0.0, %v393
  %v395 = vpop.f32.mrb[0].mxu0
  %396 = vmatprep.mubr.f32.mxu0 0.0
  %397 = vmatmul.mubr.f32.gmra.mrb[0].mxu0 %v263
  %v398 = vpop.f32.mrb[0].mxu0
  %v399 = vadd.f32 0.0, %v398
  %v400 = vpop.f32.mrb[0].mxu0
  %401 = vmatprep.mubr.f32.mxu0 0.0
  %402 = vmatmul.mubr.f32.gmra.mrb[0].mxu0 %v266
  %v403 = vpop.f32.mrb[0].mxu0
  %v404 = vadd.f32 0.0, %v403
  %v405 = vpop.f32.mrb[0].mxu0
  %406 = vmatprep.mubr.f32.mxu0 0.0
  %407 = vmatmul.mubr.f32.gmra.mrb[0].mxu0 %v269
  %v408 = vpop.f32.mrb[0].mxu0
  %v409 = vadd.f32 0.0, %v408
  %v410 = vpop.f32.mrb[0].mxu0
  %411 = vmatprep.mubr.f32.mxu0 0.0
  %412 = vmatmul.mubr.f32.gmra.mrb[0].mxu0 %v272
  %v413 = vpop.f32.mrb[0].mxu0
  %v414 = vadd.f32 0.0, %v413
  %v415 = vpop.f32.mrb[0].mxu0
  %416 = vmatprep.mubr.f32.mxu0 0.0
  %417 = vmatmul.mubr.f32.gmra.mrb[0].mxu0 %v275
  %v418 = vpop.f32.mrb[0].mxu0
  %v419 = vadd.f32 0.0, %v418
  %v420 = vpop.f32.mrb[0].mxu0
  %421 = vdwg.mxu0
  %v422 = vld [vmem:[%s2] sm:$0xff]
  %v423 = vld [vmem:[%s2 + $0x8] sm:$0xff]
  %v424 = vld [vmem:[%s2 + $0x10] sm:$0xff]
  %v425 = vld [vmem:[%s2 + $0x18] sm:$0xff]
  %v426 = vld [vmem:[%s2 + $0x20] sm:$0xff]
  %v427 = vld [vmem:[%s2 + $0x28] sm:$0xff]
  %v428 = vld [vmem:[%s2 + $0x30] sm:$0xff]
  %v429 = vld [vmem:[%s2 + $0x38] sm:$0xff]
  %v430 = vld [vmem:[%s2 + $0x40] sm:$0xff]
  %v431 = vld [vmem:[%s2 + $0x48] sm:$0xff]
  %v432 = vld [vmem:[%s2 + $0x50] sm:$0xff]
  %v433 = vld [vmem:[%s2 + $0x58] sm:$0xff]
  %v434 = vld [vmem:[%s2 + $0x60] sm:$0xff]
  %v435 = vld [vmem:[%s2 + $0x68] sm:$0xff]
  %v436 = vld [vmem:[%s2 + $0x70] sm:$0xff]
  %v437 = vld [vmem:[%s2 + $0x78] sm:$0xff]
  %v438 = vld [vmem:[%s5] sm:$0xff]
  %v439 = vld [vmem:[%s5 + $0x8] sm:$0xff]
  %v440 = vld [vmem:[%s5 + $0x10] sm:$0xff]
  %v441 = vld [vmem:[%s5 + $0x18] sm:$0xff]
  %v443 = vsel %vm228, %v422, 0
  %v446 = vsel %vm228, %v423, 0
  %v449 = vsel %vm228, %v424, 0
  %v452 = vsel %vm228, %v425, 0
  %v455 = vsel %vm228, %v426, 0
  %v458 = vsel %vm228, %v427, 0
  %v461 = vsel %vm228, %v428, 0
  %v464 = vsel %vm228, %v429, 0
  %v467 = vsel %vm228, %v430, 0
  %v470 = vsel %vm228, %v431, 0
  %v473 = vsel %vm228, %v432, 0
  %v476 = vsel %vm228, %v433, 0
  %v479 = vsel %vm228, %v434, 0
  %v482 = vsel %vm228, %v435, 0
  %v485 = vsel %vm228, %v436, 0
  %v488 = vsel %vm228, %v437, 0
  %490 = vmatprep.subr.mxu0 0.0
  %491 = vmatpush1.msra.mxu0 %v438
  %492 = vmatprep.subr.mxu0 0.0
  %493 = vmatpush1.msra.mxu0 %v439
  %494 = vmatprep.subr.mxu0 0.0
  %495 = vmatpush1.msra.mxu0 %v440
  %496 = vmatprep.subr.mxu0 0.0
  %497 = vmatpush1.msra.mxu0 %v441
  %498 = vmatprep.subr.mxu0 0.0
  %499 = vmatpush1.msra.mxu0 0.0
  %500 = vmatprep.subr.mxu0 0.0
  %501 = vmatpush1.msra.mxu0 0.0
  %502 = vmatprep.subr.mxu0 0.0
  %503 = vmatpush1.msra.mxu0 0.0
  %504 = vmatprep.subr.mxu0 0.0
  %505 = vmatpush1.msra.mxu0 0.0
  %506 = vmatprep.subr.mxu0 0.0
  %507 = vmatpush1.msra.mxu0 0.0
  %508 = vmatprep.subr.mxu0 0.0
  %509 = vmatpush1.msra.mxu0 0.0
  %510 = vmatprep.subr.mxu0 0.0
  %511 = vmatpush1.msra.mxu0 0.0
  %512 = vmatprep.subr.mxu0 0.0
  %513 = vmatpush1.msra.mxu0 0.0
  %514 = vmatprep.subr.mxu0 0.0
  %515 = vmatpush1.msra.mxu0 0.0
  %516 = vmatprep.subr.mxu0 0.0
  %517 = vmatpush1.msra.mxu0 0.0
  %518 = vmatprep.subr.mxu0 0.0
  %519 = vmatpush1.msra.mxu0 0.0
  %520 = vmatprep.subr.mxu0 0.0
  %521 = vmatpush1.msra.mxu0 0.0
  %522 = vmatprep.subr.mxu0 0.0
  %523 = vmatpush1.msra.mxu0 0.0
  %524 = vmatprep.subr.mxu0 0.0
  %525 = vmatpush1.msra.mxu0 0.0
  %526 = vmatprep.subr.mxu0 0.0
  %527 = vmatpush1.msra.mxu0 0.0
  %528 = vmatprep.subr.mxu0 0.0
  %529 = vmatpush1.msra.mxu0 0.0
  %530 = vmatprep.subr.mxu0 0.0
  %531 = vmatpush1.msra.mxu0 0.0
  %532 = vmatprep.subr.mxu0 0.0
  %533 = vmatpush1.msra.mxu0 0.0
  %534 = vmatprep.subr.mxu0 0.0
  %535 = vmatpush1.msra.mxu0 0.0
  %536 = vmatprep.subr.mxu0 0.0
  %537 = vmatpush1.msra.mxu0 0.0
  %538 = vmatprep.subr.mxu0 0.0
  %539 = vmatpush1.msra.mxu0 0.0
  %540 = vmatprep.subr.mxu0 0.0
  %541 = vmatpush1.msra.mxu0 0.0
  %542 = vmatprep.subr.mxu0 0.0
  %543 = vmatpush1.msra.mxu0 0.0
  %544 = vmatprep.subr.mxu0 0.0
  %545 = vmatpush1.msra.mxu0 0.0
  %546 = vmatprep.subr.mxu0 0.0
  %547 = vmatpush1.msra.mxu0 0.0
  %548 = vmatprep.subr.mxu0 0.0
  %549 = vmatpush1.msra.mxu0 0.0
  %550 = vmatprep.subr.mxu0 0.0
  %551 = vmatpush1.msra.mxu0 0.0
  %552 = vmatprep.subr.mxu0 0.0
  %553 = vmatpush1.msra.mxu0 0.0
  %554 = vmatprep.mubr.f32.mxu0 0.0
  %555 = vmatmul.mubr.f32.gmra.mrb[0].mxu0 %v443
  %v556 = vpop.f32.mrb[0].mxu0
  %v557 = vadd.f32 %v344, %v556
  %v558 = vpop.f32.mrb[0].mxu0
  %559 = vmatprep.mubr.f32.mxu0 0.0
  %560 = vmatmul.mubr.f32.gmra.mrb[0].mxu0 %v446
  %v561 = vpop.f32.mrb[0].mxu0
  %v562 = vadd.f32 %v349, %v561
  %v563 = vpop.f32.mrb[0].mxu0
  %564 = vmatprep.mubr.f32.mxu0 0.0
  %565 = vmatmul.mubr.f32.gmra.mrb[0].mxu0 %v449
  %v566 = vpop.f32.mrb[0].mxu0
  %v567 = vadd.f32 %v354, %v566
  %v568 = vpop.f32.mrb[0].mxu0
  %569 = vmatprep.mubr.f32.mxu0 0.0
  %570 = vmatmul.mubr.f32.gmra.mrb[0].mxu0 %v452
  %v571 = vpop.f32.mrb[0].mxu0
  %v572 = vadd.f32 %v359, %v571
  %v573 = vpop.f32.mrb[0].mxu0
  %574 = vmatprep.mubr.f32.mxu0 0.0
  %575 = vmatmul.mubr.f32.gmra.mrb[0].mxu0 %v455
  %v576 = vpop.f32.mrb[0].mxu0
  %v577 = vadd.f32 %v364, %v576
  %v578 = vpop.f32.mrb[0].mxu0
  %579 = vmatprep.mubr.f32.mxu0 0.0
  %580 = vmatmul.mubr.f32.gmra.mrb[0].mxu0 %v458
  %v581 = vpop.f32.mrb[0].mxu0
  %v582 = vadd.f32 %v369, %v581
  %v583 = vpop.f32.mrb[0].mxu0
  %584 = vmatprep.mubr.f32.mxu0 0.0
  %585 = vmatmul.mubr.f32.gmra.mrb[0].mxu0 %v461
  %v586 = vpop.f32.mrb[0].mxu0
  %v587 = vadd.f32 %v374, %v586
  %v588 = vpop.f32.mrb[0].mxu0
  %589 = vmatprep.mubr.f32.mxu0 0.0
  %590 = vmatmul.mubr.f32.gmra.mrb[0].mxu0 %v464
  %v591 = vpop.f32.mrb[0].mxu0
  %v592 = vadd.f32 %v379, %v591
  %v593 = vpop.f32.mrb[0].mxu0
  %594 = vmatprep.mubr.f32.mxu0 0.0
  %595 = vmatmul.mubr.f32.gmra.mrb[0].mxu0 %v467
  %v596 = vpop.f32.mrb[0].mxu0
  %v597 = vadd.f32 %v384, %v596
  %v598 = vpop.f32.mrb[0].mxu0
  %599 = vmatprep.mubr.f32.mxu0 0.0
  %600 = vmatmul.mubr.f32.gmra.mrb[0].mxu0 %v470
  %v601 = vpop.f32.mrb[0].mxu0
  %v602 = vadd.f32 %v389, %v601
  %v603 = vpop.f32.mrb[0].mxu0
  %604 = vmatprep.mubr.f32.mxu0 0.0
  %605 = vmatmul.mubr.f32.gmra.mrb[0].mxu0 %v473
  %v606 = vpop.f32.mrb[0].mxu0
  %v607 = vadd.f32 %v394, %v606
  %v608 = vpop.f32.mrb[0].mxu0
  %609 = vmatprep.mubr.f32.mxu0 0.0
  %610 = vmatmul.mubr.f32.gmra.mrb[0].mxu0 %v476
  %v611 = vpop.f32.mrb[0].mxu0
  %v612 = vadd.f32 %v399, %v611
  %v613 = vpop.f32.mrb[0].mxu0
  %614 = vmatprep.mubr.f32.mxu0 0.0
  %615 = vmatmul.mubr.f32.gmra.mrb[0].mxu0 %v479
  %v616 = vpop.f32.mrb[0].mxu0
  %v617 = vadd.f32 %v404, %v616
  %v618 = vpop.f32.mrb[0].mxu0
  %619 = vmatprep.mubr.f32.mxu0 0.0
  %620 = vmatmul.mubr.f32.gmra.mrb[0].mxu0 %v482
  %v621 = vpop.f32.mrb[0].mxu0
  %v622 = vadd.f32 %v409, %v621
  %v623 = vpop.f32.mrb[0].mxu0
  %624 = vmatprep.mubr.f32.mxu0 0.0
  %625 = vmatmul.mubr.f32.gmra.mrb[0].mxu0 %v485
  %v626 = vpop.f32.mrb[0].mxu0
  %v627 = vadd.f32 %v414, %v626
  %v628 = vpop.f32.mrb[0].mxu0
  %629 = vmatprep.mubr.f32.mxu0 0.0
  %630 = vmatmul.mubr.f32.gmra.mrb[0].mxu0 %v488
  %v631 = vpop.f32.mrb[0].mxu0
  %v632 = vadd.f32 %v419, %v631
  %v633 = vpop.f32.mrb[0].mxu0
  %634 = vdwg.mxu0
  %v635 = vld [vmem:[%s7] sm:$0x1]
  %v637 = vlaneseq
  %v638 = vshrl.u32 %v637, 7
  %v639 = vsub.s32 0, %v638
  %v640 = vrot.slane %v635, %v639
  %v642 = vadd.f32 %v557, %v640
  %v643 = vadd.f32 %v562, %v640
  %v644 = vadd.f32 %v567, %v640
  %v645 = vadd.f32 %v572, %v640
  %v646 = vadd.f32 %v577, %v640
  %v647 = vadd.f32 %v582, %v640
  %v648 = vadd.f32 %v587, %v640
  %v649 = vadd.f32 %v592, %v640
  %v650 = vadd.f32 %v597, %v640
  %v651 = vadd.f32 %v602, %v640
  %v652 = vadd.f32 %v607, %v640
  %v653 = vadd.f32 %v612, %v640
  %v654 = vadd.f32 %v617, %v640
  %v655 = vadd.f32 %v622, %v640
  %v656 = vadd.f32 %v627, %v640
  %v657 = vadd.f32 %v632, %v640
  %v658 = vmul.f32 %v642, %v642
  %v659 = vmul.f32 %v643, %v643
  %v660 = vmul.f32 %v644, %v644
  %v661 = vmul.f32 %v645, %v645
  %v662 = vmul.f32 %v646, %v646
  %v663 = vmul.f32 %v647, %v647
  %v664 = vmul.f32 %v648, %v648
  %v665 = vmul.f32 %v649, %v649
  %v666 = vmul.f32 %v650, %v650
  %v667 = vmul.f32 %v651, %v651
  %v668 = vmul.f32 %v652, %v652
  %v669 = vmul.f32 %v653, %v653
  %v670 = vmul.f32 %v654, %v654
  %v671 = vmul.f32 %v655, %v655
  %v672 = vmul.f32 %v656, %v656
  %v673 = vmul.f32 %v657, %v657
  %v674 = vsel %vm228, %v658, 0.0
  %675 = vadd.xlane.f32.xlu0 %v674
  %v676 = vpop.xlane.xlu0 %675
  %v677 = vsel %vm228, %v659, 0.0
  %678 = vadd.xlane.f32.xlu0 %v677
  %v679 = vpop.xlane.xlu0 %678
  %v680 = vsel %vm228, %v660, 0.0
  %681 = vadd.xlane.f32.xlu0 %v680
  %v682 = vpop.xlane.xlu0 %681
  %v683 = vsel %vm228, %v661, 0.0
  %684 = vadd.xlane.f32.xlu0 %v683
  %v685 = vpop.xlane.xlu0 %684
  %v686 = vsel %vm228, %v662, 0.0
  %687 = vadd.xlane.f32.xlu0 %v686
  %v688 = vpop.xlane.xlu0 %687
  %v689 = vsel %vm228, %v663, 0.0
  %690 = vadd.xlane.f32.xlu0 %v689
  %v691 = vpop.xlane.xlu0 %690
  %v692 = vsel %vm228, %v664, 0.0
  %693 = vadd.xlane.f32.xlu0 %v692
  %v694 = vpop.xlane.xlu0 %693
  %v695 = vsel %vm228, %v665, 0.0
  %696 = vadd.xlane.f32.xlu0 %v695
  %v697 = vpop.xlane.xlu0 %696
  %v698 = vsel %vm228, %v666, 0.0
  %699 = vadd.xlane.f32.xlu0 %v698
  %v700 = vpop.xlane.xlu0 %699
  %v701 = vsel %vm228, %v667, 0.0
  %702 = vadd.xlane.f32.xlu0 %v701
  %v703 = vpop.xlane.xlu0 %702
  %v704 = vsel %vm228, %v668, 0.0
  %705 = vadd.xlane.f32.xlu0 %v704
  %v706 = vpop.xlane.xlu0 %705
  %v707 = vsel %vm228, %v669, 0.0
  %708 = vadd.xlane.f32.xlu0 %v707
  %v709 = vpop.xlane.xlu0 %708
  %v710 = vsel %vm228, %v670, 0.0
  %711 = vadd.xlane.f32.xlu0 %v710
  %v712 = vpop.xlane.xlu0 %711
  %v713 = vsel %vm228, %v671, 0.0
  %714 = vadd.xlane.f32.xlu0 %v713
  %v715 = vpop.xlane.xlu0 %714
  %v716 = vsel %vm228, %v672, 0.0
  %717 = vadd.xlane.f32.xlu0 %v716
  %v718 = vpop.xlane.xlu0 %717
  %v719 = vsel %vm228, %v673, 0.0
  %720 = vadd.xlane.f32.xlu0 %v719
  %v721 = vpop.xlane.xlu0 %720
  %v722 = vmax.f32 %v676, 1e-24
  %v723 = vmax.f32 %v679, 1e-24
  %v724 = vmax.f32 %v682, 1e-24
  %v725 = vmax.f32 %v685, 1e-24
  %v726 = vmax.f32 %v688, 1e-24
  %v727 = vmax.f32 %v691, 1e-24
  %v728 = vmax.f32 %v694, 1e-24
  %v729 = vmax.f32 %v697, 1e-24
  %v730 = vmax.f32 %v700, 1e-24
  %v731 = vmax.f32 %v703, 1e-24
  %v732 = vmax.f32 %v706, 1e-24
  %v733 = vmax.f32 %v709, 1e-24
  %v734 = vmax.f32 %v712, 1e-24
  %v735 = vmax.f32 %v715, 1e-24
  %v736 = vmax.f32 %v718, 1e-24
  %v737 = vmax.f32 %v721, 1e-24
  %v738 = vrsqrt.pop %v722
  %v739 = vrsqrt.pop %v723
  %v740 = vrsqrt.pop %v724
  %v741 = vrsqrt.pop %v725
  %v742 = vrsqrt.pop %v726
  %v743 = vrsqrt.pop %v727
  %v744 = vrsqrt.pop %v728
  %v745 = vrsqrt.pop %v729
  %v746 = vrsqrt.pop %v730
  %v747 = vrsqrt.pop %v731
  %v748 = vrsqrt.pop %v732
  %v749 = vrsqrt.pop %v733
  %v750 = vrsqrt.pop %v734
  %v751 = vrsqrt.pop %v735
  %v752 = vrsqrt.pop %v736
  %v753 = vrsqrt.pop %v737
  %v754 = vmul.f32 %v642, %v738
  %v755 = vmul.f32 %v643, %v739
  %v756 = vmul.f32 %v644, %v740
  %v757 = vmul.f32 %v645, %v741
  %v758 = vmul.f32 %v646, %v742
  %v759 = vmul.f32 %v647, %v743
  %v760 = vmul.f32 %v648, %v744
  %v761 = vmul.f32 %v649, %v745
  %v762 = vmul.f32 %v650, %v746
  %v763 = vmul.f32 %v651, %v747
  %v764 = vmul.f32 %v652, %v748
  %v765 = vmul.f32 %v653, %v749
  %v766 = vmul.f32 %v654, %v750
  %v767 = vmul.f32 %v655, %v751
  %v768 = vmul.f32 %v656, %v752
  %v769 = vmul.f32 %v657, %v753
  %vm770 = vcmp.ge.f32.partialorder %v754, 0.0
  %vm771 = vcmp.ge.f32.partialorder %v755, 0.0
  %vm772 = vcmp.ge.f32.partialorder %v756, 0.0
  %vm773 = vcmp.ge.f32.partialorder %v757, 0.0
  %vm774 = vcmp.ge.f32.partialorder %v758, 0.0
  %vm775 = vcmp.ge.f32.partialorder %v759, 0.0
  %vm776 = vcmp.ge.f32.partialorder %v760, 0.0
  %vm777 = vcmp.ge.f32.partialorder %v761, 0.0
  %vm778 = vcmp.ge.f32.partialorder %v762, 0.0
  %vm779 = vcmp.ge.f32.partialorder %v763, 0.0
  %vm780 = vcmp.ge.f32.partialorder %v764, 0.0
  %vm781 = vcmp.ge.f32.partialorder %v765, 0.0
  %vm782 = vcmp.ge.f32.partialorder %v766, 0.0
  %vm783 = vcmp.ge.f32.partialorder %v767, 0.0
  %vm784 = vcmp.ge.f32.partialorder %v768, 0.0
  %vm785 = vcmp.ge.f32.partialorder %v769, 0.0
  %v786 = vmul.f32 %v754, 0.01
  %v787 = vmul.f32 %v755, 0.01
  %v788 = vmul.f32 %v756, 0.01
  %v789 = vmul.f32 %v757, 0.01
  %v790 = vmul.f32 %v758, 0.01
  %v791 = vmul.f32 %v759, 0.01
  %v792 = vmul.f32 %v760, 0.01
  %v793 = vmul.f32 %v761, 0.01
  %v794 = vmul.f32 %v762, 0.01
  %v795 = vmul.f32 %v763, 0.01
  %v796 = vmul.f32 %v764, 0.01
  %v797 = vmul.f32 %v765, 0.01
  %v798 = vmul.f32 %v766, 0.01
  %v799 = vmul.f32 %v767, 0.01
  %v800 = vmul.f32 %v768, 0.01
  %v801 = vmul.f32 %v769, 0.01
  %v802 = vsel %vm770, %v754, %v786
  %v803 = vsel %vm771, %v755, %v787
  %v804 = vsel %vm772, %v756, %v788
  %v805 = vsel %vm773, %v757, %v789
  %v806 = vsel %vm774, %v758, %v790
  %v807 = vsel %vm775, %v759, %v791
  %v808 = vsel %vm776, %v760, %v792
  %v809 = vsel %vm777, %v761, %v793
  %v810 = vsel %vm778, %v762, %v794
  %v811 = vsel %vm779, %v763, %v795
  %v812 = vsel %vm780, %v764, %v796
  %v813 = vsel %vm781, %v765, %v797
  %v814 = vsel %vm782, %v766, %v798
  %v815 = vsel %vm783, %v767, %v799
  %v816 = vsel %vm784, %v768, %v800
  %v817 = vsel %vm785, %v769, %v801
  %v818 = vld [vmem:[%s0] sm:$0xff]
  %v819 = vld [vmem:[%s0 + $0x8] sm:$0xff]
  %v820 = vld [vmem:[%s0 + $0x10] sm:$0xff]
  %v821 = vld [vmem:[%s0 + $0x18] sm:$0xff]
  %v822 = vld [vmem:[%s0 + $0x20] sm:$0xff]
  %v823 = vld [vmem:[%s0 + $0x28] sm:$0xff]
  %v824 = vld [vmem:[%s0 + $0x30] sm:$0xff]
  %v825 = vld [vmem:[%s0 + $0x38] sm:$0xff]
  %v826 = vld [vmem:[%s0 + $0x40] sm:$0xff]
  %v827 = vld [vmem:[%s0 + $0x48] sm:$0xff]
  %v828 = vld [vmem:[%s0 + $0x50] sm:$0xff]
  %v829 = vld [vmem:[%s0 + $0x58] sm:$0xff]
  %v830 = vld [vmem:[%s0 + $0x60] sm:$0xff]
  %v831 = vld [vmem:[%s0 + $0x68] sm:$0xff]
  %v832 = vld [vmem:[%s0 + $0x70] sm:$0xff]
  %v833 = vld [vmem:[%s0 + $0x78] sm:$0xff]
  %v834 = vld [vmem:[%s1] sm:$0xff]
  %v835 = vld [vmem:[%s1 + $0x8] sm:$0xff]
  %v836 = vld [vmem:[%s1 + $0x10] sm:$0xff]
  %v837 = vld [vmem:[%s1 + $0x18] sm:$0xff]
  %v838 = vld [vmem:[%s1 + $0x20] sm:$0xff]
  %v839 = vld [vmem:[%s1 + $0x28] sm:$0xff]
  %v840 = vld [vmem:[%s1 + $0x30] sm:$0xff]
  %v841 = vld [vmem:[%s1 + $0x38] sm:$0xff]
  %v842 = vld [vmem:[%s1 + $0x40] sm:$0xff]
  %v843 = vld [vmem:[%s1 + $0x48] sm:$0xff]
  %v844 = vld [vmem:[%s1 + $0x50] sm:$0xff]
  %v845 = vld [vmem:[%s1 + $0x58] sm:$0xff]
  %v846 = vld [vmem:[%s1 + $0x60] sm:$0xff]
  %v847 = vld [vmem:[%s1 + $0x68] sm:$0xff]
  %v848 = vld [vmem:[%s1 + $0x70] sm:$0xff]
  %v849 = vld [vmem:[%s1 + $0x78] sm:$0xff]
  %v850 = vadd.f32 %v818, %v834
  %v851 = vadd.f32 %v819, %v835
  %v852 = vadd.f32 %v820, %v836
  %v853 = vadd.f32 %v821, %v837
  %v854 = vadd.f32 %v822, %v838
  %v855 = vadd.f32 %v823, %v839
  %v856 = vadd.f32 %v824, %v840
  %v857 = vadd.f32 %v825, %v841
  %v858 = vadd.f32 %v826, %v842
  %v859 = vadd.f32 %v827, %v843
  %v860 = vadd.f32 %v828, %v844
  %v861 = vadd.f32 %v829, %v845
  %v862 = vadd.f32 %v830, %v846
  %v863 = vadd.f32 %v831, %v847
  %v864 = vadd.f32 %v832, %v848
  %v865 = vadd.f32 %v833, %v849
  %v866 = vadd.f32 %v850, %v422
  %v867 = vadd.f32 %v851, %v423
  %v868 = vadd.f32 %v852, %v424
  %v869 = vadd.f32 %v853, %v425
  %v870 = vadd.f32 %v854, %v426
  %v871 = vadd.f32 %v855, %v427
  %v872 = vadd.f32 %v856, %v428
  %v873 = vadd.f32 %v857, %v429
  %v874 = vadd.f32 %v858, %v430
  %v875 = vadd.f32 %v859, %v431
  %v876 = vadd.f32 %v860, %v432
  %v877 = vadd.f32 %v861, %v433
  %v878 = vadd.f32 %v862, %v434
  %v879 = vadd.f32 %v863, %v435
  %v880 = vadd.f32 %v864, %v436
  %v881 = vadd.f32 %v865, %v437
  %v882 = vadd.f32 %v866, %v802
  %v883 = vadd.f32 %v867, %v803
  %v884 = vadd.f32 %v868, %v804
  %v885 = vadd.f32 %v869, %v805
  %v886 = vadd.f32 %v870, %v806
  %v887 = vadd.f32 %v871, %v807
  %v888 = vadd.f32 %v872, %v808
  %v889 = vadd.f32 %v873, %v809
  %v890 = vadd.f32 %v874, %v810
  %v891 = vadd.f32 %v875, %v811
  %v892 = vadd.f32 %v876, %v812
  %v893 = vadd.f32 %v877, %v813
  %v894 = vadd.f32 %v878, %v814
  %v895 = vadd.f32 %v879, %v815
  %v896 = vadd.f32 %v880, %v816
  %v897 = vadd.f32 %v881, %v817
  %v898 = vmul.f32 %v882, 0.25
  %v899 = vmul.f32 %v883, 0.25
  %v900 = vmul.f32 %v884, 0.25
  %v901 = vmul.f32 %v885, 0.25
  %v902 = vmul.f32 %v886, 0.25
  %v903 = vmul.f32 %v887, 0.25
  %v904 = vmul.f32 %v888, 0.25
  %v905 = vmul.f32 %v889, 0.25
  %v906 = vmul.f32 %v890, 0.25
  %v907 = vmul.f32 %v891, 0.25
  %v908 = vmul.f32 %v892, 0.25
  %v909 = vmul.f32 %v893, 0.25
  %v910 = vmul.f32 %v894, 0.25
  %v911 = vmul.f32 %v895, 0.25
  %v912 = vmul.f32 %v896, 0.25
  %v913 = vmul.f32 %v897, 0.25
  %v914 = vmax.f32 %v818, %v834
  %v915 = vmax.f32 %v819, %v835
  %v916 = vmax.f32 %v820, %v836
  %v917 = vmax.f32 %v821, %v837
  %v918 = vmax.f32 %v822, %v838
  %v919 = vmax.f32 %v823, %v839
  %v920 = vmax.f32 %v824, %v840
  %v921 = vmax.f32 %v825, %v841
  %v922 = vmax.f32 %v826, %v842
  %v923 = vmax.f32 %v827, %v843
  %v924 = vmax.f32 %v828, %v844
  %v925 = vmax.f32 %v829, %v845
  %v926 = vmax.f32 %v830, %v846
  %v927 = vmax.f32 %v831, %v847
  %v928 = vmax.f32 %v832, %v848
  %v929 = vmax.f32 %v833, %v849
  %v930 = vmax.f32 %v422, %v802
  %v931 = vmax.f32 %v423, %v803
  %v932 = vmax.f32 %v424, %v804
  %v933 = vmax.f32 %v425, %v805
  %v934 = vmax.f32 %v426, %v806
  %v935 = vmax.f32 %v427, %v807
  %v936 = vmax.f32 %v428, %v808
  %v937 = vmax.f32 %v429, %v809
  %v938 = vmax.f32 %v430, %v810
  %v939 = vmax.f32 %v431, %v811
  %v940 = vmax.f32 %v432, %v812
  %v941 = vmax.f32 %v433, %v813
  %v942 = vmax.f32 %v434, %v814
  %v943 = vmax.f32 %v435, %v815
  %v944 = vmax.f32 %v436, %v816
  %v945 = vmax.f32 %v437, %v817
  %v946 = vmax.f32 %v914, %v930
  %v947 = vmax.f32 %v915, %v931
  %v948 = vmax.f32 %v916, %v932
  %v949 = vmax.f32 %v917, %v933
  %v950 = vmax.f32 %v918, %v934
  %v951 = vmax.f32 %v919, %v935
  %v952 = vmax.f32 %v920, %v936
  %v953 = vmax.f32 %v921, %v937
  %v954 = vmax.f32 %v922, %v938
  %v955 = vmax.f32 %v923, %v939
  %v956 = vmax.f32 %v924, %v940
  %v957 = vmax.f32 %v925, %v941
  %v958 = vmax.f32 %v926, %v942
  %v959 = vmax.f32 %v927, %v943
  %v960 = vmax.f32 %v928, %v944
  %v961 = vmax.f32 %v929, %v945
  %v962 = vld [vmem:[%s8] sm:$0xff]
  %v963 = vld [vmem:[%s8 + $0x8] sm:$0xff]
  %v964 = vld [vmem:[%s8 + $0x10] sm:$0xff]
  %v965 = vld [vmem:[%s8 + $0x18] sm:$0xff]
  %v966 = vld [vmem:[%s9] sm:$0xff]
  %v967 = vld [vmem:[%s9 + $0x8] sm:$0xff]
  %v968 = vld [vmem:[%s9 + $0x10] sm:$0xff]
  %v969 = vld [vmem:[%s9 + $0x18] sm:$0xff]
  %v971 = vsel %vm228, %v946, 0
  %v974 = vsel %vm228, %v947, 0
  %v977 = vsel %vm228, %v948, 0
  %v980 = vsel %vm228, %v949, 0
  %v983 = vsel %vm228, %v950, 0
  %v986 = vsel %vm228, %v951, 0
  %v989 = vsel %vm228, %v952, 0
  %v992 = vsel %vm228, %v953, 0
  %v995 = vsel %vm228, %v954, 0
  %v998 = vsel %vm228, %v955, 0
  %v1001 = vsel %vm228, %v956, 0
  %v1004 = vsel %vm228, %v957, 0
  %v1007 = vsel %vm228, %v958, 0
  %v1010 = vsel %vm228, %v959, 0
  %v1013 = vsel %vm228, %v960, 0
  %v1016 = vsel %vm228, %v961, 0
  %1018 = vmatprep.subr.mxu0 0.0
  %1019 = vmatpush1.msra.mxu0 %v966
  %1020 = vmatprep.subr.mxu0 0.0
  %1021 = vmatpush1.msra.mxu0 %v967
  %1022 = vmatprep.subr.mxu0 0.0
  %1023 = vmatpush1.msra.mxu0 %v968
  %1024 = vmatprep.subr.mxu0 0.0
  %1025 = vmatpush1.msra.mxu0 %v969
  %1026 = vmatprep.subr.mxu0 0.0
  %1027 = vmatpush1.msra.mxu0 0.0
  %1028 = vmatprep.subr.mxu0 0.0
  %1029 = vmatpush1.msra.mxu0 0.0
  %1030 = vmatprep.subr.mxu0 0.0
  %1031 = vmatpush1.msra.mxu0 0.0
  %1032 = vmatprep.subr.mxu0 0.0
  %1033 = vmatpush1.msra.mxu0 0.0
  %1034 = vmatprep.subr.mxu0 0.0
  %1035 = vmatpush1.msra.mxu0 0.0
  %1036 = vmatprep.subr.mxu0 0.0
  %1037 = vmatpush1.msra.mxu0 0.0
  %1038 = vmatprep.subr.mxu0 0.0
  %1039 = vmatpush1.msra.mxu0 0.0
  %1040 = vmatprep.subr.mxu0 0.0
  %1041 = vmatpush1.msra.mxu0 0.0
  %1042 = vmatprep.subr.mxu0 0.0
  %1043 = vmatpush1.msra.mxu0 0.0
  %1044 = vmatprep.subr.mxu0 0.0
  %1045 = vmatpush1.msra.mxu0 0.0
  %1046 = vmatprep.subr.mxu0 0.0
  %1047 = vmatpush1.msra.mxu0 0.0
  %1048 = vmatprep.subr.mxu0 0.0
  %1049 = vmatpush1.msra.mxu0 0.0
  %1050 = vmatprep.subr.mxu0 0.0
  %1051 = vmatpush1.msra.mxu0 0.0
  %1052 = vmatprep.subr.mxu0 0.0
  %1053 = vmatpush1.msra.mxu0 0.0
  %1054 = vmatprep.subr.mxu0 0.0
  %1055 = vmatpush1.msra.mxu0 0.0
  %1056 = vmatprep.subr.mxu0 0.0
  %1057 = vmatpush1.msra.mxu0 0.0
  %1058 = vmatprep.subr.mxu0 0.0
  %1059 = vmatpush1.msra.mxu0 0.0
  %1060 = vmatprep.subr.mxu0 0.0
  %1061 = vmatpush1.msra.mxu0 0.0
  %1062 = vmatprep.subr.mxu0 0.0
  %1063 = vmatpush1.msra.mxu0 0.0
  %1064 = vmatprep.subr.mxu0 0.0
  %1065 = vmatpush1.msra.mxu0 0.0
  %1066 = vmatprep.subr.mxu0 0.0
  %1067 = vmatpush1.msra.mxu0 0.0
  %1068 = vmatprep.subr.mxu0 0.0
  %1069 = vmatpush1.msra.mxu0 0.0
  %1070 = vmatprep.subr.mxu0 0.0
  %1071 = vmatpush1.msra.mxu0 0.0
  %1072 = vmatprep.subr.mxu0 0.0
  %1073 = vmatpush1.msra.mxu0 0.0
  %1074 = vmatprep.subr.mxu0 0.0
  %1075 = vmatpush1.msra.mxu0 0.0
  %1076 = vmatprep.subr.mxu0 0.0
  %1077 = vmatpush1.msra.mxu0 0.0
  %1078 = vmatprep.subr.mxu0 0.0
  %1079 = vmatpush1.msra.mxu0 0.0
  %1080 = vmatprep.subr.mxu0 0.0
  %1081 = vmatpush1.msra.mxu0 0.0
  %1082 = vmatprep.mubr.f32.mxu0 0.0
  %1083 = vmatmul.mubr.f32.gmra.mrb[0].mxu0 %v971
  %v1084 = vpop.f32.mrb[0].mxu0
  %v1085 = vadd.f32 0.0, %v1084
  %v1086 = vpop.f32.mrb[0].mxu0
  %1087 = vmatprep.mubr.f32.mxu0 0.0
  %1088 = vmatmul.mubr.f32.gmra.mrb[0].mxu0 %v974
  %v1089 = vpop.f32.mrb[0].mxu0
  %v1090 = vadd.f32 0.0, %v1089
  %v1091 = vpop.f32.mrb[0].mxu0
  %1092 = vmatprep.mubr.f32.mxu0 0.0
  %1093 = vmatmul.mubr.f32.gmra.mrb[0].mxu0 %v977
  %v1094 = vpop.f32.mrb[0].mxu0
  %v1095 = vadd.f32 0.0, %v1094
  %v1096 = vpop.f32.mrb[0].mxu0
  %1097 = vmatprep.mubr.f32.mxu0 0.0
  %1098 = vmatmul.mubr.f32.gmra.mrb[0].mxu0 %v980
  %v1099 = vpop.f32.mrb[0].mxu0
  %v1100 = vadd.f32 0.0, %v1099
  %v1101 = vpop.f32.mrb[0].mxu0
  %1102 = vmatprep.mubr.f32.mxu0 0.0
  %1103 = vmatmul.mubr.f32.gmra.mrb[0].mxu0 %v983
  %v1104 = vpop.f32.mrb[0].mxu0
  %v1105 = vadd.f32 0.0, %v1104
  %v1106 = vpop.f32.mrb[0].mxu0
  %1107 = vmatprep.mubr.f32.mxu0 0.0
  %1108 = vmatmul.mubr.f32.gmra.mrb[0].mxu0 %v986
  %v1109 = vpop.f32.mrb[0].mxu0
  %v1110 = vadd.f32 0.0, %v1109
  %v1111 = vpop.f32.mrb[0].mxu0
  %1112 = vmatprep.mubr.f32.mxu0 0.0
  %1113 = vmatmul.mubr.f32.gmra.mrb[0].mxu0 %v989
  %v1114 = vpop.f32.mrb[0].mxu0
  %v1115 = vadd.f32 0.0, %v1114
  %v1116 = vpop.f32.mrb[0].mxu0
  %1117 = vmatprep.mubr.f32.mxu0 0.0
  %1118 = vmatmul.mubr.f32.gmra.mrb[0].mxu0 %v992
  %v1119 = vpop.f32.mrb[0].mxu0
  %v1120 = vadd.f32 0.0, %v1119
  %v1121 = vpop.f32.mrb[0].mxu0
  %1122 = vmatprep.mubr.f32.mxu0 0.0
  %1123 = vmatmul.mubr.f32.gmra.mrb[0].mxu0 %v995
  %v1124 = vpop.f32.mrb[0].mxu0
  %v1125 = vadd.f32 0.0, %v1124
  %v1126 = vpop.f32.mrb[0].mxu0
  %1127 = vmatprep.mubr.f32.mxu0 0.0
  %1128 = vmatmul.mubr.f32.gmra.mrb[0].mxu0 %v998
  %v1129 = vpop.f32.mrb[0].mxu0
  %v1130 = vadd.f32 0.0, %v1129
  %v1131 = vpop.f32.mrb[0].mxu0
  %1132 = vmatprep.mubr.f32.mxu0 0.0
  %1133 = vmatmul.mubr.f32.gmra.mrb[0].mxu0 %v1001
  %v1134 = vpop.f32.mrb[0].mxu0
  %v1135 = vadd.f32 0.0, %v1134
  %v1136 = vpop.f32.mrb[0].mxu0
  %1137 = vmatprep.mubr.f32.mxu0 0.0
  %1138 = vmatmul.mubr.f32.gmra.mrb[0].mxu0 %v1004
  %v1139 = vpop.f32.mrb[0].mxu0
  %v1140 = vadd.f32 0.0, %v1139
  %v1141 = vpop.f32.mrb[0].mxu0
  %1142 = vmatprep.mubr.f32.mxu0 0.0
  %1143 = vmatmul.mubr.f32.gmra.mrb[0].mxu0 %v1007
  %v1144 = vpop.f32.mrb[0].mxu0
  %v1145 = vadd.f32 0.0, %v1144
  %v1146 = vpop.f32.mrb[0].mxu0
  %1147 = vmatprep.mubr.f32.mxu0 0.0
  %1148 = vmatmul.mubr.f32.gmra.mrb[0].mxu0 %v1010
  %v1149 = vpop.f32.mrb[0].mxu0
  %v1150 = vadd.f32 0.0, %v1149
  %v1151 = vpop.f32.mrb[0].mxu0
  %1152 = vmatprep.mubr.f32.mxu0 0.0
  %1153 = vmatmul.mubr.f32.gmra.mrb[0].mxu0 %v1013
  %v1154 = vpop.f32.mrb[0].mxu0
  %v1155 = vadd.f32 0.0, %v1154
  %v1156 = vpop.f32.mrb[0].mxu0
  %1157 = vmatprep.mubr.f32.mxu0 0.0
  %1158 = vmatmul.mubr.f32.gmra.mrb[0].mxu0 %v1016
  %v1159 = vpop.f32.mrb[0].mxu0
  %v1160 = vadd.f32 0.0, %v1159
  %v1161 = vpop.f32.mrb[0].mxu0
  %1162 = vdwg.mxu0
  %v1164 = vsel %vm228, %v898, 0
  %v1167 = vsel %vm228, %v899, 0
  %v1170 = vsel %vm228, %v900, 0
  %v1173 = vsel %vm228, %v901, 0
  %v1176 = vsel %vm228, %v902, 0
  %v1179 = vsel %vm228, %v903, 0
  %v1182 = vsel %vm228, %v904, 0
  %v1185 = vsel %vm228, %v905, 0
  %v1188 = vsel %vm228, %v906, 0
  %v1191 = vsel %vm228, %v907, 0
  %v1194 = vsel %vm228, %v908, 0
  %v1197 = vsel %vm228, %v909, 0
  %v1200 = vsel %vm228, %v910, 0
  %v1203 = vsel %vm228, %v911, 0
  %v1206 = vsel %vm228, %v912, 0
  %v1209 = vsel %vm228, %v913, 0
  %1211 = vmatprep.subr.mxu0 0.0
  %1212 = vmatpush1.msra.mxu0 %v962
  %1213 = vmatprep.subr.mxu0 0.0
  %1214 = vmatpush1.msra.mxu0 %v963
  %1215 = vmatprep.subr.mxu0 0.0
  %1216 = vmatpush1.msra.mxu0 %v964
  %1217 = vmatprep.subr.mxu0 0.0
  %1218 = vmatpush1.msra.mxu0 %v965
  %1219 = vmatprep.subr.mxu0 0.0
  %1220 = vmatpush1.msra.mxu0 0.0
  %1221 = vmatprep.subr.mxu0 0.0
  %1222 = vmatpush1.msra.mxu0 0.0
  %1223 = vmatprep.subr.mxu0 0.0
  %1224 = vmatpush1.msra.mxu0 0.0
  %1225 = vmatprep.subr.mxu0 0.0
  %1226 = vmatpush1.msra.mxu0 0.0
  %1227 = vmatprep.subr.mxu0 0.0
  %1228 = vmatpush1.msra.mxu0 0.0
  %1229 = vmatprep.subr.mxu0 0.0
  %1230 = vmatpush1.msra.mxu0 0.0
  %1231 = vmatprep.subr.mxu0 0.0
  %1232 = vmatpush1.msra.mxu0 0.0
  %1233 = vmatprep.subr.mxu0 0.0
  %1234 = vmatpush1.msra.mxu0 0.0
  %1235 = vmatprep.subr.mxu0 0.0
  %1236 = vmatpush1.msra.mxu0 0.0
  %1237 = vmatprep.subr.mxu0 0.0
  %1238 = vmatpush1.msra.mxu0 0.0
  %1239 = vmatprep.subr.mxu0 0.0
  %1240 = vmatpush1.msra.mxu0 0.0
  %1241 = vmatprep.subr.mxu0 0.0
  %1242 = vmatpush1.msra.mxu0 0.0
  %1243 = vmatprep.subr.mxu0 0.0
  %1244 = vmatpush1.msra.mxu0 0.0
  %1245 = vmatprep.subr.mxu0 0.0
  %1246 = vmatpush1.msra.mxu0 0.0
  %1247 = vmatprep.subr.mxu0 0.0
  %1248 = vmatpush1.msra.mxu0 0.0
  %1249 = vmatprep.subr.mxu0 0.0
  %1250 = vmatpush1.msra.mxu0 0.0
  %1251 = vmatprep.subr.mxu0 0.0
  %1252 = vmatpush1.msra.mxu0 0.0
  %1253 = vmatprep.subr.mxu0 0.0
  %1254 = vmatpush1.msra.mxu0 0.0
  %1255 = vmatprep.subr.mxu0 0.0
  %1256 = vmatpush1.msra.mxu0 0.0
  %1257 = vmatprep.subr.mxu0 0.0
  %1258 = vmatpush1.msra.mxu0 0.0
  %1259 = vmatprep.subr.mxu0 0.0
  %1260 = vmatpush1.msra.mxu0 0.0
  %1261 = vmatprep.subr.mxu0 0.0
  %1262 = vmatpush1.msra.mxu0 0.0
  %1263 = vmatprep.subr.mxu0 0.0
  %1264 = vmatpush1.msra.mxu0 0.0
  %1265 = vmatprep.subr.mxu0 0.0
  %1266 = vmatpush1.msra.mxu0 0.0
  %1267 = vmatprep.subr.mxu0 0.0
  %1268 = vmatpush1.msra.mxu0 0.0
  %1269 = vmatprep.subr.mxu0 0.0
  %1270 = vmatpush1.msra.mxu0 0.0
  %1271 = vmatprep.subr.mxu0 0.0
  %1272 = vmatpush1.msra.mxu0 0.0
  %1273 = vmatprep.subr.mxu0 0.0
  %1274 = vmatpush1.msra.mxu0 0.0
  %1275 = vmatprep.mubr.f32.mxu0 0.0
  %1276 = vmatmul.mubr.f32.gmra.mrb[0].mxu0 %v1164
  %v1277 = vpop.f32.mrb[0].mxu0
  %v1278 = vadd.f32 %v1085, %v1277
  %v1279 = vpop.f32.mrb[0].mxu0
  %1280 = vmatprep.mubr.f32.mxu0 0.0
  %1281 = vmatmul.mubr.f32.gmra.mrb[0].mxu0 %v1167
  %v1282 = vpop.f32.mrb[0].mxu0
  %v1283 = vadd.f32 %v1090, %v1282
  %v1284 = vpop.f32.mrb[0].mxu0
  %1285 = vmatprep.mubr.f32.mxu0 0.0
  %1286 = vmatmul.mubr.f32.gmra.mrb[0].mxu0 %v1170
  %v1287 = vpop.f32.mrb[0].mxu0
  %v1288 = vadd.f32 %v1095, %v1287
  %v1289 = vpop.f32.mrb[0].mxu0
  %1290 = vmatprep.mubr.f32.mxu0 0.0
  %1291 = vmatmul.mubr.f32.gmra.mrb[0].mxu0 %v1173
  %v1292 = vpop.f32.mrb[0].mxu0
  %v1293 = vadd.f32 %v1100, %v1292
  %v1294 = vpop.f32.mrb[0].mxu0
  %1295 = vmatprep.mubr.f32.mxu0 0.0
  %1296 = vmatmul.mubr.f32.gmra.mrb[0].mxu0 %v1176
  %v1297 = vpop.f32.mrb[0].mxu0
  %v1298 = vadd.f32 %v1105, %v1297
  %v1299 = vpop.f32.mrb[0].mxu0
  %1300 = vmatprep.mubr.f32.mxu0 0.0
  %1301 = vmatmul.mubr.f32.gmra.mrb[0].mxu0 %v1179
  %v1302 = vpop.f32.mrb[0].mxu0
  %v1303 = vadd.f32 %v1110, %v1302
  %v1304 = vpop.f32.mrb[0].mxu0
  %1305 = vmatprep.mubr.f32.mxu0 0.0
  %1306 = vmatmul.mubr.f32.gmra.mrb[0].mxu0 %v1182
  %v1307 = vpop.f32.mrb[0].mxu0
  %v1308 = vadd.f32 %v1115, %v1307
  %v1309 = vpop.f32.mrb[0].mxu0
  %1310 = vmatprep.mubr.f32.mxu0 0.0
  %1311 = vmatmul.mubr.f32.gmra.mrb[0].mxu0 %v1185
  %v1312 = vpop.f32.mrb[0].mxu0
  %v1313 = vadd.f32 %v1120, %v1312
  %v1314 = vpop.f32.mrb[0].mxu0
  %1315 = vmatprep.mubr.f32.mxu0 0.0
  %1316 = vmatmul.mubr.f32.gmra.mrb[0].mxu0 %v1188
  %v1317 = vpop.f32.mrb[0].mxu0
  %v1318 = vadd.f32 %v1125, %v1317
  %v1319 = vpop.f32.mrb[0].mxu0
  %1320 = vmatprep.mubr.f32.mxu0 0.0
  %1321 = vmatmul.mubr.f32.gmra.mrb[0].mxu0 %v1191
  %v1322 = vpop.f32.mrb[0].mxu0
  %v1323 = vadd.f32 %v1130, %v1322
  %v1324 = vpop.f32.mrb[0].mxu0
  %1325 = vmatprep.mubr.f32.mxu0 0.0
  %1326 = vmatmul.mubr.f32.gmra.mrb[0].mxu0 %v1194
  %v1327 = vpop.f32.mrb[0].mxu0
  %v1328 = vadd.f32 %v1135, %v1327
  %v1329 = vpop.f32.mrb[0].mxu0
  %1330 = vmatprep.mubr.f32.mxu0 0.0
  %1331 = vmatmul.mubr.f32.gmra.mrb[0].mxu0 %v1197
  %v1332 = vpop.f32.mrb[0].mxu0
  %v1333 = vadd.f32 %v1140, %v1332
  %v1334 = vpop.f32.mrb[0].mxu0
  %1335 = vmatprep.mubr.f32.mxu0 0.0
  %1336 = vmatmul.mubr.f32.gmra.mrb[0].mxu0 %v1200
  %v1337 = vpop.f32.mrb[0].mxu0
  %v1338 = vadd.f32 %v1145, %v1337
  %v1339 = vpop.f32.mrb[0].mxu0
  %1340 = vmatprep.mubr.f32.mxu0 0.0
  %1341 = vmatmul.mubr.f32.gmra.mrb[0].mxu0 %v1203
  %v1342 = vpop.f32.mrb[0].mxu0
  %v1343 = vadd.f32 %v1150, %v1342
  %v1344 = vpop.f32.mrb[0].mxu0
  %1345 = vmatprep.mubr.f32.mxu0 0.0
  %1346 = vmatmul.mubr.f32.gmra.mrb[0].mxu0 %v1206
  %v1347 = vpop.f32.mrb[0].mxu0
  %v1348 = vadd.f32 %v1155, %v1347
  %v1349 = vpop.f32.mrb[0].mxu0
  %1350 = vmatprep.mubr.f32.mxu0 0.0
  %1351 = vmatmul.mubr.f32.gmra.mrb[0].mxu0 %v1209
  %v1352 = vpop.f32.mrb[0].mxu0
  %v1353 = vadd.f32 %v1160, %v1352
  %v1354 = vpop.f32.mrb[0].mxu0
  %1355 = vdwg.mxu0
  %v1356 = vld [vmem:[%s10] sm:$0x1]
  %v1358 = vlaneseq
  %v1359 = vshrl.u32 %v1358, 7
  %v1360 = vsub.s32 0, %v1359
  %v1361 = vrot.slane %v1356, %v1360
  %v1363 = vadd.f32 %v1278, %v1361
  %v1364 = vadd.f32 %v1283, %v1361
  %v1365 = vadd.f32 %v1288, %v1361
  %v1366 = vadd.f32 %v1293, %v1361
  %v1367 = vadd.f32 %v1298, %v1361
  %v1368 = vadd.f32 %v1303, %v1361
  %v1369 = vadd.f32 %v1308, %v1361
  %v1370 = vadd.f32 %v1313, %v1361
  %v1371 = vadd.f32 %v1318, %v1361
  %v1372 = vadd.f32 %v1323, %v1361
  %v1373 = vadd.f32 %v1328, %v1361
  %v1374 = vadd.f32 %v1333, %v1361
  %v1375 = vadd.f32 %v1338, %v1361
  %v1376 = vadd.f32 %v1343, %v1361
  %v1377 = vadd.f32 %v1348, %v1361
  %v1378 = vadd.f32 %v1353, %v1361
  %1379 = vst [vmem:[%s11] sm:$0xff] %v1363
  %1380 = vst [vmem:[%s11 + $0x8] sm:$0xff] %v1364
  %1381 = vst [vmem:[%s11 + $0x10] sm:$0xff] %v1365
  %1382 = vst [vmem:[%s11 + $0x18] sm:$0xff] %v1366
  %1383 = vst [vmem:[%s11 + $0x20] sm:$0xff] %v1367
  %1384 = vst [vmem:[%s11 + $0x28] sm:$0xff] %v1368
  %1385 = vst [vmem:[%s11 + $0x30] sm:$0xff] %v1369
  %1386 = vst [vmem:[%s11 + $0x38] sm:$0xff] %v1370
  %1387 = vst [vmem:[%s11 + $0x40] sm:$0xff] %v1371
  %1388 = vst [vmem:[%s11 + $0x48] sm:$0xff] %v1372
  %1389 = vst [vmem:[%s11 + $0x50] sm:$0xff] %v1373
  %1390 = vst [vmem:[%s11 + $0x58] sm:$0xff] %v1374
  %1391 = vst [vmem:[%s11 + $0x60] sm:$0xff] %v1375
  %1392 = vst [vmem:[%s11 + $0x68] sm:$0xff] %v1376
  %1393 = vst [vmem:[%s11 + $0x70] sm:$0xff] %v1377
  %1394 = vst [vmem:[%s11 + $0x78] sm:$0xff] %v1378
  // Predicated region
  $region46: #{daftstone_sur_forward.9} parent=0 // pred_check
    _
  $region47: #{daftstone_sur_forward.9} parent=0 // pred_check_branch
    %1396 = sbr.rel (0) target = $region49
  $region48: #{daftstone_sur_forward.9} parent=0 // pred_region
    _
  $region49: #{daftstone_sur_forward.9} parent=0 // pred_fallthru
    _
  // Predicated region
  $region50: #{daftstone_sur_forward.9} parent=0 // pred_check
    _
  $region51: #{daftstone_sur_forward.9} parent=0 // pred_check_branch
    %1398 = sbr.rel (0) target = $region53
  $region52: #{daftstone_sur_forward.9} parent=0 // pred_region
    _
  $region53: #{daftstone_sur_forward.9} parent=0 // pred_fallthru
    _

</llo_original>
